<compile_context>
chip_gen: v5e
topology: v5e:2x2
jax: 0.10.0
libtpu: 0.0.40
codegen_flags: <defaults>
</compile_context>

<pallas_src>
import functools

import jax
import jax.numpy as jnp
from jax.experimental import pallas as pl
from jax.experimental.pallas import tpu as pltpu

NEG_SLOPE = 0.01          # torch.nn.LeakyReLU default
BN_EPS = 1e-5             # torch.nn.BatchNorm2d default
MATMUL_DTYPE = jnp.bfloat16
MATMUL_BYTES = 2          # bf16 element size (was wrongly 4 before)


def _chip_budgets():
    """(vmem_limit_bytes, weight_tile_budget_bytes, keep_multi_tiles) per generation."""
    try:
        kind = jax.devices()[0].device_kind.lower()
    except Exception:
        kind = ""
    if ("v5" in kind) or ("v6" in kind):
        # 128 MiB physical VMEM, single TensorCore: one full-N weight block per conv.
        return 100 * 1024 * 1024, 20 * 1024 * 1024, False
    # v7x / unknown: 64 MiB physical VMEM, 2 TensorCores -> keep >=2 N tiles when N>=256.
    return 48 * 1024 * 1024, 7 * 1024 * 1024, True


VMEM_LIMIT, W_TILE_BYTES, KEEP_MULTI_TILES = _chip_budgets()


# ------------------------------------------------------------------ kernels

def _mm_bn_act_kernel(a_ref, w_ref, aux_ref, o_ref, *, use_bn):
    """y = A @ W + b ; optional BatchNorm (batch stats over M) ; per-channel LeakyReLU slope.

    aux rows: 0 = bias, 1 = gamma, 2 = beta, 3 = slope (1.0 identity / 0.01 LeakyReLU).
    Math in f32; the store casts to o_ref.dtype (bf16 for hidden layers).
    """
    a = a_ref[...]
    w = w_ref[...]
    aux = aux_ref[...]
    y = jnp.dot(a, w, preferred_element_type=jnp.float32) + aux[0:1, :]
    if use_bn:
        mean = jnp.mean(y, axis=0, keepdims=True)
        var = jnp.maximum(jnp.mean(y * y, axis=0, keepdims=True) - mean * mean, 0.0)
        y = (y - mean) * jax.lax.rsqrt(var + BN_EPS) * aux[1:2, :] + aux[2:3, :]
    slope = aux[3:4, :]
    o_ref[...] = jnp.where(y >= 0, y, slope * y).astype(o_ref.dtype)


def _max4_kernel(a_ref, b_ref, c_ref, d_ref, o_ref):
    """Element-wise max of the four 2x2-window offsets (MaxPool2d(2))."""
    o_ref[...] = jnp.maximum(jnp.maximum(a_ref[...], b_ref[...]),
                             jnp.maximum(c_ref[...], d_ref[...]))


def _add_leaky_kernel(a_ref, b_ref, o_ref):
    """Residual add followed by LeakyReLU (f32 math, dtype-preserving store)."""
    y = a_ref[...].astype(jnp.float32) + b_ref[...].astype(jnp.float32)
    o_ref[...] = jnp.where(y >= 0, y, NEG_SLOPE * y).astype(o_ref.dtype)


# ------------------------------------------------------------------ wrappers

def _pick_tile_n(k_dim, n):
    """Largest lane-dense N tile whose bf16 weight block fits the per-buffer budget.

    On multi-core parts (v7x) keep at least 2 N tiles when N >= 256 so the 'parallel'
    grid axis can feed the second TensorCore.
    """
    cap = n // 2 if (KEEP_MULTI_TILES and n >= 256) else n
    for t in (2048, 1024, 512, 256, 128):
        if t <= cap and n % t == 0 and k_dim * t * MATMUL_BYTES <= W_TILE_BYTES:
            return t
    return 128 if n % 128 == 0 else n


@functools.partial(jax.jit, static_argnames=("use_bn", "out_dtype"))
def matmul_fused(a, w, aux, use_bn=True, out_dtype=MATMUL_DTYPE):
    m, k = a.shape
    n = w.shape[1]
    tile_n = _pick_tile_n(k, n)
    grid_n = n // tile_n
    kern = functools.partial(_mm_bn_act_kernel, use_bn=use_bn)
    return pl.pallas_call(
        kern,
        out_shape=jax.ShapeDtypeStruct((m, n), out_dtype),
        grid=(grid_n,),
        in_specs=[
            pl.BlockSpec((m, k), lambda j: (0, 0)),       # A: full M,K (resident)
            pl.BlockSpec((k, tile_n), lambda j: (0, j)),  # weight tile (pipelined)
            pl.BlockSpec((4, tile_n), lambda j: (0, j)),  # packed bias/gamma/beta/slope
        ],
        out_specs=pl.BlockSpec((m, tile_n), lambda j: (0, j)),
        compiler_params=pltpu.CompilerParams(
            dimension_semantics=("parallel",),
            vmem_limit_bytes=VMEM_LIMIT),
    )(a.astype(MATMUL_DTYPE), w, aux)


def _slab_shape(total):
    """Reshape target for elementwise kernels: last dim a large multiple of 128."""
    for lane in (1024, 512, 256, 128):
        if total % lane == 0 and total >= 8 * lane:
            return (total // lane, lane)
    for lane in (512, 256, 128):
        if total % lane == 0:
            return (total // lane, lane)
    return (1, total)


@jax.jit
def add_leaky(a, b):
    shp = a.shape
    slab = _slab_shape(a.size)
    out = pl.pallas_call(
        _add_leaky_kernel,
        out_shape=jax.ShapeDtypeStruct(slab, a.dtype),
    )(a.reshape(slab), b.reshape(slab))
    return out.reshape(shp)


@jax.jit
def max4(a, b, c, d):
    shp = a.shape
    slab = _slab_shape(a.size)
    out = pl.pallas_call(
        _max4_kernel,
        out_shape=jax.ShapeDtypeStruct(slab, a.dtype),
    )(a.reshape(slab), b.reshape(slab), c.reshape(slab), d.reshape(slab))
    return out.reshape(shp)


# ------------------------------------------------------------------ conv glue

def conv2d_fused(x, layer, out_dtype=MATMUL_DTYPE):
    """NHWC conv (stride 1, 'same' for k=3 / valid for k=1) via im2col + fused matmul."""
    k = layer["k"]
    nb, h, w, cin = x.shape
    x = x.astype(MATMUL_DTYPE)                         # no-op when already bf16
    if k == 1:
        a = x.reshape(nb * h * w, cin)
    else:
        xp = jnp.pad(x, ((0, 0), (1, 1), (1, 1), (0, 0)))
        cols = [xp[:, kh:kh + h, kw:kw + w, :].reshape(nb * h * w, cin)
                for kh in range(k) for kw in range(k)]
        a = jnp.concatenate(cols, axis=1)
    y = matmul_fused(a, layer["w"], layer["aux"],
                     use_bn=layer["use_bn"], out_dtype=out_dtype)
    cout = layer["cout"]
    return y[:, :cout].reshape(nb, h, w, cout)


def conv_transpose2d_fused(x, layer):
    """ConvTranspose2d(k=3,s=2,p=1,op=1) via 4-phase sub-pixel decomposition (one matmul)."""
    nb, h, w, cin = x.shape
    cout = layer["cout"]
    x = x.astype(MATMUL_DTYPE)
    xp = jnp.pad(x, ((0, 0), (0, 1), (0, 1), (0, 0)))          # bottom/right neighbours
    a = jnp.concatenate(
        [xp[:, :h, :w, :], xp[:, :h, 1:w + 1, :],
         xp[:, 1:h + 1, :w, :], xp[:, 1:h + 1, 1:w + 1, :]],
        axis=-1).reshape(nb * h * w, 4 * cin)
    y = matmul_fused(a, layer["w"], layer["aux"], use_bn=False, out_dtype=MATMUL_DTYPE)
    y = y[:, :4 * cout].reshape(nb, h, w, 2, 2, cout)          # (dh, dw) phases
    y = jnp.transpose(y, (0, 1, 3, 2, 4, 5)).reshape(nb, 2 * h, 2 * w, cout)
    return y


def maxpool2x2(x):
    a = x[:, 0::2, 0::2, :]
    b = x[:, 0::2, 1::2, :]
    c = x[:, 1::2, 0::2, :]
    d = x[:, 1::2, 1::2, :]
    return max4(a, b, c, d)


# ------------------------------------------------------------------ parameters

class KeyGen:
    def __init__(self, seed):
        self.key = jax.random.PRNGKey(seed)

    def __call__(self):
        self.key, sub = jax.random.split(self.key)
        return sub


def _round_up(x, m):
    return ((x + m - 1) // m) * m


def _rand_w(kg, k, cin, cout):
    fan = float(cin * k * k)
    return jax.random.normal(kg(), (k, k, cin, cout), jnp.float32) / jnp.sqrt(fan)


def _rand_b(kg, cout):
    return 0.01 * jax.random.normal(kg(), (cout,), jnp.float32)


def _pad_vec(v, n_pad, fill=0.0):
    v = jnp.asarray(v, jnp.float32)
    return jnp.pad(v, (0, n_pad - v.shape[0]), constant_values=fill)


def _layer(w_hwio, bias, slope, use_bn, k):
    """Conv layer params: bf16 weight (K, N_pad) + packed f32 aux (4, N_pad)."""
    cin, cout = w_hwio.shape[2], w_hwio.shape[3]
    n_pad = _round_up(cout, 128)
    w2 = w_hwio.reshape(k * k * cin, cout)
    w2 = jnp.pad(w2, ((0, 0), (0, n_pad - cout))).astype(MATMUL_DTYPE)
    aux = jnp.stack([
        _pad_vec(bias, n_pad),                              # bias
        _pad_vec(jnp.ones((cout,), jnp.float32), n_pad),    # gamma
        _pad_vec(jnp.zeros((cout,), jnp.float32), n_pad),   # beta
        _pad_vec(slope, n_pad, fill=1.0),                   # LeakyReLU slope
    ], axis=0)
    return {"w": w2, "aux": aux, "use_bn": use_bn, "k": k, "cout": cout}


def _block_diag3x3(ws):
    """Merge per-branch 3x3 conv weights into one block-diagonal (3,3,sum_ci,sum_co)."""
    cis = [w.shape[2] for w in ws]
    cos = [w.shape[3] for w in ws]
    out = jnp.zeros((3, 3, sum(cis), sum(cos)), jnp.float32)
    oi = oo = 0
    for w, ci, co in zip(ws, cis, cos):
        out = out.at[:, :, oi:oi + ci, oo:oo + co].set(w)
        oi += ci
        oo += co
    return out


def init_resb(kg, cin, cout):
    c4 = cout // 4
    w0 = _rand_w(kg, 1, cin, cout); b0 = _rand_b(kg, cout)
    w11 = _rand_w(kg, 3, cin, c4); b11 = _rand_b(kg, c4)
    w21 = _rand_w(kg, 3, cin, c4); b21 = _rand_b(kg, c4)
    w22 = _rand_w(kg, 3, c4, c4);  b22 = _rand_b(kg, c4)
    w31 = _rand_w(kg, 3, cin, c4); b31 = _rand_b(kg, c4)
    w32 = _rand_w(kg, 3, c4, c4);  b32 = _rand_b(kg, c4)
    w33 = _rand_w(kg, 3, c4, c4);  b33 = _rand_b(kg, c4)
    w41 = _rand_w(kg, 3, cin, c4); b41 = _rand_b(kg, c4)
    w42 = _rand_w(kg, 3, c4, c4);  b42 = _rand_b(kg, c4)
    w43 = _rand_w(kg, 3, c4, c4);  b43 = _rand_b(kg, c4)
    w44 = _rand_w(kg, 3, c4, c4);  b44 = _rand_b(kg, c4)

    one = jnp.ones((c4,), jnp.float32)
    act = jnp.full((c4,), NEG_SLOPE, jnp.float32)

    # stage 1: [branch0 (1x1 -> centre tap of 3x3) | conv1_1 | conv2_1 | conv3_1 | conv4_1]
    w0_3x3 = jnp.zeros((3, 3, cin, cout), jnp.float32).at[1, 1].set(w0[0, 0])
    s1 = _layer(jnp.concatenate([w0_3x3, w11, w21, w31, w41], axis=-1),
                jnp.concatenate([b0, b11, b21, b31, b41]),
                jnp.concatenate([jnp.ones((cout,), jnp.float32), one, act, act, act]),
                True, 3)
    # stage 2: block-diag [conv2_2 | conv3_2 | conv4_2]
    s2 = _layer(_block_diag3x3([w22, w32, w42]),
                jnp.concatenate([b22, b32, b42]),
                jnp.concatenate([one, act, act]), True, 3)
    # stage 3: block-diag [conv3_3 | conv4_3]
    s3 = _layer(_block_diag3x3([w33, w43]),
                jnp.concatenate([b33, b43]),
                jnp.concatenate([one, act]), True, 3)
    # stage 4: conv4_4
    s4 = _layer(w44, b44, one, True, 3)

    return {"s1": s1, "s2": s2, "s3": s3, "s4": s4, "c4": c4, "cout": cout}


def init_convT(kg, cin, cout):
    """4-phase sub-pixel weight for ConvTranspose2d(cin,cout,k=3,s=2,p=1,op=1)."""
    wt = jax.random.normal(kg(), (cin, cout, 3, 3), jnp.float32) / jnp.sqrt(float(cin * 9))
    bias = _rand_b(kg, cout)
    wf = lambda kh, kw: wt[:, :, 2 - kh, 2 - kw]        # flipped forward-conv tap (cin,cout)
    z = jnp.zeros((cin, cout), jnp.float32)
    # rows: neighbours [x(i,j) ; x(i,j+1) ; x(i+1,j) ; x(i+1,j+1)], cols: phases [ee|eo|oe|oo]
    row00 = jnp.concatenate([wf(1, 1), wf(1, 0), wf(0, 1), wf(0, 0)], axis=1)
    row01 = jnp.concatenate([z,        wf(1, 2), z,        wf(0, 2)], axis=1)
    row10 = jnp.concatenate([z,        z,        wf(2, 1), wf(2, 0)], axis=1)
    row11 = jnp.concatenate([z,        z,        z,        wf(2, 2)], axis=1)
    w4 = jnp.concatenate([row00, row01, row10, row11], axis=0)     # (4*cin, 4*cout)
    n = 4 * cout
    n_pad = _round_up(n, 128)
    w4 = jnp.pad(w4, ((0, 0), (0, n_pad - n))).astype(MATMUL_DTYPE)
    aux = jnp.stack([
        _pad_vec(jnp.tile(bias, 4), n_pad),
        _pad_vec(jnp.ones((n,), jnp.float32), n_pad),
        _pad_vec(jnp.zeros((n,), jnp.float32), n_pad),
        _pad_vec(jnp.ones((n,), jnp.float32), n_pad, fill=1.0),
    ], axis=0)
    return {"w": w4, "aux": aux, "use_bn": False, "cout": cout}


def init_outconv(kg, cin, cout):
    return _layer(_rand_w(kg, 1, cin, cout), _rand_b(kg, cout),
                  jnp.ones((cout,), jnp.float32), False, 1)


def init_unet(kg, cin, cout):
    return {
        "down1": init_resb(kg, cin, 8),
        "down12": init_resb(kg, 8, 64),
        "down2": init_resb(kg, 64, 128),
        "down3": init_resb(kg, 128, 256),
        "down4": init_resb(kg, 256, 512),
        "res": init_resb(kg, 512, 1024),
        "up1": {"up": init_convT(kg, 1024, 512), "res": init_resb(kg, 1024, 512)},
        "up2": {"up": init_convT(kg, 512, 256), "res": init_resb(kg, 512, 256)},
        "up3": {"up": init_convT(kg, 256, 128), "res": init_resb(kg, 256, 128)},
        "up4": {"up": init_convT(kg, 128, 64), "res": init_resb(kg, 128, 64)},
        "up34": {"up": init_convT(kg, 64, 8), "res": init_resb(kg, 16, 8)},
        "outc": init_outconv(kg, 8, cout),
    }


def init_wholenet(kg):
    return {"fenzi": init_unet(kg, 1, 1),
            "fenmu": init_unet(kg, 1, 1),
            "unwrapped": init_unet(kg, 3, 1)}


# ------------------------------------------------------------------ forward

def resb_fwd(p, x):
    c4, cout = p["c4"], p["cout"]
    s1 = conv2d_fused(x, p["s1"])                     # [x0(cout) | b1 | b2_1 | b3_1 | b4_1]
    x0 = s1[..., :cout]
    b1 = s1[..., cout:cout + c4]
    s2 = conv2d_fused(s1[..., cout + c4:], p["s2"])   # [b2_out | b3_2 | b4_2]
    b2 = s2[..., :c4]
    s3 = conv2d_fused(s2[..., c4:], p["s3"])          # [b3_out | b4_3]
    b3 = s3[..., :c4]
    b4 = conv2d_fused(s3[..., c4:], p["s4"])          # b4_out
    x5 = jnp.concatenate([b1, b2, b3, b4], axis=-1)
    return add_leaky(x0, x5)


def downb_fwd(p, x):
    x1 = resb_fwd(p, x)
    return maxpool2x2(x1), x1


def upb_fwd(p, x, skip):
    x1 = conv_transpose2d_fused(x, p["up"])
    x2 = jnp.concatenate([x1, skip], axis=-1)         # torch.cat((up(x), skip), dim=1)
    return resb_fwd(p["res"], x2)


def unet_fwd(p, x):
    x1, x1_ = downb_fwd(p["down1"], x)
    x12, x12_ = downb_fwd(p["down12"], x1)
    x2, x2_ = downb_fwd(p["down2"], x12)
    x3, x3_ = downb_fwd(p["down3"], x2)
    x4, x4_ = downb_fwd(p["down4"], x3)
    x5 = resb_fwd(p["res"], x4)
    x6 = upb_fwd(p["up1"], x5, x4_)
    x7 = upb_fwd(p["up2"], x6, x3_)
    x8 = upb_fwd(p["up3"], x7, x2_)
    x9 = upb_fwd(p["up4"], x8, x12_)
    x9_10 = upb_fwd(p["up34"], x9, x1_)
    return conv2d_fused(x9_10, p["outc"], out_dtype=jnp.float32)


def wholenet_fwd(p, x):
    xfenzi = unet_fwd(p["fenzi"], x)
    xfenmu = unet_fwd(p["fenmu"], x)
    xfusion = jnp.concatenate([x, xfenzi, xfenmu], axis=-1)   # torch.cat(dim=1) == channels
    x_unwrapped = unet_fwd(p["unwrapped"], xfusion)
    return xfenzi, xfenmu, x_unwrapped


# ------------------------------------------------------------------ main

if __name__ == "__main__":
    kg = KeyGen(0)
    params = init_wholenet(kg)
    # torch input would be NCHW [2, 1, 32, 32]; here NHWC [2, 32, 32, 1].
    # Spatial size must be divisible by 32 (five 2x pooling stages).
    x = jax.random.normal(kg(), (2, 32, 32, 1), jnp.float32)

    fenzi, fenmu, unwrapped = wholenet_fwd(params, x)
    jax.block_until_ready((fenzi, fenmu, unwrapped))

    assert fenzi.shape == (2, 32, 32, 1)
    assert fenmu.shape == (2, 32, 32, 1)
    assert unwrapped.shape == (2, 32, 32, 1)
    assert all(bool(jnp.isfinite(t).all()) for t in (fenzi, fenmu, unwrapped))
    print("KERNEL_OK")
</pallas_src>

<mosaic_0001>
module attributes {stable_mosaic.version = 11 : i64} {
  func.func @_mm_bn_act_kernel(%arg0: i32, %arg1: memref<2048x9xbf16, #tpu.memory_space<vmem>>, %arg2: memref<9x128xbf16, #tpu.memory_space<vmem>>, %arg3: memref<4x128xf32, #tpu.memory_space<vmem>>, %arg4: memref<2048x128xbf16, #tpu.memory_space<vmem>>) attributes {dimension_semantics = [#tpu.dimension_semantics<parallel>], iteration_bounds = array<i64: 1>, scalar_prefetch = 0 : i64, scratch_operands = 0 : i64, tpu.core_type = #tpu.core_type<tc>, window_params = [{pipeline_mode = #tpu.pipeline_mode<synchronous>, transform_indices = @transform_0, window_bounds = array<i64: 2048, 9>}, {transform_indices = @transform_1, window_bounds = array<i64: 9, 128>}, {transform_indices = @transform_2, window_bounds = array<i64: 4, 128>}, {transform_indices = @transform_3, window_bounds = array<i64: 2048, 128>}]} {
    %c0 = arith.constant 0 : index
    %c0_0 = arith.constant 0 : index
    %0 = vector.load %arg1[%c0, %c0_0] : memref<2048x9xbf16, #tpu.memory_space<vmem>>, vector<2048x9xbf16>
    %c0_1 = arith.constant 0 : index
    %c0_2 = arith.constant 0 : index
    %1 = vector.load %arg2[%c0_1, %c0_2] : memref<9x128xbf16, #tpu.memory_space<vmem>>, vector<9x128xbf16>
    %c0_3 = arith.constant 0 : index
    %c0_4 = arith.constant 0 : index
    %2 = vector.load %arg3[%c0_3, %c0_4] : memref<4x128xf32, #tpu.memory_space<vmem>>, vector<4x128xf32>
    %cst = arith.constant dense<0.000000e+00> : vector<2048x128xf32>
    %3 = tpu.matmul %0, %1, %cst {dimension_numbers = #tpu.dot_dimension_numbers<[1], [0], [0], [1], [0, 0, 1, 1], [], []>} : vector<2048x9xbf16>, vector<9x128xbf16>, vector<2048x128xf32> -> vector<2048x128xf32>
    %4 = vector.extract_strided_slice %2 {offsets = [0, 0], sizes = [1, 128], strides = [1, 1]} : vector<4x128xf32> to vector<1x128xf32>
    %5 = vector.broadcast %4 : vector<1x128xf32> to vector<2048x128xf32>
    %6 = arith.addf %3, %5 : vector<2048x128xf32>
    %cst_5 = arith.constant dense<0.000000e+00> : vector<128xf32>
    %7 = vector.multi_reduction <add>, %6, %cst_5 [0] : vector<2048x128xf32> to vector<128xf32>
    %8 = vector.shape_cast %7 : vector<128xf32> to vector<1x128xf32>
    %cst_6 = arith.constant 2.048000e+03 : f32
    %9 = vector.broadcast %cst_6 : f32 to vector<1x128xf32>
    %10 = arith.divf %8, %9 : vector<1x128xf32>
    %11 = arith.mulf %6, %6 : vector<2048x128xf32>
    %cst_7 = arith.constant dense<0.000000e+00> : vector<128xf32>
    %12 = vector.multi_reduction <add>, %11, %cst_7 [0] : vector<2048x128xf32> to vector<128xf32>
    %13 = vector.shape_cast %12 : vector<128xf32> to vector<1x128xf32>
    %cst_8 = arith.constant 2.048000e+03 : f32
    %14 = vector.broadcast %cst_8 : f32 to vector<1x128xf32>
    %15 = arith.divf %13, %14 : vector<1x128xf32>
    %16 = arith.mulf %10, %10 : vector<1x128xf32>
    %17 = arith.subf %15, %16 : vector<1x128xf32>
    %cst_9 = arith.constant 0.000000e+00 : f32
    %18 = vector.broadcast %cst_9 : f32 to vector<1x128xf32>
    %19 = arith.maximumf %17, %18 : vector<1x128xf32>
    %20 = vector.broadcast %10 : vector<1x128xf32> to vector<2048x128xf32>
    %21 = arith.subf %6, %20 : vector<2048x128xf32>
    %cst_10 = arith.constant 9.99999974E-6 : f32
    %22 = vector.broadcast %cst_10 : f32 to vector<1x128xf32>
    %23 = arith.addf %19, %22 : vector<1x128xf32>
    %24 = math.rsqrt %23 : vector<1x128xf32>
    %25 = vector.broadcast %24 : vector<1x128xf32> to vector<2048x128xf32>
    %26 = arith.mulf %21, %25 : vector<2048x128xf32>
    %27 = vector.extract_strided_slice %2 {offsets = [1, 0], sizes = [1, 128], strides = [1, 1]} : vector<4x128xf32> to vector<1x128xf32>
    %28 = vector.broadcast %27 : vector<1x128xf32> to vector<2048x128xf32>
    %29 = arith.mulf %26, %28 : vector<2048x128xf32>
    %30 = vector.extract_strided_slice %2 {offsets = [2, 0], sizes = [1, 128], strides = [1, 1]} : vector<4x128xf32> to vector<1x128xf32>
    %31 = vector.broadcast %30 : vector<1x128xf32> to vector<2048x128xf32>
    %32 = arith.addf %29, %31 : vector<2048x128xf32>
    %33 = vector.extract_strided_slice %2 {offsets = [3, 0], sizes = [1, 128], strides = [1, 1]} : vector<4x128xf32> to vector<1x128xf32>
    %cst_11 = arith.constant 0.000000e+00 : f32
    %34 = vector.broadcast %cst_11 : f32 to vector<2048x128xf32>
    %35 = arith.cmpf oge, %32, %34 : vector<2048x128xf32>
    %36 = vector.broadcast %33 : vector<1x128xf32> to vector<2048x128xf32>
    %37 = arith.mulf %36, %32 : vector<2048x128xf32>
    %38 = arith.select %35, %32, %37 : vector<2048x128xi1>, vector<2048x128xf32>
    %39 = arith.truncf %38 : vector<2048x128xf32> to vector<2048x128xbf16>
    %c0_12 = arith.constant 0 : index
    %c0_13 = arith.constant 0 : index
    %40 = vector.load %arg4[%c0_12, %c0_13] : memref<2048x128xbf16, #tpu.memory_space<vmem>>, vector<2048x128xbf16>
    tpu.vector_store %arg4[%c0_12, %c0_13], %39 {strides = array<i32>} : memref<2048x128xbf16, #tpu.memory_space<vmem>>, vector<2048x128xbf16>,
    return
  }
  func.func @transform_0(%arg0: i32) -> (i32, i32) {
    %c0_i32 = arith.constant 0 : i32
    %c0_i32_0 = arith.constant 0 : i32
    %c0_i32_1 = arith.constant 0 : i32
    return %c0_i32, %c0_i32_0 : i32, i32
  }
  func.func @transform_1(%arg0: i32) -> (i32, i32) {
    %c0_i32 = arith.constant 0 : i32
    %c0_i32_0 = arith.constant 0 : i32
    return %c0_i32, %arg0 : i32, i32
  }
  func.func @transform_2(%arg0: i32) -> (i32, i32) {
    %c0_i32 = arith.constant 0 : i32
    %c0_i32_0 = arith.constant 0 : i32
    return %c0_i32, %arg0 : i32, i32
  }
  func.func @transform_3(%arg0: i32) -> (i32, i32) {
    %c0_i32 = arith.constant 0 : i32
    %c0_i32_0 = arith.constant 0 : i32
    return %c0_i32, %arg0 : i32, i32
  }
}

</mosaic_0001>

<llo_original>
// kernel: matmul_fused.1
$region0: #{matmul_fused.1}
  #allocation0 [shape = 'u32[]', space=smem, size = 0x4, offset = 0x4, fixed_abs, tag = 'smem constant byte address 0x4 - core index']
  #allocation1 [shape = 'u32[72,128]{1,0:T(1,128)}', space=vmem, size = 0x9000, scoped, tag = 'internal scratch']
  %s0 = inlined_call_operand.vmem [shape: bf16[2048,9], index: 0, kind: input, shape index: {}]
  %s1 = inlined_call_operand.vmem [shape: bf16[9,128], index: 1, kind: input, shape index: {}]
  %s2 = inlined_call_operand.vmem [shape: f32[4,128], index: 2, kind: input, shape index: {}]
  %s3 = inlined_call_operand.hbm [shape: bf16[2048,128], index: 3, kind: output, shape index: {}]
  %s4 = sld [smem:[#allocation0]]
  $region22: #{matmul_fused.1} parent=0
    _
  %s6 = ssub.s32 1, %s4
  %s7 = scalar_select 0, %s6, %s4
  $region1: #{matmul_fused.1} parent=0
    #allocation2 [shape = 'u8[524288]{0}', space=vmem, size = 0x80000, scoped, tag = 'output window, operand 0, single buffered']
    #allocation3 [shape = 's32[1]{0}', space=sflag, size = 0x4, scoped, tag = 'scoped memory for matmul_fused.1']
    %8 = vsyncpa [#allocation3], 0
    // Predicated region
    $region2: #{matmul_fused.1} parent=1 // pred_check
      _
    $region3: #{matmul_fused.1} parent=1 // pred_check_branch
      %10 = sbr.rel (0) target = $region5
    $region4: #{matmul_fused.1} parent=1 // pred_region
      _
    $region5: #{matmul_fused.1} parent=1 // pred_fallthru
      _
    // Predicated region
    $region6: #{matmul_fused.1} parent=1 // pred_check
      _
    $region7: #{matmul_fused.1} parent=1 // pred_check_branch
      %12 = sbr.rel (0) target = $region9
    $region8: #{matmul_fused.1} parent=1 // pred_region
      _
    $region9: #{matmul_fused.1} parent=1 // pred_fallthru
      _
    // Predicated region
    $region10: #{matmul_fused.1} parent=1 // pred_check
      _
    $region11: #{matmul_fused.1} parent=1 // pred_check_branch
      %14 = sbr.rel (0) target = $region13
    $region12: #{matmul_fused.1} parent=1 // pred_region
      _
    $region13: #{matmul_fused.1} parent=1 // pred_fallthru
      _
    %v16 = vld [vmem:[%s0] sm:$0xf]
    %v17 = vld [vmem:[%s0 + $0x4] sm:$0xf]
    %v18 = vld [vmem:[%s0 + $0x8] sm:$0xf]
    %v19 = vld [vmem:[%s0 + $0xc] sm:$0xf]
    %v20 = vld [vmem:[%s0 + $0x10] sm:$0xf]
    %v21 = vld [vmem:[%s0 + $0x14] sm:$0xf]
    %v22 = vld [vmem:[%s0 + $0x18] sm:$0xf]
    %v23 = vld [vmem:[%s0 + $0x1c] sm:$0xf]
    %v24 = vld [vmem:[%s0 + $0x20] sm:$0xf]
    %v25 = vld [vmem:[%s0 + $0x24] sm:$0xf]
    %v26 = vld [vmem:[%s0 + $0x28] sm:$0xf]
    %v27 = vld [vmem:[%s0 + $0x2c] sm:$0xf]
    %v28 = vld [vmem:[%s0 + $0x30] sm:$0xf]
    %v29 = vld [vmem:[%s0 + $0x34] sm:$0xf]
    %v30 = vld [vmem:[%s0 + $0x38] sm:$0xf]
    %v31 = vld [vmem:[%s0 + $0x3c] sm:$0xf]
    %v32 = vld [vmem:[%s0 + $0x40] sm:$0xf]
    %v33 = vld [vmem:[%s0 + $0x44] sm:$0xf]
    %v34 = vld [vmem:[%s0 + $0x48] sm:$0xf]
    %v35 = vld [vmem:[%s0 + $0x4c] sm:$0xf]
    %v36 = vld [vmem:[%s0 + $0x50] sm:$0xf]
    %v37 = vld [vmem:[%s0 + $0x54] sm:$0xf]
    %v38 = vld [vmem:[%s0 + $0x58] sm:$0xf]
    %v39 = vld [vmem:[%s0 + $0x5c] sm:$0xf]
    %v40 = vld [vmem:[%s0 + $0x60] sm:$0xf]
    %v41 = vld [vmem:[%s0 + $0x64] sm:$0xf]
    %v42 = vld [vmem:[%s0 + $0x68] sm:$0xf]
    %v43 = vld [vmem:[%s0 + $0x6c] sm:$0xf]
    %v44 = vld [vmem:[%s0 + $0x70] sm:$0xf]
    %v45 = vld [vmem:[%s0 + $0x74] sm:$0xf]
    %v46 = vld [vmem:[%s0 + $0x78] sm:$0xf]
    %v47 = vld [vmem:[%s0 + $0x7c] sm:$0xf]
    %v48 = vld [vmem:[%s0 + $0x80] sm:$0xf]
    %v49 = vld [vmem:[%s0 + $0x84] sm:$0xf]
    %v50 = vld [vmem:[%s0 + $0x88] sm:$0xf]
    %v51 = vld [vmem:[%s0 + $0x8c] sm:$0xf]
    %v52 = vld [vmem:[%s0 + $0x90] sm:$0xf]
    %v53 = vld [vmem:[%s0 + $0x94] sm:$0xf]
    %v54 = vld [vmem:[%s0 + $0x98] sm:$0xf]
    %v55 = vld [vmem:[%s0 + $0x9c] sm:$0xf]
    %v56 = vld [vmem:[%s0 + $0xa0] sm:$0xf]
    %v57 = vld [vmem:[%s0 + $0xa4] sm:$0xf]
    %v58 = vld [vmem:[%s0 + $0xa8] sm:$0xf]
    %v59 = vld [vmem:[%s0 + $0xac] sm:$0xf]
    %v60 = vld [vmem:[%s0 + $0xb0] sm:$0xf]
    %v61 = vld [vmem:[%s0 + $0xb4] sm:$0xf]
    %v62 = vld [vmem:[%s0 + $0xb8] sm:$0xf]
    %v63 = vld [vmem:[%s0 + $0xbc] sm:$0xf]
    %v64 = vld [vmem:[%s0 + $0xc0] sm:$0xf]
    %v65 = vld [vmem:[%s0 + $0xc4] sm:$0xf]
    %v66 = vld [vmem:[%s0 + $0xc8] sm:$0xf]
    %v67 = vld [vmem:[%s0 + $0xcc] sm:$0xf]
    %v68 = vld [vmem:[%s0 + $0xd0] sm:$0xf]
    %v69 = vld [vmem:[%s0 + $0xd4] sm:$0xf]
    %v70 = vld [vmem:[%s0 + $0xd8] sm:$0xf]
    %v71 = vld [vmem:[%s0 + $0xdc] sm:$0xf]
    %v72 = vld [vmem:[%s0 + $0xe0] sm:$0xf]
    %v73 = vld [vmem:[%s0 + $0xe4] sm:$0xf]
    %v74 = vld [vmem:[%s0 + $0xe8] sm:$0xf]
    %v75 = vld [vmem:[%s0 + $0xec] sm:$0xf]
    %v76 = vld [vmem:[%s0 + $0xf0] sm:$0xf]
    %v77 = vld [vmem:[%s0 + $0xf4] sm:$0xf]
    %v78 = vld [vmem:[%s0 + $0xf8] sm:$0xf]
    %v79 = vld [vmem:[%s0 + $0xfc] sm:$0xf]
    %v80 = vld [vmem:[%s0 + $0x100] sm:$0xf]
    %v81 = vld [vmem:[%s0 + $0x104] sm:$0xf]
    %v82 = vld [vmem:[%s0 + $0x108] sm:$0xf]
    %v83 = vld [vmem:[%s0 + $0x10c] sm:$0xf]
    %v84 = vld [vmem:[%s0 + $0x110] sm:$0xf]
    %v85 = vld [vmem:[%s0 + $0x114] sm:$0xf]
    %v86 = vld [vmem:[%s0 + $0x118] sm:$0xf]
    %v87 = vld [vmem:[%s0 + $0x11c] sm:$0xf]
    %v88 = vld [vmem:[%s0 + $0x120] sm:$0xf]
    %v89 = vld [vmem:[%s0 + $0x124] sm:$0xf]
    %v90 = vld [vmem:[%s0 + $0x128] sm:$0xf]
    %v91 = vld [vmem:[%s0 + $0x12c] sm:$0xf]
    %v92 = vld [vmem:[%s0 + $0x130] sm:$0xf]
    %v93 = vld [vmem:[%s0 + $0x134] sm:$0xf]
    %v94 = vld [vmem:[%s0 + $0x138] sm:$0xf]
    %v95 = vld [vmem:[%s0 + $0x13c] sm:$0xf]
    %v96 = vld [vmem:[%s0 + $0x140] sm:$0xf]
    %v97 = vld [vmem:[%s0 + $0x144] sm:$0xf]
    %v98 = vld [vmem:[%s0 + $0x148] sm:$0xf]
    %v99 = vld [vmem:[%s0 + $0x14c] sm:$0xf]
    %v100 = vld [vmem:[%s0 + $0x150] sm:$0xf]
    %v101 = vld [vmem:[%s0 + $0x154] sm:$0xf]
    %v102 = vld [vmem:[%s0 + $0x158] sm:$0xf]
    %v103 = vld [vmem:[%s0 + $0x15c] sm:$0xf]
    %v104 = vld [vmem:[%s0 + $0x160] sm:$0xf]
    %v105 = vld [vmem:[%s0 + $0x164] sm:$0xf]
    %v106 = vld [vmem:[%s0 + $0x168] sm:$0xf]
    %v107 = vld [vmem:[%s0 + $0x16c] sm:$0xf]
    %v108 = vld [vmem:[%s0 + $0x170] sm:$0xf]
    %v109 = vld [vmem:[%s0 + $0x174] sm:$0xf]
    %v110 = vld [vmem:[%s0 + $0x178] sm:$0xf]
    %v111 = vld [vmem:[%s0 + $0x17c] sm:$0xf]
    %v112 = vld [vmem:[%s0 + $0x180] sm:$0xf]
    %v113 = vld [vmem:[%s0 + $0x184] sm:$0xf]
    %v114 = vld [vmem:[%s0 + $0x188] sm:$0xf]
    %v115 = vld [vmem:[%s0 + $0x18c] sm:$0xf]
    %v116 = vld [vmem:[%s0 + $0x190] sm:$0xf]
    %v117 = vld [vmem:[%s0 + $0x194] sm:$0xf]
    %v118 = vld [vmem:[%s0 + $0x198] sm:$0xf]
    %v119 = vld [vmem:[%s0 + $0x19c] sm:$0xf]
    %v120 = vld [vmem:[%s0 + $0x1a0] sm:$0xf]
    %v121 = vld [vmem:[%s0 + $0x1a4] sm:$0xf]
    %v122 = vld [vmem:[%s0 + $0x1a8] sm:$0xf]
    %v123 = vld [vmem:[%s0 + $0x1ac] sm:$0xf]
    %v124 = vld [vmem:[%s0 + $0x1b0] sm:$0xf]
    %v125 = vld [vmem:[%s0 + $0x1b4] sm:$0xf]
    %v126 = vld [vmem:[%s0 + $0x1b8] sm:$0xf]
    %v127 = vld [vmem:[%s0 + $0x1bc] sm:$0xf]
    %v128 = vld [vmem:[%s0 + $0x1c0] sm:$0xf]
    %v129 = vld [vmem:[%s0 + $0x1c4] sm:$0xf]
    %v130 = vld [vmem:[%s0 + $0x1c8] sm:$0xf]
    %v131 = vld [vmem:[%s0 + $0x1cc] sm:$0xf]
    %v132 = vld [vmem:[%s0 + $0x1d0] sm:$0xf]
    %v133 = vld [vmem:[%s0 + $0x1d4] sm:$0xf]
    %v134 = vld [vmem:[%s0 + $0x1d8] sm:$0xf]
    %v135 = vld [vmem:[%s0 + $0x1dc] sm:$0xf]
    %v136 = vld [vmem:[%s0 + $0x1e0] sm:$0xf]
    %v137 = vld [vmem:[%s0 + $0x1e4] sm:$0xf]
    %v138 = vld [vmem:[%s0 + $0x1e8] sm:$0xf]
    %v139 = vld [vmem:[%s0 + $0x1ec] sm:$0xf]
    %v140 = vld [vmem:[%s0 + $0x1f0] sm:$0xf]
    %v141 = vld [vmem:[%s0 + $0x1f4] sm:$0xf]
    %v142 = vld [vmem:[%s0 + $0x1f8] sm:$0xf]
    %v143 = vld [vmem:[%s0 + $0x1fc] sm:$0xf]
    %v144 = vld [vmem:[%s0 + $0x200] sm:$0xf]
    %v145 = vld [vmem:[%s0 + $0x204] sm:$0xf]
    %v146 = vld [vmem:[%s0 + $0x208] sm:$0xf]
    %v147 = vld [vmem:[%s0 + $0x20c] sm:$0xf]
    %v148 = vld [vmem:[%s0 + $0x210] sm:$0xf]
    %v149 = vld [vmem:[%s0 + $0x214] sm:$0xf]
    %v150 = vld [vmem:[%s0 + $0x218] sm:$0xf]
    %v151 = vld [vmem:[%s0 + $0x21c] sm:$0xf]
    %v152 = vld [vmem:[%s0 + $0x220] sm:$0xf]
    %v153 = vld [vmem:[%s0 + $0x224] sm:$0xf]
    %v154 = vld [vmem:[%s0 + $0x228] sm:$0xf]
    %v155 = vld [vmem:[%s0 + $0x22c] sm:$0xf]
    %v156 = vld [vmem:[%s0 + $0x230] sm:$0xf]
    %v157 = vld [vmem:[%s0 + $0x234] sm:$0xf]
    %v158 = vld [vmem:[%s0 + $0x238] sm:$0xf]
    %v159 = vld [vmem:[%s0 + $0x23c] sm:$0xf]
    %v160 = vld [vmem:[%s0 + $0x240] sm:$0xf]
    %v161 = vld [vmem:[%s0 + $0x244] sm:$0xf]
    %v162 = vld [vmem:[%s0 + $0x248] sm:$0xf]
    %v163 = vld [vmem:[%s0 + $0x24c] sm:$0xf]
    %v164 = vld [vmem:[%s0 + $0x250] sm:$0xf]
    %v165 = vld [vmem:[%s0 + $0x254] sm:$0xf]
    %v166 = vld [vmem:[%s0 + $0x258] sm:$0xf]
    %v167 = vld [vmem:[%s0 + $0x25c] sm:$0xf]
    %v168 = vld [vmem:[%s0 + $0x260] sm:$0xf]
    %v169 = vld [vmem:[%s0 + $0x264] sm:$0xf]
    %v170 = vld [vmem:[%s0 + $0x268] sm:$0xf]
    %v171 = vld [vmem:[%s0 + $0x26c] sm:$0xf]
    %v172 = vld [vmem:[%s0 + $0x270] sm:$0xf]
    %v173 = vld [vmem:[%s0 + $0x274] sm:$0xf]
    %v174 = vld [vmem:[%s0 + $0x278] sm:$0xf]
    %v175 = vld [vmem:[%s0 + $0x27c] sm:$0xf]
    %v176 = vld [vmem:[%s0 + $0x280] sm:$0xf]
    %v177 = vld [vmem:[%s0 + $0x284] sm:$0xf]
    %v178 = vld [vmem:[%s0 + $0x288] sm:$0xf]
    %v179 = vld [vmem:[%s0 + $0x28c] sm:$0xf]
    %v180 = vld [vmem:[%s0 + $0x290] sm:$0xf]
    %v181 = vld [vmem:[%s0 + $0x294] sm:$0xf]
    %v182 = vld [vmem:[%s0 + $0x298] sm:$0xf]
    %v183 = vld [vmem:[%s0 + $0x29c] sm:$0xf]
    %v184 = vld [vmem:[%s0 + $0x2a0] sm:$0xf]
    %v185 = vld [vmem:[%s0 + $0x2a4] sm:$0xf]
    %v186 = vld [vmem:[%s0 + $0x2a8] sm:$0xf]
    %v187 = vld [vmem:[%s0 + $0x2ac] sm:$0xf]
    %v188 = vld [vmem:[%s0 + $0x2b0] sm:$0xf]
    %v189 = vld [vmem:[%s0 + $0x2b4] sm:$0xf]
    %v190 = vld [vmem:[%s0 + $0x2b8] sm:$0xf]
    %v191 = vld [vmem:[%s0 + $0x2bc] sm:$0xf]
    %v192 = vld [vmem:[%s0 + $0x2c0] sm:$0xf]
    %v193 = vld [vmem:[%s0 + $0x2c4] sm:$0xf]
    %v194 = vld [vmem:[%s0 + $0x2c8] sm:$0xf]
    %v195 = vld [vmem:[%s0 + $0x2cc] sm:$0xf]
    %v196 = vld [vmem:[%s0 + $0x2d0] sm:$0xf]
    %v197 = vld [vmem:[%s0 + $0x2d4] sm:$0xf]
    %v198 = vld [vmem:[%s0 + $0x2d8] sm:$0xf]
    %v199 = vld [vmem:[%s0 + $0x2dc] sm:$0xf]
    %v200 = vld [vmem:[%s0 + $0x2e0] sm:$0xf]
    %v201 = vld [vmem:[%s0 + $0x2e4] sm:$0xf]
    %v202 = vld [vmem:[%s0 + $0x2e8] sm:$0xf]
    %v203 = vld [vmem:[%s0 + $0x2ec] sm:$0xf]
    %v204 = vld [vmem:[%s0 + $0x2f0] sm:$0xf]
    %v205 = vld [vmem:[%s0 + $0x2f4] sm:$0xf]
    %v206 = vld [vmem:[%s0 + $0x2f8] sm:$0xf]
    %v207 = vld [vmem:[%s0 + $0x2fc] sm:$0xf]
    %v208 = vld [vmem:[%s0 + $0x300] sm:$0xf]
    %v209 = vld [vmem:[%s0 + $0x304] sm:$0xf]
    %v210 = vld [vmem:[%s0 + $0x308] sm:$0xf]
    %v211 = vld [vmem:[%s0 + $0x30c] sm:$0xf]
    %v212 = vld [vmem:[%s0 + $0x310] sm:$0xf]
    %v213 = vld [vmem:[%s0 + $0x314] sm:$0xf]
    %v214 = vld [vmem:[%s0 + $0x318] sm:$0xf]
    %v215 = vld [vmem:[%s0 + $0x31c] sm:$0xf]
    %v216 = vld [vmem:[%s0 + $0x320] sm:$0xf]
    %v217 = vld [vmem:[%s0 + $0x324] sm:$0xf]
    %v218 = vld [vmem:[%s0 + $0x328] sm:$0xf]
    %v219 = vld [vmem:[%s0 + $0x32c] sm:$0xf]
    %v220 = vld [vmem:[%s0 + $0x330] sm:$0xf]
    %v221 = vld [vmem:[%s0 + $0x334] sm:$0xf]
    %v222 = vld [vmem:[%s0 + $0x338] sm:$0xf]
    %v223 = vld [vmem:[%s0 + $0x33c] sm:$0xf]
    %v224 = vld [vmem:[%s0 + $0x340] sm:$0xf]
    %v225 = vld [vmem:[%s0 + $0x344] sm:$0xf]
    %v226 = vld [vmem:[%s0 + $0x348] sm:$0xf]
    %v227 = vld [vmem:[%s0 + $0x34c] sm:$0xf]
    %v228 = vld [vmem:[%s0 + $0x350] sm:$0xf]
    %v229 = vld [vmem:[%s0 + $0x354] sm:$0xf]
    %v230 = vld [vmem:[%s0 + $0x358] sm:$0xf]
    %v231 = vld [vmem:[%s0 + $0x35c] sm:$0xf]
    %v232 = vld [vmem:[%s0 + $0x360] sm:$0xf]
    %v233 = vld [vmem:[%s0 + $0x364] sm:$0xf]
    %v234 = vld [vmem:[%s0 + $0x368] sm:$0xf]
    %v235 = vld [vmem:[%s0 + $0x36c] sm:$0xf]
    %v236 = vld [vmem:[%s0 + $0x370] sm:$0xf]
    %v237 = vld [vmem:[%s0 + $0x374] sm:$0xf]
    %v238 = vld [vmem:[%s0 + $0x378] sm:$0xf]
    %v239 = vld [vmem:[%s0 + $0x37c] sm:$0xf]
    %v240 = vld [vmem:[%s0 + $0x380] sm:$0xf]
    %v241 = vld [vmem:[%s0 + $0x384] sm:$0xf]
    %v242 = vld [vmem:[%s0 + $0x388] sm:$0xf]
    %v243 = vld [vmem:[%s0 + $0x38c] sm:$0xf]
    %v244 = vld [vmem:[%s0 + $0x390] sm:$0xf]
    %v245 = vld [vmem:[%s0 + $0x394] sm:$0xf]
    %v246 = vld [vmem:[%s0 + $0x398] sm:$0xf]
    %v247 = vld [vmem:[%s0 + $0x39c] sm:$0xf]
    %v248 = vld [vmem:[%s0 + $0x3a0] sm:$0xf]
    %v249 = vld [vmem:[%s0 + $0x3a4] sm:$0xf]
    %v250 = vld [vmem:[%s0 + $0x3a8] sm:$0xf]
    %v251 = vld [vmem:[%s0 + $0x3ac] sm:$0xf]
    %v252 = vld [vmem:[%s0 + $0x3b0] sm:$0xf]
    %v253 = vld [vmem:[%s0 + $0x3b4] sm:$0xf]
    %v254 = vld [vmem:[%s0 + $0x3b8] sm:$0xf]
    %v255 = vld [vmem:[%s0 + $0x3bc] sm:$0xf]
    %v256 = vld [vmem:[%s0 + $0x3c0] sm:$0xf]
    %v257 = vld [vmem:[%s0 + $0x3c4] sm:$0xf]
    %v258 = vld [vmem:[%s0 + $0x3c8] sm:$0xf]
    %v259 = vld [vmem:[%s0 + $0x3cc] sm:$0xf]
    %v260 = vld [vmem:[%s0 + $0x3d0] sm:$0xf]
    %v261 = vld [vmem:[%s0 + $0x3d4] sm:$0xf]
    %v262 = vld [vmem:[%s0 + $0x3d8] sm:$0xf]
    %v263 = vld [vmem:[%s0 + $0x3dc] sm:$0xf]
    %v264 = vld [vmem:[%s0 + $0x3e0] sm:$0xf]
    %v265 = vld [vmem:[%s0 + $0x3e4] sm:$0xf]
    %v266 = vld [vmem:[%s0 + $0x3e8] sm:$0xf]
    %v267 = vld [vmem:[%s0 + $0x3ec] sm:$0xf]
    %v268 = vld [vmem:[%s0 + $0x3f0] sm:$0xf]
    %v269 = vld [vmem:[%s0 + $0x3f4] sm:$0xf]
    %v270 = vld [vmem:[%s0 + $0x3f8] sm:$0xf]
    %v271 = vld [vmem:[%s0 + $0x3fc] sm:$0xf]
    %v272 = vld [vmem:[%s1] sm:$0xf]
    %v273 = vld [vmem:[%s1 + $0x4] sm:$0x1]
    %v274 = vld [vmem:[%s2] sm:$0xf]
    %v275 = vperm.slane %v274, 0
    %v532 = vunpack.c.l.b16 %v16
    %v533 = vunpack.c.l.b16 %v17
    %v534 = vunpack.c.l.b16 %v18
    %v535 = vunpack.c.l.b16 %v19
    %v536 = vunpack.c.l.b16 %v20
    %v537 = vunpack.c.l.b16 %v21
    %v538 = vunpack.c.l.b16 %v22
    %v539 = vunpack.c.l.b16 %v23
    %v540 = vunpack.c.l.b16 %v24
    %v541 = vunpack.c.l.b16 %v25
    %v542 = vunpack.c.l.b16 %v26
    %v543 = vunpack.c.l.b16 %v27
    %v544 = vunpack.c.l.b16 %v28
    %v545 = vunpack.c.l.b16 %v29
    %v546 = vunpack.c.l.b16 %v30
    %v547 = vunpack.c.l.b16 %v31
    %v548 = vunpack.c.l.b16 %v32
    %v549 = vunpack.c.l.b16 %v33
    %v550 = vunpack.c.l.b16 %v34
    %v551 = vunpack.c.l.b16 %v35
    %v552 = vunpack.c.l.b16 %v36
    %v553 = vunpack.c.l.b16 %v37
    %v554 = vunpack.c.l.b16 %v38
    %v555 = vunpack.c.l.b16 %v39
    %v556 = vunpack.c.l.b16 %v40
    %v557 = vunpack.c.l.b16 %v41
    %v558 = vunpack.c.l.b16 %v42
    %v559 = vunpack.c.l.b16 %v43
    %v560 = vunpack.c.l.b16 %v44
    %v561 = vunpack.c.l.b16 %v45
    %v562 = vunpack.c.l.b16 %v46
    %v563 = vunpack.c.l.b16 %v47
    %v564 = vunpack.c.l.b16 %v48
    %v565 = vunpack.c.l.b16 %v49
    %v566 = vunpack.c.l.b16 %v50
    %v567 = vunpack.c.l.b16 %v51
    %v568 = vunpack.c.l.b16 %v52
    %v569 = vunpack.c.l.b16 %v53
    %v570 = vunpack.c.l.b16 %v54
    %v571 = vunpack.c.l.b16 %v55
    %v572 = vunpack.c.l.b16 %v56
    %v573 = vunpack.c.l.b16 %v57
    %v574 = vunpack.c.l.b16 %v58
    %v575 = vunpack.c.l.b16 %v59
    %v576 = vunpack.c.l.b16 %v60
    %v577 = vunpack.c.l.b16 %v61
    %v578 = vunpack.c.l.b16 %v62
    %v579 = vunpack.c.l.b16 %v63
    %v580 = vunpack.c.l.b16 %v64
    %v581 = vunpack.c.l.b16 %v65
    %v582 = vunpack.c.l.b16 %v66
    %v583 = vunpack.c.l.b16 %v67
    %v584 = vunpack.c.l.b16 %v68
    %v585 = vunpack.c.l.b16 %v69
    %v586 = vunpack.c.l.b16 %v70
    %v587 = vunpack.c.l.b16 %v71
    %v588 = vunpack.c.l.b16 %v72
    %v589 = vunpack.c.l.b16 %v73
    %v590 = vunpack.c.l.b16 %v74
    %v591 = vunpack.c.l.b16 %v75
    %v592 = vunpack.c.l.b16 %v76
    %v593 = vunpack.c.l.b16 %v77
    %v594 = vunpack.c.l.b16 %v78
    %v595 = vunpack.c.l.b16 %v79
    %v596 = vunpack.c.l.b16 %v80
    %v597 = vunpack.c.l.b16 %v81
    %v598 = vunpack.c.l.b16 %v82
    %v599 = vunpack.c.l.b16 %v83
    %v600 = vunpack.c.l.b16 %v84
    %v601 = vunpack.c.l.b16 %v85
    %v602 = vunpack.c.l.b16 %v86
    %v603 = vunpack.c.l.b16 %v87
    %v604 = vunpack.c.l.b16 %v88
    %v605 = vunpack.c.l.b16 %v89
    %v606 = vunpack.c.l.b16 %v90
    %v607 = vunpack.c.l.b16 %v91
    %v608 = vunpack.c.l.b16 %v92
    %v609 = vunpack.c.l.b16 %v93
    %v610 = vunpack.c.l.b16 %v94
    %v611 = vunpack.c.l.b16 %v95
    %v612 = vunpack.c.l.b16 %v96
    %v613 = vunpack.c.l.b16 %v97
    %v614 = vunpack.c.l.b16 %v98
    %v615 = vunpack.c.l.b16 %v99
    %v616 = vunpack.c.l.b16 %v100
    %v617 = vunpack.c.l.b16 %v101
    %v618 = vunpack.c.l.b16 %v102
    %v619 = vunpack.c.l.b16 %v103
    %v620 = vunpack.c.l.b16 %v104
    %v621 = vunpack.c.l.b16 %v105
    %v622 = vunpack.c.l.b16 %v106
    %v623 = vunpack.c.l.b16 %v107
    %v624 = vunpack.c.l.b16 %v108
    %v625 = vunpack.c.l.b16 %v109
    %v626 = vunpack.c.l.b16 %v110
    %v627 = vunpack.c.l.b16 %v111
    %v628 = vunpack.c.l.b16 %v112
    %v629 = vunpack.c.l.b16 %v113
    %v630 = vunpack.c.l.b16 %v114
    %v631 = vunpack.c.l.b16 %v115
    %v632 = vunpack.c.l.b16 %v116
    %v633 = vunpack.c.l.b16 %v117
    %v634 = vunpack.c.l.b16 %v118
    %v635 = vunpack.c.l.b16 %v119
    %v636 = vunpack.c.l.b16 %v120
    %v637 = vunpack.c.l.b16 %v121
    %v638 = vunpack.c.l.b16 %v122
    %v639 = vunpack.c.l.b16 %v123
    %v640 = vunpack.c.l.b16 %v124
    %v641 = vunpack.c.l.b16 %v125
    %v642 = vunpack.c.l.b16 %v126
    %v643 = vunpack.c.l.b16 %v127
    %v644 = vunpack.c.l.b16 %v128
    %v645 = vunpack.c.l.b16 %v129
    %v646 = vunpack.c.l.b16 %v130
    %v647 = vunpack.c.l.b16 %v131
    %v648 = vunpack.c.l.b16 %v132
    %v649 = vunpack.c.l.b16 %v133
    %v650 = vunpack.c.l.b16 %v134
    %v651 = vunpack.c.l.b16 %v135
    %v652 = vunpack.c.l.b16 %v136
    %v653 = vunpack.c.l.b16 %v137
    %v654 = vunpack.c.l.b16 %v138
    %v655 = vunpack.c.l.b16 %v139
    %v656 = vunpack.c.l.b16 %v140
    %v657 = vunpack.c.l.b16 %v141
    %v658 = vunpack.c.l.b16 %v142
    %v659 = vunpack.c.l.b16 %v143
    %v660 = vunpack.c.l.b16 %v144
    %v661 = vunpack.c.l.b16 %v145
    %v662 = vunpack.c.l.b16 %v146
    %v663 = vunpack.c.l.b16 %v147
    %v664 = vunpack.c.l.b16 %v148
    %v665 = vunpack.c.l.b16 %v149
    %v666 = vunpack.c.l.b16 %v150
    %v667 = vunpack.c.l.b16 %v151
    %v668 = vunpack.c.l.b16 %v152
    %v669 = vunpack.c.l.b16 %v153
    %v670 = vunpack.c.l.b16 %v154
    %v671 = vunpack.c.l.b16 %v155
    %v672 = vunpack.c.l.b16 %v156
    %v673 = vunpack.c.l.b16 %v157
    %v674 = vunpack.c.l.b16 %v158
    %v675 = vunpack.c.l.b16 %v159
    %v676 = vunpack.c.l.b16 %v160
    %v677 = vunpack.c.l.b16 %v161
    %v678 = vunpack.c.l.b16 %v162
    %v679 = vunpack.c.l.b16 %v163
    %v680 = vunpack.c.l.b16 %v164
    %v681 = vunpack.c.l.b16 %v165
    %v682 = vunpack.c.l.b16 %v166
    %v683 = vunpack.c.l.b16 %v167
    %v684 = vunpack.c.l.b16 %v168
    %v685 = vunpack.c.l.b16 %v169
    %v686 = vunpack.c.l.b16 %v170
    %v687 = vunpack.c.l.b16 %v171
    %v688 = vunpack.c.l.b16 %v172
    %v689 = vunpack.c.l.b16 %v173
    %v690 = vunpack.c.l.b16 %v174
    %v691 = vunpack.c.l.b16 %v175
    %v692 = vunpack.c.l.b16 %v176
    %v693 = vunpack.c.l.b16 %v177
    %v694 = vunpack.c.l.b16 %v178
    %v695 = vunpack.c.l.b16 %v179
    %v696 = vunpack.c.l.b16 %v180
    %v697 = vunpack.c.l.b16 %v181
    %v698 = vunpack.c.l.b16 %v182
    %v699 = vunpack.c.l.b16 %v183
    %v700 = vunpack.c.l.b16 %v184
    %v701 = vunpack.c.l.b16 %v185
    %v702 = vunpack.c.l.b16 %v186
    %v703 = vunpack.c.l.b16 %v187
    %v704 = vunpack.c.l.b16 %v188
    %v705 = vunpack.c.l.b16 %v189
    %v706 = vunpack.c.l.b16 %v190
    %v707 = vunpack.c.l.b16 %v191
    %v708 = vunpack.c.l.b16 %v192
    %v709 = vunpack.c.l.b16 %v193
    %v710 = vunpack.c.l.b16 %v194
    %v711 = vunpack.c.l.b16 %v195
    %v712 = vunpack.c.l.b16 %v196
    %v713 = vunpack.c.l.b16 %v197
    %v714 = vunpack.c.l.b16 %v198
    %v715 = vunpack.c.l.b16 %v199
    %v716 = vunpack.c.l.b16 %v200
    %v717 = vunpack.c.l.b16 %v201
    %v718 = vunpack.c.l.b16 %v202
    %v719 = vunpack.c.l.b16 %v203
    %v720 = vunpack.c.l.b16 %v204
    %v721 = vunpack.c.l.b16 %v205
    %v722 = vunpack.c.l.b16 %v206
    %v723 = vunpack.c.l.b16 %v207
    %v724 = vunpack.c.l.b16 %v208
    %v725 = vunpack.c.l.b16 %v209
    %v726 = vunpack.c.l.b16 %v210
    %v727 = vunpack.c.l.b16 %v211
    %v728 = vunpack.c.l.b16 %v212
    %v729 = vunpack.c.l.b16 %v213
    %v730 = vunpack.c.l.b16 %v214
    %v731 = vunpack.c.l.b16 %v215
    %v732 = vunpack.c.l.b16 %v216
    %v733 = vunpack.c.l.b16 %v217
    %v734 = vunpack.c.l.b16 %v218
    %v735 = vunpack.c.l.b16 %v219
    %v736 = vunpack.c.l.b16 %v220
    %v737 = vunpack.c.l.b16 %v221
    %v738 = vunpack.c.l.b16 %v222
    %v739 = vunpack.c.l.b16 %v223
    %v740 = vunpack.c.l.b16 %v224
    %v741 = vunpack.c.l.b16 %v225
    %v742 = vunpack.c.l.b16 %v226
    %v743 = vunpack.c.l.b16 %v227
    %v744 = vunpack.c.l.b16 %v228
    %v745 = vunpack.c.l.b16 %v229
    %v746 = vunpack.c.l.b16 %v230
    %v747 = vunpack.c.l.b16 %v231
    %v748 = vunpack.c.l.b16 %v232
    %v749 = vunpack.c.l.b16 %v233
    %v750 = vunpack.c.l.b16 %v234
    %v751 = vunpack.c.l.b16 %v235
    %v752 = vunpack.c.l.b16 %v236
    %v753 = vunpack.c.l.b16 %v237
    %v754 = vunpack.c.l.b16 %v238
    %v755 = vunpack.c.l.b16 %v239
    %v756 = vunpack.c.l.b16 %v240
    %v757 = vunpack.c.l.b16 %v241
    %v758 = vunpack.c.l.b16 %v242
    %v759 = vunpack.c.l.b16 %v243
    %v760 = vunpack.c.l.b16 %v244
    %v761 = vunpack.c.l.b16 %v245
    %v762 = vunpack.c.l.b16 %v246
    %v763 = vunpack.c.l.b16 %v247
    %v764 = vunpack.c.l.b16 %v248
    %v765 = vunpack.c.l.b16 %v249
    %v766 = vunpack.c.l.b16 %v250
    %v767 = vunpack.c.l.b16 %v251
    %v768 = vunpack.c.l.b16 %v252
    %v769 = vunpack.c.l.b16 %v253
    %v770 = vunpack.c.l.b16 %v254
    %v771 = vunpack.c.l.b16 %v255
    %v772 = vunpack.c.l.b16 %v256
    %v773 = vunpack.c.l.b16 %v257
    %v774 = vunpack.c.l.b16 %v258
    %v775 = vunpack.c.l.b16 %v259
    %v776 = vunpack.c.l.b16 %v260
    %v777 = vunpack.c.l.b16 %v261
    %v778 = vunpack.c.l.b16 %v262
    %v779 = vunpack.c.l.b16 %v263
    %v780 = vunpack.c.l.b16 %v264
    %v781 = vunpack.c.l.b16 %v265
    %v782 = vunpack.c.l.b16 %v266
    %v783 = vunpack.c.l.b16 %v267
    %v784 = vunpack.c.l.b16 %v268
    %v785 = vunpack.c.l.b16 %v269
    %v786 = vunpack.c.l.b16 %v270
    %v787 = vunpack.c.l.b16 %v271
    %v788 = vpack.c.b16 %v533, %v532
    %v789 = vpack.c.b16 %v535, %v534
    %v790 = vpack.c.b16 %v537, %v536
    %v791 = vpack.c.b16 %v539, %v538
    %v792 = vpack.c.b16 %v541, %v540
    %v793 = vpack.c.b16 %v543, %v542
    %v794 = vpack.c.b16 %v545, %v544
    %v795 = vpack.c.b16 %v547, %v546
    %v796 = vpack.c.b16 %v549, %v548
    %v797 = vpack.c.b16 %v551, %v550
    %v798 = vpack.c.b16 %v553, %v552
    %v799 = vpack.c.b16 %v555, %v554
    %v800 = vpack.c.b16 %v557, %v556
    %v801 = vpack.c.b16 %v559, %v558
    %v802 = vpack.c.b16 %v561, %v560
    %v803 = vpack.c.b16 %v563, %v562
    %v804 = vpack.c.b16 %v565, %v564
    %v805 = vpack.c.b16 %v567, %v566
    %v806 = vpack.c.b16 %v569, %v568
    %v807 = vpack.c.b16 %v571, %v570
    %v808 = vpack.c.b16 %v573, %v572
    %v809 = vpack.c.b16 %v575, %v574
    %v810 = vpack.c.b16 %v577, %v576
    %v811 = vpack.c.b16 %v579, %v578
    %v812 = vpack.c.b16 %v581, %v580
    %v813 = vpack.c.b16 %v583, %v582
    %v814 = vpack.c.b16 %v585, %v584
    %v815 = vpack.c.b16 %v587, %v586
    %v816 = vpack.c.b16 %v589, %v588
    %v817 = vpack.c.b16 %v591, %v590
    %v818 = vpack.c.b16 %v593, %v592
    %v819 = vpack.c.b16 %v595, %v594
    %v820 = vpack.c.b16 %v597, %v596
    %v821 = vpack.c.b16 %v599, %v598
    %v822 = vpack.c.b16 %v601, %v600
    %v823 = vpack.c.b16 %v603, %v602
    %v824 = vpack.c.b16 %v605, %v604
    %v825 = vpack.c.b16 %v607, %v606
    %v826 = vpack.c.b16 %v609, %v608
    %v827 = vpack.c.b16 %v611, %v610
    %v828 = vpack.c.b16 %v613, %v612
    %v829 = vpack.c.b16 %v615, %v614
    %v830 = vpack.c.b16 %v617, %v616
    %v831 = vpack.c.b16 %v619, %v618
    %v832 = vpack.c.b16 %v621, %v620
    %v833 = vpack.c.b16 %v623, %v622
    %v834 = vpack.c.b16 %v625, %v624
    %v835 = vpack.c.b16 %v627, %v626
    %v836 = vpack.c.b16 %v629, %v628
    %v837 = vpack.c.b16 %v631, %v630
    %v838 = vpack.c.b16 %v633, %v632
    %v839 = vpack.c.b16 %v635, %v634
    %v840 = vpack.c.b16 %v637, %v636
    %v841 = vpack.c.b16 %v639, %v638
    %v842 = vpack.c.b16 %v641, %v640
    %v843 = vpack.c.b16 %v643, %v642
    %v844 = vpack.c.b16 %v645, %v644
    %v845 = vpack.c.b16 %v647, %v646
    %v846 = vpack.c.b16 %v649, %v648
    %v847 = vpack.c.b16 %v651, %v650
    %v848 = vpack.c.b16 %v653, %v652
    %v849 = vpack.c.b16 %v655, %v654
    %v850 = vpack.c.b16 %v657, %v656
    %v851 = vpack.c.b16 %v659, %v658
    %v852 = vpack.c.b16 %v661, %v660
    %v853 = vpack.c.b16 %v663, %v662
    %v854 = vpack.c.b16 %v665, %v664
    %v855 = vpack.c.b16 %v667, %v666
    %v856 = vpack.c.b16 %v669, %v668
    %v857 = vpack.c.b16 %v671, %v670
    %v858 = vpack.c.b16 %v673, %v672
    %v859 = vpack.c.b16 %v675, %v674
    %v860 = vpack.c.b16 %v677, %v676
    %v861 = vpack.c.b16 %v679, %v678
    %v862 = vpack.c.b16 %v681, %v680
    %v863 = vpack.c.b16 %v683, %v682
    %v864 = vpack.c.b16 %v685, %v684
    %v865 = vpack.c.b16 %v687, %v686
    %v866 = vpack.c.b16 %v689, %v688
    %v867 = vpack.c.b16 %v691, %v690
    %v868 = vpack.c.b16 %v693, %v692
    %v869 = vpack.c.b16 %v695, %v694
    %v870 = vpack.c.b16 %v697, %v696
    %v871 = vpack.c.b16 %v699, %v698
    %v872 = vpack.c.b16 %v701, %v700
    %v873 = vpack.c.b16 %v703, %v702
    %v874 = vpack.c.b16 %v705, %v704
    %v875 = vpack.c.b16 %v707, %v706
    %v876 = vpack.c.b16 %v709, %v708
    %v877 = vpack.c.b16 %v711, %v710
    %v878 = vpack.c.b16 %v713, %v712
    %v879 = vpack.c.b16 %v715, %v714
    %v880 = vpack.c.b16 %v717, %v716
    %v881 = vpack.c.b16 %v719, %v718
    %v882 = vpack.c.b16 %v721, %v720
    %v883 = vpack.c.b16 %v723, %v722
    %v884 = vpack.c.b16 %v725, %v724
    %v885 = vpack.c.b16 %v727, %v726
    %v886 = vpack.c.b16 %v729, %v728
    %v887 = vpack.c.b16 %v731, %v730
    %v888 = vpack.c.b16 %v733, %v732
    %v889 = vpack.c.b16 %v735, %v734
    %v890 = vpack.c.b16 %v737, %v736
    %v891 = vpack.c.b16 %v739, %v738
    %v892 = vpack.c.b16 %v741, %v740
    %v893 = vpack.c.b16 %v743, %v742
    %v894 = vpack.c.b16 %v745, %v744
    %v895 = vpack.c.b16 %v747, %v746
    %v896 = vpack.c.b16 %v749, %v748
    %v897 = vpack.c.b16 %v751, %v750
    %v898 = vpack.c.b16 %v753, %v752
    %v899 = vpack.c.b16 %v755, %v754
    %v900 = vpack.c.b16 %v757, %v756
    %v901 = vpack.c.b16 %v759, %v758
    %v902 = vpack.c.b16 %v761, %v760
    %v903 = vpack.c.b16 %v763, %v762
    %v904 = vpack.c.b16 %v765, %v764
    %v905 = vpack.c.b16 %v767, %v766
    %v906 = vpack.c.b16 %v769, %v768
    %v907 = vpack.c.b16 %v771, %v770
    %v908 = vpack.c.b16 %v773, %v772
    %v909 = vpack.c.b16 %v775, %v774
    %v910 = vpack.c.b16 %v777, %v776
    %v911 = vpack.c.b16 %v779, %v778
    %v912 = vpack.c.b16 %v781, %v780
    %v913 = vpack.c.b16 %v783, %v782
    %v914 = vpack.c.b16 %v785, %v784
    %v915 = vpack.c.b16 %v787, %v786
    %v918 = vunpack.c.l.b16 %v272
    %v919 = vunpack.c.l.b16 %v273
    %v920 = vpack.c.b16 %v919, %v918
    %vm921 = vcmask 72704
    %v923 = vsel %vm921, %v788, 0
    %v926 = vsel %vm921, %v789, 0
    %v929 = vsel %vm921, %v790, 0
    %v932 = vsel %vm921, %v791, 0
    %v935 = vsel %vm921, %v792, 0
    %v938 = vsel %vm921, %v793, 0
    %v941 = vsel %vm921, %v794, 0
    %v944 = vsel %vm921, %v795, 0
    %v947 = vsel %vm921, %v796, 0
    %v950 = vsel %vm921, %v797, 0
    %v953 = vsel %vm921, %v798, 0
    %v956 = vsel %vm921, %v799, 0
    %v959 = vsel %vm921, %v800, 0
    %v962 = vsel %vm921, %v801, 0
    %v965 = vsel %vm921, %v802, 0
    %v968 = vsel %vm921, %v803, 0
    %v971 = vsel %vm921, %v804, 0
    %v974 = vsel %vm921, %v805, 0
    %v977 = vsel %vm921, %v806, 0
    %v980 = vsel %vm921, %v807, 0
    %v983 = vsel %vm921, %v808, 0
    %v986 = vsel %vm921, %v809, 0
    %v989 = vsel %vm921, %v810, 0
    %v992 = vsel %vm921, %v811, 0
    %v995 = vsel %vm921, %v812, 0
    %v998 = vsel %vm921, %v813, 0
    %v1001 = vsel %vm921, %v814, 0
    %v1004 = vsel %vm921, %v815, 0
    %v1007 = vsel %vm921, %v816, 0
    %v1010 = vsel %vm921, %v817, 0
    %v1013 = vsel %vm921, %v818, 0
    %v1016 = vsel %vm921, %v819, 0
    %v1019 = vsel %vm921, %v820, 0
    %v1022 = vsel %vm921, %v821, 0
    %v1025 = vsel %vm921, %v822, 0
    %v1028 = vsel %vm921, %v823, 0
    %v1031 = vsel %vm921, %v824, 0
    %v1034 = vsel %vm921, %v825, 0
    %v1037 = vsel %vm921, %v826, 0
    %v1040 = vsel %vm921, %v827, 0
    %v1043 = vsel %vm921, %v828, 0
    %v1046 = vsel %vm921, %v829, 0
    %v1049 = vsel %vm921, %v830, 0
    %v1052 = vsel %vm921, %v831, 0
    %v1055 = vsel %vm921, %v832, 0
    %v1058 = vsel %vm921, %v833, 0
    %v1061 = vsel %vm921, %v834, 0
    %v1064 = vsel %vm921, %v835, 0
    %v1067 = vsel %vm921, %v836, 0
    %v1070 = vsel %vm921, %v837, 0
    %v1073 = vsel %vm921, %v838, 0
    %v1076 = vsel %vm921, %v839, 0
    %v1079 = vsel %vm921, %v840, 0
    %v1082 = vsel %vm921, %v841, 0
    %v1085 = vsel %vm921, %v842, 0
    %v1088 = vsel %vm921, %v843, 0
    %v1091 = vsel %vm921, %v844, 0
    %v1094 = vsel %vm921, %v845, 0
    %v1097 = vsel %vm921, %v846, 0
    %v1100 = vsel %vm921, %v847, 0
    %v1103 = vsel %vm921, %v848, 0
    %v1106 = vsel %vm921, %v849, 0
    %v1109 = vsel %vm921, %v850, 0
    %v1112 = vsel %vm921, %v851, 0
    %v1115 = vsel %vm921, %v852, 0
    %v1118 = vsel %vm921, %v853, 0
    %v1121 = vsel %vm921, %v854, 0
    %v1124 = vsel %vm921, %v855, 0
    %v1127 = vsel %vm921, %v856, 0
    %v1130 = vsel %vm921, %v857, 0
    %v1133 = vsel %vm921, %v858, 0
    %v1136 = vsel %vm921, %v859, 0
    %v1139 = vsel %vm921, %v860, 0
    %v1142 = vsel %vm921, %v861, 0
    %v1145 = vsel %vm921, %v862, 0
    %v1148 = vsel %vm921, %v863, 0
    %v1151 = vsel %vm921, %v864, 0
    %v1154 = vsel %vm921, %v865, 0
    %v1157 = vsel %vm921, %v866, 0
    %v1160 = vsel %vm921, %v867, 0
    %v1163 = vsel %vm921, %v868, 0
    %v1166 = vsel %vm921, %v869, 0
    %v1169 = vsel %vm921, %v870, 0
    %v1172 = vsel %vm921, %v871, 0
    %v1175 = vsel %vm921, %v872, 0
    %v1178 = vsel %vm921, %v873, 0
    %v1181 = vsel %vm921, %v874, 0
    %v1184 = vsel %vm921, %v875, 0
    %v1187 = vsel %vm921, %v876, 0
    %v1190 = vsel %vm921, %v877, 0
    %v1193 = vsel %vm921, %v878, 0
    %v1196 = vsel %vm921, %v879, 0
    %v1199 = vsel %vm921, %v880, 0
    %v1202 = vsel %vm921, %v881, 0
    %v1205 = vsel %vm921, %v882, 0
    %v1208 = vsel %vm921, %v883, 0
    %v1211 = vsel %vm921, %v884, 0
    %v1214 = vsel %vm921, %v885, 0
    %v1217 = vsel %vm921, %v886, 0
    %v1220 = vsel %vm921, %v887, 0
    %v1223 = vsel %vm921, %v888, 0
    %v1226 = vsel %vm921, %v889, 0
    %v1229 = vsel %vm921, %v890, 0
    %v1232 = vsel %vm921, %v891, 0
    %v1235 = vsel %vm921, %v892, 0
    %v1238 = vsel %vm921, %v893, 0
    %v1241 = vsel %vm921, %v894, 0
    %v1244 = vsel %vm921, %v895, 0
    %v1247 = vsel %vm921, %v896, 0
    %v1250 = vsel %vm921, %v897, 0
    %v1253 = vsel %vm921, %v898, 0
    %v1256 = vsel %vm921, %v899, 0
    %v1259 = vsel %vm921, %v900, 0
    %v1262 = vsel %vm921, %v901, 0
    %v1265 = vsel %vm921, %v902, 0
    %v1268 = vsel %vm921, %v903, 0
    %v1271 = vsel %vm921, %v904, 0
    %v1274 = vsel %vm921, %v905, 0
    %v1277 = vsel %vm921, %v906, 0
    %v1280 = vsel %vm921, %v907, 0
    %v1283 = vsel %vm921, %v908, 0
    %v1286 = vsel %vm921, %v909, 0
    %v1289 = vsel %vm921, %v910, 0
    %v1292 = vsel %vm921, %v911, 0
    %v1295 = vsel %vm921, %v912, 0
    %v1298 = vsel %vm921, %v913, 0
    %v1301 = vsel %vm921, %v914, 0
    %v1304 = vsel %vm921, %v915, 0
    %vm1306 = vcmask 1043456
    %vm1307 = vcmask 1044480
    %v1308 = vsel %vm1306, 4294967295, 65535
    %v1309 = vsel %vm1307, %v1308, 0
    %v1311 = vand.u32 %v920, %v1309
    %1313 = vmatpush.bf16.msra.mxu0 0
    %1314 = vmatpush.bf16.msra.mxu0 0
    %1315 = vmatpush.bf16.msra.mxu0 0
    %1316 = vmatpush.bf16.msra.mxu0 0
    %1317 = vmatpush.bf16.msra.mxu0 0
    %1318 = vmatpush.bf16.msra.mxu0 0
    %1319 = vmatpush.bf16.msra.mxu0 0
    %1320 = vmatpush.bf16.msra.mxu0 %v1311
    %1321 = vmatmul.bf16.gmra.mxu0 %v923
    %v1322 = vpop.f32.mrf.mxu0
    %v1323 = vadd.f32 %v275, %v1322
    %v1324 = vpop.f32.mrf.mxu0
    %v1325 = vadd.f32 %v275, %v1324
    %1326 = vmatmul.bf16.gmra.mxu0 %v926
    %v1327 = vpop.f32.mrf.mxu0
    %v1328 = vadd.f32 %v275, %v1327
    %v1329 = vpop.f32.mrf.mxu0
    %v1330 = vadd.f32 %v275, %v1329
    %1331 = vmatmul.bf16.gmra.mxu0 %v929
    %v1332 = vpop.f32.mrf.mxu0
    %v1333 = vadd.f32 %v275, %v1332
    %v1334 = vpop.f32.mrf.mxu0
    %v1335 = vadd.f32 %v275, %v1334
    %1336 = vmatmul.bf16.gmra.mxu0 %v932
    %v1337 = vpop.f32.mrf.mxu0
    %v1338 = vadd.f32 %v275, %v1337
    %v1339 = vpop.f32.mrf.mxu0
    %v1340 = vadd.f32 %v275, %v1339
    %1341 = vmatmul.bf16.gmra.mxu0 %v935
    %v1342 = vpop.f32.mrf.mxu0
    %v1343 = vadd.f32 %v275, %v1342
    %v1344 = vpop.f32.mrf.mxu0
    %v1345 = vadd.f32 %v275, %v1344
    %1346 = vmatmul.bf16.gmra.mxu0 %v938
    %v1347 = vpop.f32.mrf.mxu0
    %v1348 = vadd.f32 %v275, %v1347
    %v1349 = vpop.f32.mrf.mxu0
    %v1350 = vadd.f32 %v275, %v1349
    %1351 = vmatmul.bf16.gmra.mxu0 %v941
    %v1352 = vpop.f32.mrf.mxu0
    %v1353 = vadd.f32 %v275, %v1352
    %v1354 = vpop.f32.mrf.mxu0
    %v1355 = vadd.f32 %v275, %v1354
    %1356 = vmatmul.bf16.gmra.mxu0 %v944
    %v1357 = vpop.f32.mrf.mxu0
    %v1358 = vadd.f32 %v275, %v1357
    %v1359 = vpop.f32.mrf.mxu0
    %v1360 = vadd.f32 %v275, %v1359
    %1361 = vmatmul.bf16.gmra.mxu0 %v947
    %v1362 = vpop.f32.mrf.mxu0
    %v1363 = vadd.f32 %v275, %v1362
    %v1364 = vpop.f32.mrf.mxu0
    %v1365 = vadd.f32 %v275, %v1364
    %1366 = vmatmul.bf16.gmra.mxu0 %v950
    %v1367 = vpop.f32.mrf.mxu0
    %v1368 = vadd.f32 %v275, %v1367
    %v1369 = vpop.f32.mrf.mxu0
    %v1370 = vadd.f32 %v275, %v1369
    %1371 = vmatmul.bf16.gmra.mxu0 %v953
    %v1372 = vpop.f32.mrf.mxu0
    %v1373 = vadd.f32 %v275, %v1372
    %v1374 = vpop.f32.mrf.mxu0
    %v1375 = vadd.f32 %v275, %v1374
    %1376 = vmatmul.bf16.gmra.mxu0 %v956
    %v1377 = vpop.f32.mrf.mxu0
    %v1378 = vadd.f32 %v275, %v1377
    %v1379 = vpop.f32.mrf.mxu0
    %v1380 = vadd.f32 %v275, %v1379
    %1381 = vmatmul.bf16.gmra.mxu0 %v959
    %v1382 = vpop.f32.mrf.mxu0
    %v1383 = vadd.f32 %v275, %v1382
    %v1384 = vpop.f32.mrf.mxu0
    %v1385 = vadd.f32 %v275, %v1384
    %1386 = vmatmul.bf16.gmra.mxu0 %v962
    %v1387 = vpop.f32.mrf.mxu0
    %v1388 = vadd.f32 %v275, %v1387
    %v1389 = vpop.f32.mrf.mxu0
    %v1390 = vadd.f32 %v275, %v1389
    %1391 = vmatmul.bf16.gmra.mxu0 %v965
    %v1392 = vpop.f32.mrf.mxu0
    %v1393 = vadd.f32 %v275, %v1392
    %v1394 = vpop.f32.mrf.mxu0
    %v1395 = vadd.f32 %v275, %v1394
    %1396 = vmatmul.bf16.gmra.mxu0 %v968
    %v1397 = vpop.f32.mrf.mxu0
    %v1398 = vadd.f32 %v275, %v1397
    %v1399 = vpop.f32.mrf.mxu0
    %v1400 = vadd.f32 %v275, %v1399
    %1401 = vmatmul.bf16.gmra.mxu0 %v971
    %v1402 = vpop.f32.mrf.mxu0
    %v1403 = vadd.f32 %v275, %v1402
    %v1404 = vpop.f32.mrf.mxu0
    %v1405 = vadd.f32 %v275, %v1404
    %1406 = vmatmul.bf16.gmra.mxu0 %v974
    %v1407 = vpop.f32.mrf.mxu0
    %v1408 = vadd.f32 %v275, %v1407
    %v1409 = vpop.f32.mrf.mxu0
    %v1410 = vadd.f32 %v275, %v1409
    %1411 = vmatmul.bf16.gmra.mxu0 %v977
    %v1412 = vpop.f32.mrf.mxu0
    %v1413 = vadd.f32 %v275, %v1412
    %v1414 = vpop.f32.mrf.mxu0
    %v1415 = vadd.f32 %v275, %v1414
    %1416 = vmatmul.bf16.gmra.mxu0 %v980
    %v1417 = vpop.f32.mrf.mxu0
    %v1418 = vadd.f32 %v275, %v1417
    %v1419 = vpop.f32.mrf.mxu0
    %v1420 = vadd.f32 %v275, %v1419
    %1421 = vmatmul.bf16.gmra.mxu0 %v983
    %v1422 = vpop.f32.mrf.mxu0
    %v1423 = vadd.f32 %v275, %v1422
    %v1424 = vpop.f32.mrf.mxu0
    %v1425 = vadd.f32 %v275, %v1424
    %1426 = vmatmul.bf16.gmra.mxu0 %v986
    %v1427 = vpop.f32.mrf.mxu0
    %v1428 = vadd.f32 %v275, %v1427
    %v1429 = vpop.f32.mrf.mxu0
    %v1430 = vadd.f32 %v275, %v1429
    %1431 = vmatmul.bf16.gmra.mxu0 %v989
    %v1432 = vpop.f32.mrf.mxu0
    %v1433 = vadd.f32 %v275, %v1432
    %v1434 = vpop.f32.mrf.mxu0
    %v1435 = vadd.f32 %v275, %v1434
    %1436 = vmatmul.bf16.gmra.mxu0 %v992
    %v1437 = vpop.f32.mrf.mxu0
    %v1438 = vadd.f32 %v275, %v1437
    %v1439 = vpop.f32.mrf.mxu0
    %v1440 = vadd.f32 %v275, %v1439
    %1441 = vmatmul.bf16.gmra.mxu0 %v995
    %v1442 = vpop.f32.mrf.mxu0
    %v1443 = vadd.f32 %v275, %v1442
    %v1444 = vpop.f32.mrf.mxu0
    %v1445 = vadd.f32 %v275, %v1444
    %1446 = vmatmul.bf16.gmra.mxu0 %v998
    %v1447 = vpop.f32.mrf.mxu0
    %v1448 = vadd.f32 %v275, %v1447
    %v1449 = vpop.f32.mrf.mxu0
    %v1450 = vadd.f32 %v275, %v1449
    %1451 = vmatmul.bf16.gmra.mxu0 %v1001
    %v1452 = vpop.f32.mrf.mxu0
    %v1453 = vadd.f32 %v275, %v1452
    %v1454 = vpop.f32.mrf.mxu0
    %v1455 = vadd.f32 %v275, %v1454
    %1456 = vmatmul.bf16.gmra.mxu0 %v1004
    %v1457 = vpop.f32.mrf.mxu0
    %v1458 = vadd.f32 %v275, %v1457
    %v1459 = vpop.f32.mrf.mxu0
    %v1460 = vadd.f32 %v275, %v1459
    %1461 = vmatmul.bf16.gmra.mxu0 %v1007
    %v1462 = vpop.f32.mrf.mxu0
    %v1463 = vadd.f32 %v275, %v1462
    %v1464 = vpop.f32.mrf.mxu0
    %v1465 = vadd.f32 %v275, %v1464
    %1466 = vmatmul.bf16.gmra.mxu0 %v1010
    %v1467 = vpop.f32.mrf.mxu0
    %v1468 = vadd.f32 %v275, %v1467
    %v1469 = vpop.f32.mrf.mxu0
    %v1470 = vadd.f32 %v275, %v1469
    %1471 = vmatmul.bf16.gmra.mxu0 %v1013
    %v1472 = vpop.f32.mrf.mxu0
    %v1473 = vadd.f32 %v275, %v1472
    %v1474 = vpop.f32.mrf.mxu0
    %v1475 = vadd.f32 %v275, %v1474
    %1476 = vmatmul.bf16.gmra.mxu0 %v1016
    %v1477 = vpop.f32.mrf.mxu0
    %v1478 = vadd.f32 %v275, %v1477
    %v1479 = vpop.f32.mrf.mxu0
    %v1480 = vadd.f32 %v275, %v1479
    %1481 = vmatmul.bf16.gmra.mxu0 %v1019
    %v1482 = vpop.f32.mrf.mxu0
    %v1483 = vadd.f32 %v275, %v1482
    %v1484 = vpop.f32.mrf.mxu0
    %v1485 = vadd.f32 %v275, %v1484
    %1486 = vmatmul.bf16.gmra.mxu0 %v1022
    %v1487 = vpop.f32.mrf.mxu0
    %v1488 = vadd.f32 %v275, %v1487
    %v1489 = vpop.f32.mrf.mxu0
    %v1490 = vadd.f32 %v275, %v1489
    %1491 = vmatmul.bf16.gmra.mxu0 %v1025
    %v1492 = vpop.f32.mrf.mxu0
    %v1493 = vadd.f32 %v275, %v1492
    %v1494 = vpop.f32.mrf.mxu0
    %v1495 = vadd.f32 %v275, %v1494
    %1496 = vmatmul.bf16.gmra.mxu0 %v1028
    %v1497 = vpop.f32.mrf.mxu0
    %v1498 = vadd.f32 %v275, %v1497
    %v1499 = vpop.f32.mrf.mxu0
    %v1500 = vadd.f32 %v275, %v1499
    %1501 = vmatmul.bf16.gmra.mxu0 %v1031
    %v1502 = vpop.f32.mrf.mxu0
    %v1503 = vadd.f32 %v275, %v1502
    %v1504 = vpop.f32.mrf.mxu0
    %v1505 = vadd.f32 %v275, %v1504
    %1506 = vmatmul.bf16.gmra.mxu0 %v1034
    %v1507 = vpop.f32.mrf.mxu0
    %v1508 = vadd.f32 %v275, %v1507
    %v1509 = vpop.f32.mrf.mxu0
    %v1510 = vadd.f32 %v275, %v1509
    %1511 = vmatmul.bf16.gmra.mxu0 %v1037
    %v1512 = vpop.f32.mrf.mxu0
    %v1513 = vadd.f32 %v275, %v1512
    %v1514 = vpop.f32.mrf.mxu0
    %v1515 = vadd.f32 %v275, %v1514
    %1516 = vmatmul.bf16.gmra.mxu0 %v1040
    %v1517 = vpop.f32.mrf.mxu0
    %v1518 = vadd.f32 %v275, %v1517
    %v1519 = vpop.f32.mrf.mxu0
    %v1520 = vadd.f32 %v275, %v1519
    %1521 = vmatmul.bf16.gmra.mxu0 %v1043
    %v1522 = vpop.f32.mrf.mxu0
    %v1523 = vadd.f32 %v275, %v1522
    %v1524 = vpop.f32.mrf.mxu0
    %v1525 = vadd.f32 %v275, %v1524
    %1526 = vmatmul.bf16.gmra.mxu0 %v1046
    %v1527 = vpop.f32.mrf.mxu0
    %v1528 = vadd.f32 %v275, %v1527
    %v1529 = vpop.f32.mrf.mxu0
    %v1530 = vadd.f32 %v275, %v1529
    %1531 = vmatmul.bf16.gmra.mxu0 %v1049
    %v1532 = vpop.f32.mrf.mxu0
    %v1533 = vadd.f32 %v275, %v1532
    %v1534 = vpop.f32.mrf.mxu0
    %v1535 = vadd.f32 %v275, %v1534
    %1536 = vmatmul.bf16.gmra.mxu0 %v1052
    %v1537 = vpop.f32.mrf.mxu0
    %v1538 = vadd.f32 %v275, %v1537
    %v1539 = vpop.f32.mrf.mxu0
    %v1540 = vadd.f32 %v275, %v1539
    %1541 = vmatmul.bf16.gmra.mxu0 %v1055
    %v1542 = vpop.f32.mrf.mxu0
    %v1543 = vadd.f32 %v275, %v1542
    %v1544 = vpop.f32.mrf.mxu0
    %v1545 = vadd.f32 %v275, %v1544
    %1546 = vmatmul.bf16.gmra.mxu0 %v1058
    %v1547 = vpop.f32.mrf.mxu0
    %v1548 = vadd.f32 %v275, %v1547
    %v1549 = vpop.f32.mrf.mxu0
    %v1550 = vadd.f32 %v275, %v1549
    %1551 = vmatmul.bf16.gmra.mxu0 %v1061
    %v1552 = vpop.f32.mrf.mxu0
    %v1553 = vadd.f32 %v275, %v1552
    %v1554 = vpop.f32.mrf.mxu0
    %v1555 = vadd.f32 %v275, %v1554
    %1556 = vmatmul.bf16.gmra.mxu0 %v1064
    %v1557 = vpop.f32.mrf.mxu0
    %v1558 = vadd.f32 %v275, %v1557
    %v1559 = vpop.f32.mrf.mxu0
    %v1560 = vadd.f32 %v275, %v1559
    %1561 = vmatmul.bf16.gmra.mxu0 %v1067
    %v1562 = vpop.f32.mrf.mxu0
    %v1563 = vadd.f32 %v275, %v1562
    %v1564 = vpop.f32.mrf.mxu0
    %v1565 = vadd.f32 %v275, %v1564
    %1566 = vmatmul.bf16.gmra.mxu0 %v1070
    %v1567 = vpop.f32.mrf.mxu0
    %v1568 = vadd.f32 %v275, %v1567
    %v1569 = vpop.f32.mrf.mxu0
    %v1570 = vadd.f32 %v275, %v1569
    %1571 = vmatmul.bf16.gmra.mxu0 %v1073
    %v1572 = vpop.f32.mrf.mxu0
    %v1573 = vadd.f32 %v275, %v1572
    %v1574 = vpop.f32.mrf.mxu0
    %v1575 = vadd.f32 %v275, %v1574
    %1576 = vmatmul.bf16.gmra.mxu0 %v1076
    %v1577 = vpop.f32.mrf.mxu0
    %v1578 = vadd.f32 %v275, %v1577
    %v1579 = vpop.f32.mrf.mxu0
    %v1580 = vadd.f32 %v275, %v1579
    %1581 = vmatmul.bf16.gmra.mxu0 %v1079
    %v1582 = vpop.f32.mrf.mxu0
    %v1583 = vadd.f32 %v275, %v1582
    %v1584 = vpop.f32.mrf.mxu0
    %v1585 = vadd.f32 %v275, %v1584
    %1586 = vmatmul.bf16.gmra.mxu0 %v1082
    %v1587 = vpop.f32.mrf.mxu0
    %v1588 = vadd.f32 %v275, %v1587
    %v1589 = vpop.f32.mrf.mxu0
    %v1590 = vadd.f32 %v275, %v1589
    %1591 = vmatmul.bf16.gmra.mxu0 %v1085
    %v1592 = vpop.f32.mrf.mxu0
    %v1593 = vadd.f32 %v275, %v1592
    %v1594 = vpop.f32.mrf.mxu0
    %v1595 = vadd.f32 %v275, %v1594
    %1596 = vmatmul.bf16.gmra.mxu0 %v1088
    %v1597 = vpop.f32.mrf.mxu0
    %v1598 = vadd.f32 %v275, %v1597
    %v1599 = vpop.f32.mrf.mxu0
    %v1600 = vadd.f32 %v275, %v1599
    %1601 = vmatmul.bf16.gmra.mxu0 %v1091
    %v1602 = vpop.f32.mrf.mxu0
    %v1603 = vadd.f32 %v275, %v1602
    %v1604 = vpop.f32.mrf.mxu0
    %v1605 = vadd.f32 %v275, %v1604
    %1606 = vmatmul.bf16.gmra.mxu0 %v1094
    %v1607 = vpop.f32.mrf.mxu0
    %v1608 = vadd.f32 %v275, %v1607
    %v1609 = vpop.f32.mrf.mxu0
    %v1610 = vadd.f32 %v275, %v1609
    %1611 = vmatmul.bf16.gmra.mxu0 %v1097
    %v1612 = vpop.f32.mrf.mxu0
    %v1613 = vadd.f32 %v275, %v1612
    %v1614 = vpop.f32.mrf.mxu0
    %v1615 = vadd.f32 %v275, %v1614
    %1616 = vmatmul.bf16.gmra.mxu0 %v1100
    %v1617 = vpop.f32.mrf.mxu0
    %v1618 = vadd.f32 %v275, %v1617
    %v1619 = vpop.f32.mrf.mxu0
    %v1620 = vadd.f32 %v275, %v1619
    %1621 = vmatmul.bf16.gmra.mxu0 %v1103
    %v1622 = vpop.f32.mrf.mxu0
    %v1623 = vadd.f32 %v275, %v1622
    %v1624 = vpop.f32.mrf.mxu0
    %v1625 = vadd.f32 %v275, %v1624
    %1626 = vmatmul.bf16.gmra.mxu0 %v1106
    %v1627 = vpop.f32.mrf.mxu0
    %v1628 = vadd.f32 %v275, %v1627
    %v1629 = vpop.f32.mrf.mxu0
    %v1630 = vadd.f32 %v275, %v1629
    %1631 = vmatmul.bf16.gmra.mxu0 %v1109
    %v1632 = vpop.f32.mrf.mxu0
    %v1633 = vadd.f32 %v275, %v1632
    %v1634 = vpop.f32.mrf.mxu0
    %v1635 = vadd.f32 %v275, %v1634
    %1636 = vmatmul.bf16.gmra.mxu0 %v1112
    %v1637 = vpop.f32.mrf.mxu0
    %v1638 = vadd.f32 %v275, %v1637
    %v1639 = vpop.f32.mrf.mxu0
    %v1640 = vadd.f32 %v275, %v1639
    %1641 = vmatmul.bf16.gmra.mxu0 %v1115
    %v1642 = vpop.f32.mrf.mxu0
    %v1643 = vadd.f32 %v275, %v1642
    %v1644 = vpop.f32.mrf.mxu0
    %v1645 = vadd.f32 %v275, %v1644
    %1646 = vmatmul.bf16.gmra.mxu0 %v1118
    %v1647 = vpop.f32.mrf.mxu0
    %v1648 = vadd.f32 %v275, %v1647
    %v1649 = vpop.f32.mrf.mxu0
    %v1650 = vadd.f32 %v275, %v1649
    %1651 = vmatmul.bf16.gmra.mxu0 %v1121
    %v1652 = vpop.f32.mrf.mxu0
    %v1653 = vadd.f32 %v275, %v1652
    %v1654 = vpop.f32.mrf.mxu0
    %v1655 = vadd.f32 %v275, %v1654
    %1656 = vmatmul.bf16.gmra.mxu0 %v1124
    %v1657 = vpop.f32.mrf.mxu0
    %v1658 = vadd.f32 %v275, %v1657
    %v1659 = vpop.f32.mrf.mxu0
    %v1660 = vadd.f32 %v275, %v1659
    %1661 = vmatmul.bf16.gmra.mxu0 %v1127
    %v1662 = vpop.f32.mrf.mxu0
    %v1663 = vadd.f32 %v275, %v1662
    %v1664 = vpop.f32.mrf.mxu0
    %v1665 = vadd.f32 %v275, %v1664
    %1666 = vmatmul.bf16.gmra.mxu0 %v1130
    %v1667 = vpop.f32.mrf.mxu0
    %v1668 = vadd.f32 %v275, %v1667
    %v1669 = vpop.f32.mrf.mxu0
    %v1670 = vadd.f32 %v275, %v1669
    %1671 = vmatmul.bf16.gmra.mxu0 %v1133
    %v1672 = vpop.f32.mrf.mxu0
    %v1673 = vadd.f32 %v275, %v1672
    %v1674 = vpop.f32.mrf.mxu0
    %v1675 = vadd.f32 %v275, %v1674
    %1676 = vmatmul.bf16.gmra.mxu0 %v1136
    %v1677 = vpop.f32.mrf.mxu0
    %v1678 = vadd.f32 %v275, %v1677
    %v1679 = vpop.f32.mrf.mxu0
    %v1680 = vadd.f32 %v275, %v1679
    %1681 = vmatmul.bf16.gmra.mxu0 %v1139
    %v1682 = vpop.f32.mrf.mxu0
    %v1683 = vadd.f32 %v275, %v1682
    %v1684 = vpop.f32.mrf.mxu0
    %v1685 = vadd.f32 %v275, %v1684
    %1686 = vmatmul.bf16.gmra.mxu0 %v1142
    %v1687 = vpop.f32.mrf.mxu0
    %v1688 = vadd.f32 %v275, %v1687
    %v1689 = vpop.f32.mrf.mxu0
    %v1690 = vadd.f32 %v275, %v1689
    %1691 = vmatmul.bf16.gmra.mxu0 %v1145
    %v1692 = vpop.f32.mrf.mxu0
    %v1693 = vadd.f32 %v275, %v1692
    %v1694 = vpop.f32.mrf.mxu0
    %v1695 = vadd.f32 %v275, %v1694
    %1696 = vmatmul.bf16.gmra.mxu0 %v1148
    %v1697 = vpop.f32.mrf.mxu0
    %v1698 = vadd.f32 %v275, %v1697
    %v1699 = vpop.f32.mrf.mxu0
    %v1700 = vadd.f32 %v275, %v1699
    %1701 = vmatmul.bf16.gmra.mxu0 %v1151
    %v1702 = vpop.f32.mrf.mxu0
    %v1703 = vadd.f32 %v275, %v1702
    %v1704 = vpop.f32.mrf.mxu0
    %v1705 = vadd.f32 %v275, %v1704
    %1706 = vmatmul.bf16.gmra.mxu0 %v1154
    %v1707 = vpop.f32.mrf.mxu0
    %v1708 = vadd.f32 %v275, %v1707
    %v1709 = vpop.f32.mrf.mxu0
    %v1710 = vadd.f32 %v275, %v1709
    %1711 = vmatmul.bf16.gmra.mxu0 %v1157
    %v1712 = vpop.f32.mrf.mxu0
    %v1713 = vadd.f32 %v275, %v1712
    %v1714 = vpop.f32.mrf.mxu0
    %v1715 = vadd.f32 %v275, %v1714
    %1716 = vmatmul.bf16.gmra.mxu0 %v1160
    %v1717 = vpop.f32.mrf.mxu0
    %v1718 = vadd.f32 %v275, %v1717
    %v1719 = vpop.f32.mrf.mxu0
    %v1720 = vadd.f32 %v275, %v1719
    %1721 = vmatmul.bf16.gmra.mxu0 %v1163
    %v1722 = vpop.f32.mrf.mxu0
    %v1723 = vadd.f32 %v275, %v1722
    %v1724 = vpop.f32.mrf.mxu0
    %v1725 = vadd.f32 %v275, %v1724
    %1726 = vmatmul.bf16.gmra.mxu0 %v1166
    %v1727 = vpop.f32.mrf.mxu0
    %v1728 = vadd.f32 %v275, %v1727
    %v1729 = vpop.f32.mrf.mxu0
    %v1730 = vadd.f32 %v275, %v1729
    %1731 = vmatmul.bf16.gmra.mxu0 %v1169
    %v1732 = vpop.f32.mrf.mxu0
    %v1733 = vadd.f32 %v275, %v1732
    %v1734 = vpop.f32.mrf.mxu0
    %v1735 = vadd.f32 %v275, %v1734
    %1736 = vmatmul.bf16.gmra.mxu0 %v1172
    %v1737 = vpop.f32.mrf.mxu0
    %v1738 = vadd.f32 %v275, %v1737
    %v1739 = vpop.f32.mrf.mxu0
    %v1740 = vadd.f32 %v275, %v1739
    %1741 = vmatmul.bf16.gmra.mxu0 %v1175
    %v1742 = vpop.f32.mrf.mxu0
    %v1743 = vadd.f32 %v275, %v1742
    %v1744 = vpop.f32.mrf.mxu0
    %v1745 = vadd.f32 %v275, %v1744
    %1746 = vmatmul.bf16.gmra.mxu0 %v1178
    %v1747 = vpop.f32.mrf.mxu0
    %v1748 = vadd.f32 %v275, %v1747
    %v1749 = vpop.f32.mrf.mxu0
    %v1750 = vadd.f32 %v275, %v1749
    %1751 = vmatmul.bf16.gmra.mxu0 %v1181
    %v1752 = vpop.f32.mrf.mxu0
    %v1753 = vadd.f32 %v275, %v1752
    %v1754 = vpop.f32.mrf.mxu0
    %v1755 = vadd.f32 %v275, %v1754
    %1756 = vmatmul.bf16.gmra.mxu0 %v1184
    %v1757 = vpop.f32.mrf.mxu0
    %v1758 = vadd.f32 %v275, %v1757
    %v1759 = vpop.f32.mrf.mxu0
    %v1760 = vadd.f32 %v275, %v1759
    %1761 = vmatmul.bf16.gmra.mxu0 %v1187
    %v1762 = vpop.f32.mrf.mxu0
    %v1763 = vadd.f32 %v275, %v1762
    %v1764 = vpop.f32.mrf.mxu0
    %v1765 = vadd.f32 %v275, %v1764
    %1766 = vmatmul.bf16.gmra.mxu0 %v1190
    %v1767 = vpop.f32.mrf.mxu0
    %v1768 = vadd.f32 %v275, %v1767
    %v1769 = vpop.f32.mrf.mxu0
    %v1770 = vadd.f32 %v275, %v1769
    %1771 = vmatmul.bf16.gmra.mxu0 %v1193
    %v1772 = vpop.f32.mrf.mxu0
    %v1773 = vadd.f32 %v275, %v1772
    %v1774 = vpop.f32.mrf.mxu0
    %v1775 = vadd.f32 %v275, %v1774
    %1776 = vmatmul.bf16.gmra.mxu0 %v1196
    %v1777 = vpop.f32.mrf.mxu0
    %v1778 = vadd.f32 %v275, %v1777
    %v1779 = vpop.f32.mrf.mxu0
    %v1780 = vadd.f32 %v275, %v1779
    %1781 = vmatmul.bf16.gmra.mxu0 %v1199
    %v1782 = vpop.f32.mrf.mxu0
    %v1783 = vadd.f32 %v275, %v1782
    %v1784 = vpop.f32.mrf.mxu0
    %v1785 = vadd.f32 %v275, %v1784
    %1786 = vmatmul.bf16.gmra.mxu0 %v1202
    %v1787 = vpop.f32.mrf.mxu0
    %v1788 = vadd.f32 %v275, %v1787
    %v1789 = vpop.f32.mrf.mxu0
    %v1790 = vadd.f32 %v275, %v1789
    %1791 = vmatmul.bf16.gmra.mxu0 %v1205
    %v1792 = vpop.f32.mrf.mxu0
    %v1793 = vadd.f32 %v275, %v1792
    %v1794 = vpop.f32.mrf.mxu0
    %v1795 = vadd.f32 %v275, %v1794
    %1796 = vmatmul.bf16.gmra.mxu0 %v1208
    %v1797 = vpop.f32.mrf.mxu0
    %v1798 = vadd.f32 %v275, %v1797
    %v1799 = vpop.f32.mrf.mxu0
    %v1800 = vadd.f32 %v275, %v1799
    %1801 = vmatmul.bf16.gmra.mxu0 %v1211
    %v1802 = vpop.f32.mrf.mxu0
    %v1803 = vadd.f32 %v275, %v1802
    %v1804 = vpop.f32.mrf.mxu0
    %v1805 = vadd.f32 %v275, %v1804
    %1806 = vmatmul.bf16.gmra.mxu0 %v1214
    %v1807 = vpop.f32.mrf.mxu0
    %v1808 = vadd.f32 %v275, %v1807
    %v1809 = vpop.f32.mrf.mxu0
    %v1810 = vadd.f32 %v275, %v1809
    %1811 = vmatmul.bf16.gmra.mxu0 %v1217
    %v1812 = vpop.f32.mrf.mxu0
    %v1813 = vadd.f32 %v275, %v1812
    %v1814 = vpop.f32.mrf.mxu0
    %v1815 = vadd.f32 %v275, %v1814
    %1816 = vmatmul.bf16.gmra.mxu0 %v1220
    %v1817 = vpop.f32.mrf.mxu0
    %v1818 = vadd.f32 %v275, %v1817
    %v1819 = vpop.f32.mrf.mxu0
    %v1820 = vadd.f32 %v275, %v1819
    %1821 = vmatmul.bf16.gmra.mxu0 %v1223
    %v1822 = vpop.f32.mrf.mxu0
    %v1823 = vadd.f32 %v275, %v1822
    %v1824 = vpop.f32.mrf.mxu0
    %v1825 = vadd.f32 %v275, %v1824
    %1826 = vmatmul.bf16.gmra.mxu0 %v1226
    %v1827 = vpop.f32.mrf.mxu0
    %v1828 = vadd.f32 %v275, %v1827
    %v1829 = vpop.f32.mrf.mxu0
    %v1830 = vadd.f32 %v275, %v1829
    %1831 = vmatmul.bf16.gmra.mxu0 %v1229
    %v1832 = vpop.f32.mrf.mxu0
    %v1833 = vadd.f32 %v275, %v1832
    %v1834 = vpop.f32.mrf.mxu0
    %v1835 = vadd.f32 %v275, %v1834
    %1836 = vmatmul.bf16.gmra.mxu0 %v1232
    %v1837 = vpop.f32.mrf.mxu0
    %v1838 = vadd.f32 %v275, %v1837
    %v1839 = vpop.f32.mrf.mxu0
    %v1840 = vadd.f32 %v275, %v1839
    %1841 = vmatmul.bf16.gmra.mxu0 %v1235
    %v1842 = vpop.f32.mrf.mxu0
    %v1843 = vadd.f32 %v275, %v1842
    %v1844 = vpop.f32.mrf.mxu0
    %v1845 = vadd.f32 %v275, %v1844
    %1846 = vmatmul.bf16.gmra.mxu0 %v1238
    %v1847 = vpop.f32.mrf.mxu0
    %v1848 = vadd.f32 %v275, %v1847
    %v1849 = vpop.f32.mrf.mxu0
    %v1850 = vadd.f32 %v275, %v1849
    %1851 = vmatmul.bf16.gmra.mxu0 %v1241
    %v1852 = vpop.f32.mrf.mxu0
    %v1853 = vadd.f32 %v275, %v1852
    %v1854 = vpop.f32.mrf.mxu0
    %v1855 = vadd.f32 %v275, %v1854
    %1856 = vmatmul.bf16.gmra.mxu0 %v1244
    %v1857 = vpop.f32.mrf.mxu0
    %v1858 = vadd.f32 %v275, %v1857
    %v1859 = vpop.f32.mrf.mxu0
    %v1860 = vadd.f32 %v275, %v1859
    %1861 = vmatmul.bf16.gmra.mxu0 %v1247
    %v1862 = vpop.f32.mrf.mxu0
    %v1863 = vadd.f32 %v275, %v1862
    %v1864 = vpop.f32.mrf.mxu0
    %v1865 = vadd.f32 %v275, %v1864
    %1866 = vmatmul.bf16.gmra.mxu0 %v1250
    %v1867 = vpop.f32.mrf.mxu0
    %v1868 = vadd.f32 %v275, %v1867
    %v1869 = vpop.f32.mrf.mxu0
    %v1870 = vadd.f32 %v275, %v1869
    %1871 = vmatmul.bf16.gmra.mxu0 %v1253
    %v1872 = vpop.f32.mrf.mxu0
    %v1873 = vadd.f32 %v275, %v1872
    %v1874 = vpop.f32.mrf.mxu0
    %v1875 = vadd.f32 %v275, %v1874
    %1876 = vmatmul.bf16.gmra.mxu0 %v1256
    %v1877 = vpop.f32.mrf.mxu0
    %v1878 = vadd.f32 %v275, %v1877
    %v1879 = vpop.f32.mrf.mxu0
    %v1880 = vadd.f32 %v275, %v1879
    %1881 = vmatmul.bf16.gmra.mxu0 %v1259
    %v1882 = vpop.f32.mrf.mxu0
    %v1883 = vadd.f32 %v275, %v1882
    %v1884 = vpop.f32.mrf.mxu0
    %v1885 = vadd.f32 %v275, %v1884
    %1886 = vmatmul.bf16.gmra.mxu0 %v1262
    %v1887 = vpop.f32.mrf.mxu0
    %v1888 = vadd.f32 %v275, %v1887
    %v1889 = vpop.f32.mrf.mxu0
    %v1890 = vadd.f32 %v275, %v1889
    %1891 = vmatmul.bf16.gmra.mxu0 %v1265
    %v1892 = vpop.f32.mrf.mxu0
    %v1893 = vadd.f32 %v275, %v1892
    %v1894 = vpop.f32.mrf.mxu0
    %v1895 = vadd.f32 %v275, %v1894
    %1896 = vmatmul.bf16.gmra.mxu0 %v1268
    %v1897 = vpop.f32.mrf.mxu0
    %v1898 = vadd.f32 %v275, %v1897
    %v1899 = vpop.f32.mrf.mxu0
    %v1900 = vadd.f32 %v275, %v1899
    %1901 = vmatmul.bf16.gmra.mxu0 %v1271
    %v1902 = vpop.f32.mrf.mxu0
    %v1903 = vadd.f32 %v275, %v1902
    %v1904 = vpop.f32.mrf.mxu0
    %v1905 = vadd.f32 %v275, %v1904
    %1906 = vmatmul.bf16.gmra.mxu0 %v1274
    %v1907 = vpop.f32.mrf.mxu0
    %v1908 = vadd.f32 %v275, %v1907
    %v1909 = vpop.f32.mrf.mxu0
    %v1910 = vadd.f32 %v275, %v1909
    %1911 = vmatmul.bf16.gmra.mxu0 %v1277
    %v1912 = vpop.f32.mrf.mxu0
    %v1913 = vadd.f32 %v275, %v1912
    %v1914 = vpop.f32.mrf.mxu0
    %v1915 = vadd.f32 %v275, %v1914
    %1916 = vmatmul.bf16.gmra.mxu0 %v1280
    %v1917 = vpop.f32.mrf.mxu0
    %v1918 = vadd.f32 %v275, %v1917
    %v1919 = vpop.f32.mrf.mxu0
    %v1920 = vadd.f32 %v275, %v1919
    %1921 = vmatmul.bf16.gmra.mxu0 %v1283
    %v1922 = vpop.f32.mrf.mxu0
    %v1923 = vadd.f32 %v275, %v1922
    %v1924 = vpop.f32.mrf.mxu0
    %v1925 = vadd.f32 %v275, %v1924
    %1926 = vmatmul.bf16.gmra.mxu0 %v1286
    %v1927 = vpop.f32.mrf.mxu0
    %v1928 = vadd.f32 %v275, %v1927
    %v1929 = vpop.f32.mrf.mxu0
    %v1930 = vadd.f32 %v275, %v1929
    %1931 = vmatmul.bf16.gmra.mxu0 %v1289
    %v1932 = vpop.f32.mrf.mxu0
    %v1933 = vadd.f32 %v275, %v1932
    %v1934 = vpop.f32.mrf.mxu0
    %v1935 = vadd.f32 %v275, %v1934
    %1936 = vmatmul.bf16.gmra.mxu0 %v1292
    %v1937 = vpop.f32.mrf.mxu0
    %v1938 = vadd.f32 %v275, %v1937
    %v1939 = vpop.f32.mrf.mxu0
    %v1940 = vadd.f32 %v275, %v1939
    %1941 = vmatmul.bf16.gmra.mxu0 %v1295
    %v1942 = vpop.f32.mrf.mxu0
    %v1943 = vadd.f32 %v275, %v1942
    %v1944 = vpop.f32.mrf.mxu0
    %v1945 = vadd.f32 %v275, %v1944
    %1946 = vmatmul.bf16.gmra.mxu0 %v1298
    %v1947 = vpop.f32.mrf.mxu0
    %v1948 = vadd.f32 %v275, %v1947
    %v1949 = vpop.f32.mrf.mxu0
    %v1950 = vadd.f32 %v275, %v1949
    %1951 = vmatmul.bf16.gmra.mxu0 %v1301
    %v1952 = vpop.f32.mrf.mxu0
    %v1953 = vadd.f32 %v275, %v1952
    %v1954 = vpop.f32.mrf.mxu0
    %v1955 = vadd.f32 %v275, %v1954
    %1956 = vmatmul.bf16.gmra.mxu0 %v1304
    %v1957 = vpop.f32.mrf.mxu0
    %v1958 = vadd.f32 %v275, %v1957
    %v1959 = vpop.f32.mrf.mxu0
    %v1960 = vadd.f32 %v275, %v1959
    %1961 = vdwg.mxu0
    %v1962 = vadd.f32 %v1323, %v1325
    %v1963 = vadd.f32 %v1962, %v1328
    %v1964 = vadd.f32 %v1963, %v1330
    %v1965 = vadd.f32 %v1964, %v1333
    %v1966 = vadd.f32 %v1965, %v1335
    %v1967 = vadd.f32 %v1966, %v1338
    %v1968 = vadd.f32 %v1967, %v1340
    %v1969 = vadd.f32 %v1968, %v1343
    %v1970 = vadd.f32 %v1969, %v1345
    %v1971 = vadd.f32 %v1970, %v1348
    %v1972 = vadd.f32 %v1971, %v1350
    %v1973 = vadd.f32 %v1972, %v1353
    %v1974 = vadd.f32 %v1973, %v1355
    %v1975 = vadd.f32 %v1974, %v1358
    %v1976 = vadd.f32 %v1975, %v1360
    %v1977 = vadd.f32 %v1976, %v1363
    %v1978 = vadd.f32 %v1977, %v1365
    %v1979 = vadd.f32 %v1978, %v1368
    %v1980 = vadd.f32 %v1979, %v1370
    %v1981 = vadd.f32 %v1980, %v1373
    %v1982 = vadd.f32 %v1981, %v1375
    %v1983 = vadd.f32 %v1982, %v1378
    %v1984 = vadd.f32 %v1983, %v1380
    %v1985 = vadd.f32 %v1984, %v1383
    %v1986 = vadd.f32 %v1985, %v1385
    %v1987 = vadd.f32 %v1986, %v1388
    %v1988 = vadd.f32 %v1987, %v1390
    %v1989 = vadd.f32 %v1988, %v1393
    %v1990 = vadd.f32 %v1989, %v1395
    %v1991 = vadd.f32 %v1990, %v1398
    %v1992 = vadd.f32 %v1991, %v1400
    %v1993 = vadd.f32 %v1992, %v1403
    %v1994 = vadd.f32 %v1993, %v1405
    %v1995 = vadd.f32 %v1994, %v1408
    %v1996 = vadd.f32 %v1995, %v1410
    %v1997 = vadd.f32 %v1996, %v1413
    %v1998 = vadd.f32 %v1997, %v1415
    %v1999 = vadd.f32 %v1998, %v1418
    %v2000 = vadd.f32 %v1999, %v1420
    %v2001 = vadd.f32 %v2000, %v1423
    %v2002 = vadd.f32 %v2001, %v1425
    %v2003 = vadd.f32 %v2002, %v1428
    %v2004 = vadd.f32 %v2003, %v1430
    %v2005 = vadd.f32 %v2004, %v1433
    %v2006 = vadd.f32 %v2005, %v1435
    %v2007 = vadd.f32 %v2006, %v1438
    %v2008 = vadd.f32 %v2007, %v1440
    %v2009 = vadd.f32 %v2008, %v1443
    %v2010 = vadd.f32 %v2009, %v1445
    %v2011 = vadd.f32 %v2010, %v1448
    %v2012 = vadd.f32 %v2011, %v1450
    %v2013 = vadd.f32 %v2012, %v1453
    %v2014 = vadd.f32 %v2013, %v1455
    %v2015 = vadd.f32 %v2014, %v1458
    %v2016 = vadd.f32 %v2015, %v1460
    %v2017 = vadd.f32 %v2016, %v1463
    %v2018 = vadd.f32 %v2017, %v1465
    %v2019 = vadd.f32 %v2018, %v1468
    %v2020 = vadd.f32 %v2019, %v1470
    %v2021 = vadd.f32 %v2020, %v1473
    %v2022 = vadd.f32 %v2021, %v1475
    %v2023 = vadd.f32 %v2022, %v1478
    %v2024 = vadd.f32 %v2023, %v1480
    %v2025 = vadd.f32 %v2024, %v1483
    %v2026 = vadd.f32 %v2025, %v1485
    %v2027 = vadd.f32 %v2026, %v1488
    %v2028 = vadd.f32 %v2027, %v1490
    %v2029 = vadd.f32 %v2028, %v1493
    %v2030 = vadd.f32 %v2029, %v1495
    %v2031 = vadd.f32 %v2030, %v1498
    %v2032 = vadd.f32 %v2031, %v1500
    %v2033 = vadd.f32 %v2032, %v1503
    %v2034 = vadd.f32 %v2033, %v1505
    %v2035 = vadd.f32 %v2034, %v1508
    %v2036 = vadd.f32 %v2035, %v1510
    %v2037 = vadd.f32 %v2036, %v1513
    %v2038 = vadd.f32 %v2037, %v1515
    %v2039 = vadd.f32 %v2038, %v1518
    %v2040 = vadd.f32 %v2039, %v1520
    %v2041 = vadd.f32 %v2040, %v1523
    %v2042 = vadd.f32 %v2041, %v1525
    %v2043 = vadd.f32 %v2042, %v1528
    %v2044 = vadd.f32 %v2043, %v1530
    %v2045 = vadd.f32 %v2044, %v1533
    %v2046 = vadd.f32 %v2045, %v1535
    %v2047 = vadd.f32 %v2046, %v1538
    %v2048 = vadd.f32 %v2047, %v1540
    %v2049 = vadd.f32 %v2048, %v1543
    %v2050 = vadd.f32 %v2049, %v1545
    %v2051 = vadd.f32 %v2050, %v1548
    %v2052 = vadd.f32 %v2051, %v1550
    %v2053 = vadd.f32 %v2052, %v1553
    %v2054 = vadd.f32 %v2053, %v1555
    %v2055 = vadd.f32 %v2054, %v1558
    %v2056 = vadd.f32 %v2055, %v1560
    %v2057 = vadd.f32 %v2056, %v1563
    %v2058 = vadd.f32 %v2057, %v1565
    %v2059 = vadd.f32 %v2058, %v1568
    %v2060 = vadd.f32 %v2059, %v1570
    %v2061 = vadd.f32 %v2060, %v1573
    %v2062 = vadd.f32 %v2061, %v1575
    %v2063 = vadd.f32 %v2062, %v1578
    %v2064 = vadd.f32 %v2063, %v1580
    %v2065 = vadd.f32 %v2064, %v1583
    %v2066 = vadd.f32 %v2065, %v1585
    %v2067 = vadd.f32 %v2066, %v1588
    %v2068 = vadd.f32 %v2067, %v1590
    %v2069 = vadd.f32 %v2068, %v1593
    %v2070 = vadd.f32 %v2069, %v1595
    %v2071 = vadd.f32 %v2070, %v1598
    %v2072 = vadd.f32 %v2071, %v1600
    %v2073 = vadd.f32 %v2072, %v1603
    %v2074 = vadd.f32 %v2073, %v1605
    %v2075 = vadd.f32 %v2074, %v1608
    %v2076 = vadd.f32 %v2075, %v1610
    %v2077 = vadd.f32 %v2076, %v1613
    %v2078 = vadd.f32 %v2077, %v1615
    %v2079 = vadd.f32 %v2078, %v1618
    %v2080 = vadd.f32 %v2079, %v1620
    %v2081 = vadd.f32 %v2080, %v1623
    %v2082 = vadd.f32 %v2081, %v1625
    %v2083 = vadd.f32 %v2082, %v1628
    %v2084 = vadd.f32 %v2083, %v1630
    %v2085 = vadd.f32 %v2084, %v1633
    %v2086 = vadd.f32 %v2085, %v1635
    %v2087 = vadd.f32 %v2086, %v1638
    %v2088 = vadd.f32 %v2087, %v1640
    %v2089 = vadd.f32 %v2088, %v1643
    %v2090 = vadd.f32 %v2089, %v1645
    %v2091 = vadd.f32 %v2090, %v1648
    %v2092 = vadd.f32 %v2091, %v1650
    %v2093 = vadd.f32 %v2092, %v1653
    %v2094 = vadd.f32 %v2093, %v1655
    %v2095 = vadd.f32 %v2094, %v1658
    %v2096 = vadd.f32 %v2095, %v1660
    %v2097 = vadd.f32 %v2096, %v1663
    %v2098 = vadd.f32 %v2097, %v1665
    %v2099 = vadd.f32 %v2098, %v1668
    %v2100 = vadd.f32 %v2099, %v1670
    %v2101 = vadd.f32 %v2100, %v1673
    %v2102 = vadd.f32 %v2101, %v1675
    %v2103 = vadd.f32 %v2102, %v1678
    %v2104 = vadd.f32 %v2103, %v1680
    %v2105 = vadd.f32 %v2104, %v1683
    %v2106 = vadd.f32 %v2105, %v1685
    %v2107 = vadd.f32 %v2106, %v1688
    %v2108 = vadd.f32 %v2107, %v1690
    %v2109 = vadd.f32 %v2108, %v1693
    %v2110 = vadd.f32 %v2109, %v1695
    %v2111 = vadd.f32 %v2110, %v1698
    %v2112 = vadd.f32 %v2111, %v1700
    %v2113 = vadd.f32 %v2112, %v1703
    %v2114 = vadd.f32 %v2113, %v1705
    %v2115 = vadd.f32 %v2114, %v1708
    %v2116 = vadd.f32 %v2115, %v1710
    %v2117 = vadd.f32 %v2116, %v1713
    %v2118 = vadd.f32 %v2117, %v1715
    %v2119 = vadd.f32 %v2118, %v1718
    %v2120 = vadd.f32 %v2119, %v1720
    %v2121 = vadd.f32 %v2120, %v1723
    %v2122 = vadd.f32 %v2121, %v1725
    %v2123 = vadd.f32 %v2122, %v1728
    %v2124 = vadd.f32 %v2123, %v1730
    %v2125 = vadd.f32 %v2124, %v1733
    %v2126 = vadd.f32 %v2125, %v1735
    %v2127 = vadd.f32 %v2126, %v1738
    %v2128 = vadd.f32 %v2127, %v1740
    %v2129 = vadd.f32 %v2128, %v1743
    %v2130 = vadd.f32 %v2129, %v1745
    %v2131 = vadd.f32 %v2130, %v1748
    %v2132 = vadd.f32 %v2131, %v1750
    %v2133 = vadd.f32 %v2132, %v1753
    %v2134 = vadd.f32 %v2133, %v1755
    %v2135 = vadd.f32 %v2134, %v1758
    %v2136 = vadd.f32 %v2135, %v1760
    %v2137 = vadd.f32 %v2136, %v1763
    %v2138 = vadd.f32 %v2137, %v1765
    %v2139 = vadd.f32 %v2138, %v1768
    %v2140 = vadd.f32 %v2139, %v1770
    %v2141 = vadd.f32 %v2140, %v1773
    %v2142 = vadd.f32 %v2141, %v1775
    %v2143 = vadd.f32 %v2142, %v1778
    %v2144 = vadd.f32 %v2143, %v1780
    %v2145 = vadd.f32 %v2144, %v1783
    %v2146 = vadd.f32 %v2145, %v1785
    %v2147 = vadd.f32 %v2146, %v1788
    %v2148 = vadd.f32 %v2147, %v1790
    %v2149 = vadd.f32 %v2148, %v1793
    %v2150 = vadd.f32 %v2149, %v1795
    %v2151 = vadd.f32 %v2150, %v1798
    %v2152 = vadd.f32 %v2151, %v1800
    %v2153 = vadd.f32 %v2152, %v1803
    %v2154 = vadd.f32 %v2153, %v1805
    %v2155 = vadd.f32 %v2154, %v1808
    %v2156 = vadd.f32 %v2155, %v1810
    %v2157 = vadd.f32 %v2156, %v1813
    %v2158 = vadd.f32 %v2157, %v1815
    %v2159 = vadd.f32 %v2158, %v1818
    %v2160 = vadd.f32 %v2159, %v1820
    %v2161 = vadd.f32 %v2160, %v1823
    %v2162 = vadd.f32 %v2161, %v1825
    %v2163 = vadd.f32 %v2162, %v1828
    %v2164 = vadd.f32 %v2163, %v1830
    %v2165 = vadd.f32 %v2164, %v1833
    %v2166 = vadd.f32 %v2165, %v1835
    %v2167 = vadd.f32 %v2166, %v1838
    %v2168 = vadd.f32 %v2167, %v1840
    %v2169 = vadd.f32 %v2168, %v1843
    %v2170 = vadd.f32 %v2169, %v1845
    %v2171 = vadd.f32 %v2170, %v1848
    %v2172 = vadd.f32 %v2171, %v1850
    %v2173 = vadd.f32 %v2172, %v1853
    %v2174 = vadd.f32 %v2173, %v1855
    %v2175 = vadd.f32 %v2174, %v1858
    %v2176 = vadd.f32 %v2175, %v1860
    %v2177 = vadd.f32 %v2176, %v1863
    %v2178 = vadd.f32 %v2177, %v1865
    %v2179 = vadd.f32 %v2178, %v1868
    %v2180 = vadd.f32 %v2179, %v1870
    %v2181 = vadd.f32 %v2180, %v1873
    %v2182 = vadd.f32 %v2181, %v1875
    %v2183 = vadd.f32 %v2182, %v1878
    %v2184 = vadd.f32 %v2183, %v1880
    %v2185 = vadd.f32 %v2184, %v1883
    %v2186 = vadd.f32 %v2185, %v1885
    %v2187 = vadd.f32 %v2186, %v1888
    %v2188 = vadd.f32 %v2187, %v1890
    %v2189 = vadd.f32 %v2188, %v1893
    %v2190 = vadd.f32 %v2189, %v1895
    %v2191 = vadd.f32 %v2190, %v1898
    %v2192 = vadd.f32 %v2191, %v1900
    %v2193 = vadd.f32 %v2192, %v1903
    %v2194 = vadd.f32 %v2193, %v1905
    %v2195 = vadd.f32 %v2194, %v1908
    %v2196 = vadd.f32 %v2195, %v1910
    %v2197 = vadd.f32 %v2196, %v1913
    %v2198 = vadd.f32 %v2197, %v1915
    %v2199 = vadd.f32 %v2198, %v1918
    %v2200 = vadd.f32 %v2199, %v1920
    %v2201 = vadd.f32 %v2200, %v1923
    %v2202 = vadd.f32 %v2201, %v1925
    %v2203 = vadd.f32 %v2202, %v1928
    %v2204 = vadd.f32 %v2203, %v1930
    %v2205 = vadd.f32 %v2204, %v1933
    %v2206 = vadd.f32 %v2205, %v1935
    %v2207 = vadd.f32 %v2206, %v1938
    %v2208 = vadd.f32 %v2207, %v1940
    %v2209 = vadd.f32 %v2208, %v1943
    %v2210 = vadd.f32 %v2209, %v1945
    %v2211 = vadd.f32 %v2210, %v1948
    %v2212 = vadd.f32 %v2211, %v1950
    %v2213 = vadd.f32 %v2212, %v1953
    %v2214 = vadd.f32 %v2213, %v1955
    %v2215 = vadd.f32 %v2214, %v1958
    %v2216 = vadd.f32 %v2215, %v1960
    %v2217 = vrot.slane %v2216, 4
    %v2218 = vadd.f32 %v2216, %v2217
    %v2219 = vrot.slane %v2218, 2
    %v2220 = vadd.f32 %v2218, %v2219
    %v2221 = vrot.slane %v2220, 1
    %v2222 = vadd.f32 %v2220, %v2221
    %v2223 = vrcp.pop 2048.0
    %v2224 = vmul.f32 2048.0, %v2223
    %v2225 = vsub.f32 1.0, %v2224
    %v2226 = vmul.f32 %v2223, %v2225
    %v2227 = vadd.f32 %v2223, %v2226
    %vm2228 = vweird.f32 %v2223
    %v2229 = vsel %vm2228, %v2223, %v2227
    %v2230 = vmul.f32 %v2222, %v2229
    %v2231 = vmul.f32 %v1323, %v1323
    %v2232 = vmul.f32 %v1325, %v1325
    %v2233 = vmul.f32 %v1328, %v1328
    %v2234 = vmul.f32 %v1330, %v1330
    %v2235 = vmul.f32 %v1333, %v1333
    %v2236 = vmul.f32 %v1335, %v1335
    %v2237 = vmul.f32 %v1338, %v1338
    %v2238 = vmul.f32 %v1340, %v1340
    %v2239 = vmul.f32 %v1343, %v1343
    %v2240 = vmul.f32 %v1345, %v1345
    %v2241 = vmul.f32 %v1348, %v1348
    %v2242 = vmul.f32 %v1350, %v1350
    %v2243 = vmul.f32 %v1353, %v1353
    %v2244 = vmul.f32 %v1355, %v1355
    %v2245 = vmul.f32 %v1358, %v1358
    %v2246 = vmul.f32 %v1360, %v1360
    %v2247 = vmul.f32 %v1363, %v1363
    %v2248 = vmul.f32 %v1365, %v1365
    %v2249 = vmul.f32 %v1368, %v1368
    %v2250 = vmul.f32 %v1370, %v1370
    %v2251 = vmul.f32 %v1373, %v1373
    %v2252 = vmul.f32 %v1375, %v1375
    %v2253 = vmul.f32 %v1378, %v1378
    %v2254 = vmul.f32 %v1380, %v1380
    %v2255 = vmul.f32 %v1383, %v1383
    %v2256 = vmul.f32 %v1385, %v1385
    %v2257 = vmul.f32 %v1388, %v1388
    %v2258 = vmul.f32 %v1390, %v1390
    %v2259 = vmul.f32 %v1393, %v1393
    %v2260 = vmul.f32 %v1395, %v1395
    %v2261 = vmul.f32 %v1398, %v1398
    %v2262 = vmul.f32 %v1400, %v1400
    %v2263 = vmul.f32 %v1403, %v1403
    %v2264 = vmul.f32 %v1405, %v1405
    %v2265 = vmul.f32 %v1408, %v1408
    %v2266 = vmul.f32 %v1410, %v1410
    %v2267 = vmul.f32 %v1413, %v1413
    %v2268 = vmul.f32 %v1415, %v1415
    %v2269 = vmul.f32 %v1418, %v1418
    %v2270 = vmul.f32 %v1420, %v1420
    %v2271 = vmul.f32 %v1423, %v1423
    %v2272 = vmul.f32 %v1425, %v1425
    %v2273 = vmul.f32 %v1428, %v1428
    %v2274 = vmul.f32 %v1430, %v1430
    %v2275 = vmul.f32 %v1433, %v1433
    %v2276 = vmul.f32 %v1435, %v1435
    %v2277 = vmul.f32 %v1438, %v1438
    %v2278 = vmul.f32 %v1440, %v1440
    %v2279 = vmul.f32 %v1443, %v1443
    %v2280 = vmul.f32 %v1445, %v1445
    %v2281 = vmul.f32 %v1448, %v1448
    %v2282 = vmul.f32 %v1450, %v1450
    %v2283 = vmul.f32 %v1453, %v1453
    %v2284 = vmul.f32 %v1455, %v1455
    %v2285 = vmul.f32 %v1458, %v1458
    %v2286 = vmul.f32 %v1460, %v1460
    %v2287 = vmul.f32 %v1463, %v1463
    %v2288 = vmul.f32 %v1465, %v1465
    %v2289 = vmul.f32 %v1468, %v1468
    %v2290 = vmul.f32 %v1470, %v1470
    %v2291 = vmul.f32 %v1473, %v1473
    %v2292 = vmul.f32 %v1475, %v1475
    %v2293 = vmul.f32 %v1478, %v1478
    %v2294 = vmul.f32 %v1480, %v1480
    %v2295 = vmul.f32 %v1483, %v1483
    %v2296 = vmul.f32 %v1485, %v1485
    %v2297 = vmul.f32 %v1488, %v1488
    %v2298 = vmul.f32 %v1490, %v1490
    %v2299 = vmul.f32 %v1493, %v1493
    %v2300 = vmul.f32 %v1495, %v1495
    %v2301 = vmul.f32 %v1498, %v1498
    %v2302 = vmul.f32 %v1500, %v1500
    %v2303 = vmul.f32 %v1503, %v1503
    %v2304 = vmul.f32 %v1505, %v1505
    %v2305 = vmul.f32 %v1508, %v1508
    %v2306 = vmul.f32 %v1510, %v1510
    %v2307 = vmul.f32 %v1513, %v1513
    %v2308 = vmul.f32 %v1515, %v1515
    %v2309 = vmul.f32 %v1518, %v1518
    %v2310 = vmul.f32 %v1520, %v1520
    %v2311 = vmul.f32 %v1523, %v1523
    %v2312 = vmul.f32 %v1525, %v1525
    %v2313 = vmul.f32 %v1528, %v1528
    %v2314 = vmul.f32 %v1530, %v1530
    %v2315 = vmul.f32 %v1533, %v1533
    %v2316 = vmul.f32 %v1535, %v1535
    %v2317 = vmul.f32 %v1538, %v1538
    %v2318 = vmul.f32 %v1540, %v1540
    %v2319 = vmul.f32 %v1543, %v1543
    %v2320 = vmul.f32 %v1545, %v1545
    %v2321 = vmul.f32 %v1548, %v1548
    %v2322 = vmul.f32 %v1550, %v1550
    %v2323 = vmul.f32 %v1553, %v1553
    %v2324 = vmul.f32 %v1555, %v1555
    %v2325 = vmul.f32 %v1558, %v1558
    %v2326 = vmul.f32 %v1560, %v1560
    %v2327 = vmul.f32 %v1563, %v1563
    %v2328 = vmul.f32 %v1565, %v1565
    %v2329 = vmul.f32 %v1568, %v1568
    %v2330 = vmul.f32 %v1570, %v1570
    %v2331 = vmul.f32 %v1573, %v1573
    %v2332 = vmul.f32 %v1575, %v1575
    %v2333 = vmul.f32 %v1578, %v1578
    %v2334 = vmul.f32 %v1580, %v1580
    %v2335 = vmul.f32 %v1583, %v1583
    %v2336 = vmul.f32 %v1585, %v1585
    %v2337 = vmul.f32 %v1588, %v1588
    %v2338 = vmul.f32 %v1590, %v1590
    %v2339 = vmul.f32 %v1593, %v1593
    %v2340 = vmul.f32 %v1595, %v1595
    %v2341 = vmul.f32 %v1598, %v1598
    %v2342 = vmul.f32 %v1600, %v1600
    %v2343 = vmul.f32 %v1603, %v1603
    %v2344 = vmul.f32 %v1605, %v1605
    %v2345 = vmul.f32 %v1608, %v1608
    %v2346 = vmul.f32 %v1610, %v1610
    %v2347 = vmul.f32 %v1613, %v1613
    %v2348 = vmul.f32 %v1615, %v1615
    %v2349 = vmul.f32 %v1618, %v1618
    %v2350 = vmul.f32 %v1620, %v1620
    %v2351 = vmul.f32 %v1623, %v1623
    %v2352 = vmul.f32 %v1625, %v1625
    %v2353 = vmul.f32 %v1628, %v1628
    %v2354 = vmul.f32 %v1630, %v1630
    %v2355 = vmul.f32 %v1633, %v1633
    %v2356 = vmul.f32 %v1635, %v1635
    %v2357 = vmul.f32 %v1638, %v1638
    %v2358 = vmul.f32 %v1640, %v1640
    %v2359 = vmul.f32 %v1643, %v1643
    %v2360 = vmul.f32 %v1645, %v1645
    %v2361 = vmul.f32 %v1648, %v1648
    %v2362 = vmul.f32 %v1650, %v1650
    %v2363 = vmul.f32 %v1653, %v1653
    %v2364 = vmul.f32 %v1655, %v1655
    %v2365 = vmul.f32 %v1658, %v1658
    %v2366 = vmul.f32 %v1660, %v1660
    %v2367 = vmul.f32 %v1663, %v1663
    %v2368 = vmul.f32 %v1665, %v1665
    %v2369 = vmul.f32 %v1668, %v1668
    %v2370 = vmul.f32 %v1670, %v1670
    %v2371 = vmul.f32 %v1673, %v1673
    %v2372 = vmul.f32 %v1675, %v1675
    %v2373 = vmul.f32 %v1678, %v1678
    %v2374 = vmul.f32 %v1680, %v1680
    %v2375 = vmul.f32 %v1683, %v1683
    %v2376 = vmul.f32 %v1685, %v1685
    %v2377 = vmul.f32 %v1688, %v1688
    %v2378 = vmul.f32 %v1690, %v1690
    %v2379 = vmul.f32 %v1693, %v1693
    %v2380 = vmul.f32 %v1695, %v1695
    %v2381 = vmul.f32 %v1698, %v1698
    %v2382 = vmul.f32 %v1700, %v1700
    %v2383 = vmul.f32 %v1703, %v1703
    %v2384 = vmul.f32 %v1705, %v1705
    %v2385 = vmul.f32 %v1708, %v1708
    %v2386 = vmul.f32 %v1710, %v1710
    %v2387 = vmul.f32 %v1713, %v1713
    %v2388 = vmul.f32 %v1715, %v1715
    %v2389 = vmul.f32 %v1718, %v1718
    %v2390 = vmul.f32 %v1720, %v1720
    %v2391 = vmul.f32 %v1723, %v1723
    %v2392 = vmul.f32 %v1725, %v1725
    %v2393 = vmul.f32 %v1728, %v1728
    %v2394 = vmul.f32 %v1730, %v1730
    %v2395 = vmul.f32 %v1733, %v1733
    %v2396 = vmul.f32 %v1735, %v1735
    %v2397 = vmul.f32 %v1738, %v1738
    %v2398 = vmul.f32 %v1740, %v1740
    %v2399 = vmul.f32 %v1743, %v1743
    %v2400 = vmul.f32 %v1745, %v1745
    %v2401 = vmul.f32 %v1748, %v1748
    %v2402 = vmul.f32 %v1750, %v1750
    %v2403 = vmul.f32 %v1753, %v1753
    %v2404 = vmul.f32 %v1755, %v1755
    %v2405 = vmul.f32 %v1758, %v1758
    %v2406 = vmul.f32 %v1760, %v1760
    %v2407 = vmul.f32 %v1763, %v1763
    %v2408 = vmul.f32 %v1765, %v1765
    %v2409 = vmul.f32 %v1768, %v1768
    %v2410 = vmul.f32 %v1770, %v1770
    %v2411 = vmul.f32 %v1773, %v1773
    %v2412 = vmul.f32 %v1775, %v1775
    %v2413 = vmul.f32 %v1778, %v1778
    %v2414 = vmul.f32 %v1780, %v1780
    %v2415 = vmul.f32 %v1783, %v1783
    %v2416 = vmul.f32 %v1785, %v1785
    %v2417 = vmul.f32 %v1788, %v1788
    %v2418 = vmul.f32 %v1790, %v1790
    %v2419 = vmul.f32 %v1793, %v1793
    %v2420 = vmul.f32 %v1795, %v1795
    %v2421 = vmul.f32 %v1798, %v1798
    %v2422 = vmul.f32 %v1800, %v1800
    %v2423 = vmul.f32 %v1803, %v1803
    %v2424 = vmul.f32 %v1805, %v1805
    %v2425 = vmul.f32 %v1808, %v1808
    %v2426 = vmul.f32 %v1810, %v1810
    %v2427 = vmul.f32 %v1813, %v1813
    %v2428 = vmul.f32 %v1815, %v1815
    %v2429 = vmul.f32 %v1818, %v1818
    %v2430 = vmul.f32 %v1820, %v1820
    %v2431 = vmul.f32 %v1823, %v1823
    %v2432 = vmul.f32 %v1825, %v1825
    %v2433 = vmul.f32 %v1828, %v1828
    %v2434 = vmul.f32 %v1830, %v1830
    %v2435 = vmul.f32 %v1833, %v1833
    %v2436 = vmul.f32 %v1835, %v1835
    %v2437 = vmul.f32 %v1838, %v1838
    %v2438 = vmul.f32 %v1840, %v1840
    %v2439 = vmul.f32 %v1843, %v1843
    %v2440 = vmul.f32 %v1845, %v1845
    %v2441 = vmul.f32 %v1848, %v1848
    %v2442 = vmul.f32 %v1850, %v1850
    %v2443 = vmul.f32 %v1853, %v1853
    %v2444 = vmul.f32 %v1855, %v1855
    %v2445 = vmul.f32 %v1858, %v1858
    %v2446 = vmul.f32 %v1860, %v1860
    %v2447 = vmul.f32 %v1863, %v1863
    %v2448 = vmul.f32 %v1865, %v1865
    %v2449 = vmul.f32 %v1868, %v1868
    %v2450 = vmul.f32 %v1870, %v1870
    %v2451 = vmul.f32 %v1873, %v1873
    %v2452 = vmul.f32 %v1875, %v1875
    %v2453 = vmul.f32 %v1878, %v1878
    %v2454 = vmul.f32 %v1880, %v1880
    %v2455 = vmul.f32 %v1883, %v1883
    %v2456 = vmul.f32 %v1885, %v1885
    %v2457 = vmul.f32 %v1888, %v1888
    %v2458 = vmul.f32 %v1890, %v1890
    %v2459 = vmul.f32 %v1893, %v1893
    %v2460 = vmul.f32 %v1895, %v1895
    %v2461 = vmul.f32 %v1898, %v1898
    %v2462 = vmul.f32 %v1900, %v1900
    %v2463 = vmul.f32 %v1903, %v1903
    %v2464 = vmul.f32 %v1905, %v1905
    %v2465 = vmul.f32 %v1908, %v1908
    %v2466 = vmul.f32 %v1910, %v1910
    %v2467 = vmul.f32 %v1913, %v1913
    %v2468 = vmul.f32 %v1915, %v1915
    %v2469 = vmul.f32 %v1918, %v1918
    %v2470 = vmul.f32 %v1920, %v1920
    %v2471 = vmul.f32 %v1923, %v1923
    %v2472 = vmul.f32 %v1925, %v1925
    %v2473 = vmul.f32 %v1928, %v1928
    %v2474 = vmul.f32 %v1930, %v1930
    %v2475 = vmul.f32 %v1933, %v1933
    %v2476 = vmul.f32 %v1935, %v1935
    %v2477 = vmul.f32 %v1938, %v1938
    %v2478 = vmul.f32 %v1940, %v1940
    %v2479 = vmul.f32 %v1943, %v1943
    %v2480 = vmul.f32 %v1945, %v1945
    %v2481 = vmul.f32 %v1948, %v1948
    %v2482 = vmul.f32 %v1950, %v1950
    %v2483 = vmul.f32 %v1953, %v1953
    %v2484 = vmul.f32 %v1955, %v1955
    %v2485 = vmul.f32 %v1958, %v1958
    %v2486 = vmul.f32 %v1960, %v1960
    %v2487 = vadd.f32 %v2231, %v2232
    %v2488 = vadd.f32 %v2487, %v2233
    %v2489 = vadd.f32 %v2488, %v2234
    %v2490 = vadd.f32 %v2489, %v2235
    %v2491 = vadd.f32 %v2490, %v2236
    %v2492 = vadd.f32 %v2491, %v2237
    %v2493 = vadd.f32 %v2492, %v2238
    %v2494 = vadd.f32 %v2493, %v2239
    %v2495 = vadd.f32 %v2494, %v2240
    %v2496 = vadd.f32 %v2495, %v2241
    %v2497 = vadd.f32 %v2496, %v2242
    %v2498 = vadd.f32 %v2497, %v2243
    %v2499 = vadd.f32 %v2498, %v2244
    %v2500 = vadd.f32 %v2499, %v2245
    %v2501 = vadd.f32 %v2500, %v2246
    %v2502 = vadd.f32 %v2501, %v2247
    %v2503 = vadd.f32 %v2502, %v2248
    %v2504 = vadd.f32 %v2503, %v2249
    %v2505 = vadd.f32 %v2504, %v2250
    %v2506 = vadd.f32 %v2505, %v2251
    %v2507 = vadd.f32 %v2506, %v2252
    %v2508 = vadd.f32 %v2507, %v2253
    %v2509 = vadd.f32 %v2508, %v2254
    %v2510 = vadd.f32 %v2509, %v2255
    %v2511 = vadd.f32 %v2510, %v2256
    %v2512 = vadd.f32 %v2511, %v2257
    %v2513 = vadd.f32 %v2512, %v2258
    %v2514 = vadd.f32 %v2513, %v2259
    %v2515 = vadd.f32 %v2514, %v2260
    %v2516 = vadd.f32 %v2515, %v2261
    %v2517 = vadd.f32 %v2516, %v2262
    %v2518 = vadd.f32 %v2517, %v2263
    %v2519 = vadd.f32 %v2518, %v2264
    %v2520 = vadd.f32 %v2519, %v2265
    %v2521 = vadd.f32 %v2520, %v2266
    %v2522 = vadd.f32 %v2521, %v2267
    %v2523 = vadd.f32 %v2522, %v2268
    %v2524 = vadd.f32 %v2523, %v2269
    %v2525 = vadd.f32 %v2524, %v2270
    %v2526 = vadd.f32 %v2525, %v2271
    %v2527 = vadd.f32 %v2526, %v2272
    %v2528 = vadd.f32 %v2527, %v2273
    %v2529 = vadd.f32 %v2528, %v2274
    %v2530 = vadd.f32 %v2529, %v2275
    %v2531 = vadd.f32 %v2530, %v2276
    %v2532 = vadd.f32 %v2531, %v2277
    %v2533 = vadd.f32 %v2532, %v2278
    %v2534 = vadd.f32 %v2533, %v2279
    %v2535 = vadd.f32 %v2534, %v2280
    %v2536 = vadd.f32 %v2535, %v2281
    %v2537 = vadd.f32 %v2536, %v2282
    %v2538 = vadd.f32 %v2537, %v2283
    %v2539 = vadd.f32 %v2538, %v2284
    %v2540 = vadd.f32 %v2539, %v2285
    %v2541 = vadd.f32 %v2540, %v2286
    %v2542 = vadd.f32 %v2541, %v2287
    %v2543 = vadd.f32 %v2542, %v2288
    %v2544 = vadd.f32 %v2543, %v2289
    %v2545 = vadd.f32 %v2544, %v2290
    %v2546 = vadd.f32 %v2545, %v2291
    %v2547 = vadd.f32 %v2546, %v2292
    %v2548 = vadd.f32 %v2547, %v2293
    %v2549 = vadd.f32 %v2548, %v2294
    %v2550 = vadd.f32 %v2549, %v2295
    %v2551 = vadd.f32 %v2550, %v2296
    %v2552 = vadd.f32 %v2551, %v2297
    %v2553 = vadd.f32 %v2552, %v2298
    %v2554 = vadd.f32 %v2553, %v2299
    %v2555 = vadd.f32 %v2554, %v2300
    %v2556 = vadd.f32 %v2555, %v2301
    %v2557 = vadd.f32 %v2556, %v2302
    %v2558 = vadd.f32 %v2557, %v2303
    %v2559 = vadd.f32 %v2558, %v2304
    %v2560 = vadd.f32 %v2559, %v2305
    %v2561 = vadd.f32 %v2560, %v2306
    %v2562 = vadd.f32 %v2561, %v2307
    %v2563 = vadd.f32 %v2562, %v2308
    %v2564 = vadd.f32 %v2563, %v2309
    %v2565 = vadd.f32 %v2564, %v2310
    %v2566 = vadd.f32 %v2565, %v2311
    %v2567 = vadd.f32 %v2566, %v2312
    %v2568 = vadd.f32 %v2567, %v2313
    %v2569 = vadd.f32 %v2568, %v2314
    %v2570 = vadd.f32 %v2569, %v2315
    %v2571 = vadd.f32 %v2570, %v2316
    %v2572 = vadd.f32 %v2571, %v2317
    %v2573 = vadd.f32 %v2572, %v2318
    %v2574 = vadd.f32 %v2573, %v2319
    %v2575 = vadd.f32 %v2574, %v2320
    %v2576 = vadd.f32 %v2575, %v2321
    %v2577 = vadd.f32 %v2576, %v2322
    %v2578 = vadd.f32 %v2577, %v2323
    %v2579 = vadd.f32 %v2578, %v2324
    %v2580 = vadd.f32 %v2579, %v2325
    %v2581 = vadd.f32 %v2580, %v2326
    %v2582 = vadd.f32 %v2581, %v2327
    %v2583 = vadd.f32 %v2582, %v2328
    %v2584 = vadd.f32 %v2583, %v2329
    %v2585 = vadd.f32 %v2584, %v2330
    %v2586 = vadd.f32 %v2585, %v2331
    %v2587 = vadd.f32 %v2586, %v2332
    %v2588 = vadd.f32 %v2587, %v2333
    %v2589 = vadd.f32 %v2588, %v2334
    %v2590 = vadd.f32 %v2589, %v2335
    %v2591 = vadd.f32 %v2590, %v2336
    %v2592 = vadd.f32 %v2591, %v2337
    %v2593 = vadd.f32 %v2592, %v2338
    %v2594 = vadd.f32 %v2593, %v2339
    %v2595 = vadd.f32 %v2594, %v2340
    %v2596 = vadd.f32 %v2595, %v2341
    %v2597 = vadd.f32 %v2596, %v2342
    %v2598 = vadd.f32 %v2597, %v2343
    %v2599 = vadd.f32 %v2598, %v2344
    %v2600 = vadd.f32 %v2599, %v2345
    %v2601 = vadd.f32 %v2600, %v2346
    %v2602 = vadd.f32 %v2601, %v2347
    %v2603 = vadd.f32 %v2602, %v2348
    %v2604 = vadd.f32 %v2603, %v2349
    %v2605 = vadd.f32 %v2604, %v2350
    %v2606 = vadd.f32 %v2605, %v2351
    %v2607 = vadd.f32 %v2606, %v2352
    %v2608 = vadd.f32 %v2607, %v2353
    %v2609 = vadd.f32 %v2608, %v2354
    %v2610 = vadd.f32 %v2609, %v2355
    %v2611 = vadd.f32 %v2610, %v2356
    %v2612 = vadd.f32 %v2611, %v2357
    %v2613 = vadd.f32 %v2612, %v2358
    %v2614 = vadd.f32 %v2613, %v2359
    %v2615 = vadd.f32 %v2614, %v2360
    %v2616 = vadd.f32 %v2615, %v2361
    %v2617 = vadd.f32 %v2616, %v2362
    %v2618 = vadd.f32 %v2617, %v2363
    %v2619 = vadd.f32 %v2618, %v2364
    %v2620 = vadd.f32 %v2619, %v2365
    %v2621 = vadd.f32 %v2620, %v2366
    %v2622 = vadd.f32 %v2621, %v2367
    %v2623 = vadd.f32 %v2622, %v2368
    %v2624 = vadd.f32 %v2623, %v2369
    %v2625 = vadd.f32 %v2624, %v2370
    %v2626 = vadd.f32 %v2625, %v2371
    %v2627 = vadd.f32 %v2626, %v2372
    %v2628 = vadd.f32 %v2627, %v2373
    %v2629 = vadd.f32 %v2628, %v2374
    %v2630 = vadd.f32 %v2629, %v2375
    %v2631 = vadd.f32 %v2630, %v2376
    %v2632 = vadd.f32 %v2631, %v2377
    %v2633 = vadd.f32 %v2632, %v2378
    %v2634 = vadd.f32 %v2633, %v2379
    %v2635 = vadd.f32 %v2634, %v2380
    %v2636 = vadd.f32 %v2635, %v2381
    %v2637 = vadd.f32 %v2636, %v2382
    %v2638 = vadd.f32 %v2637, %v2383
    %v2639 = vadd.f32 %v2638, %v2384
    %v2640 = vadd.f32 %v2639, %v2385
    %v2641 = vadd.f32 %v2640, %v2386
    %v2642 = vadd.f32 %v2641, %v2387
    %v2643 = vadd.f32 %v2642, %v2388
    %v2644 = vadd.f32 %v2643, %v2389
    %v2645 = vadd.f32 %v2644, %v2390
    %v2646 = vadd.f32 %v2645, %v2391
    %v2647 = vadd.f32 %v2646, %v2392
    %v2648 = vadd.f32 %v2647, %v2393
    %v2649 = vadd.f32 %v2648, %v2394
    %v2650 = vadd.f32 %v2649, %v2395
    %v2651 = vadd.f32 %v2650, %v2396
    %v2652 = vadd.f32 %v2651, %v2397
    %v2653 = vadd.f32 %v2652, %v2398
    %v2654 = vadd.f32 %v2653, %v2399
    %v2655 = vadd.f32 %v2654, %v2400
    %v2656 = vadd.f32 %v2655, %v2401
    %v2657 = vadd.f32 %v2656, %v2402
    %v2658 = vadd.f32 %v2657, %v2403
    %v2659 = vadd.f32 %v2658, %v2404
    %v2660 = vadd.f32 %v2659, %v2405
    %v2661 = vadd.f32 %v2660, %v2406
    %v2662 = vadd.f32 %v2661, %v2407
    %v2663 = vadd.f32 %v2662, %v2408
    %v2664 = vadd.f32 %v2663, %v2409
    %v2665 = vadd.f32 %v2664, %v2410
    %v2666 = vadd.f32 %v2665, %v2411
    %v2667 = vadd.f32 %v2666, %v2412
    %v2668 = vadd.f32 %v2667, %v2413
    %v2669 = vadd.f32 %v2668, %v2414
    %v2670 = vadd.f32 %v2669, %v2415
    %v2671 = vadd.f32 %v2670, %v2416
    %v2672 = vadd.f32 %v2671, %v2417
    %v2673 = vadd.f32 %v2672, %v2418
    %v2674 = vadd.f32 %v2673, %v2419
    %v2675 = vadd.f32 %v2674, %v2420
    %v2676 = vadd.f32 %v2675, %v2421
    %v2677 = vadd.f32 %v2676, %v2422
    %v2678 = vadd.f32 %v2677, %v2423
    %v2679 = vadd.f32 %v2678, %v2424
    %v2680 = vadd.f32 %v2679, %v2425
    %v2681 = vadd.f32 %v2680, %v2426
    %v2682 = vadd.f32 %v2681, %v2427
    %v2683 = vadd.f32 %v2682, %v2428
    %v2684 = vadd.f32 %v2683, %v2429
    %v2685 = vadd.f32 %v2684, %v2430
    %v2686 = vadd.f32 %v2685, %v2431
    %v2687 = vadd.f32 %v2686, %v2432
    %v2688 = vadd.f32 %v2687, %v2433
    %v2689 = vadd.f32 %v2688, %v2434
    %v2690 = vadd.f32 %v2689, %v2435
    %v2691 = vadd.f32 %v2690, %v2436
    %v2692 = vadd.f32 %v2691, %v2437
    %v2693 = vadd.f32 %v2692, %v2438
    %v2694 = vadd.f32 %v2693, %v2439
    %v2695 = vadd.f32 %v2694, %v2440
    %v2696 = vadd.f32 %v2695, %v2441
    %v2697 = vadd.f32 %v2696, %v2442
    %v2698 = vadd.f32 %v2697, %v2443
    %v2699 = vadd.f32 %v2698, %v2444
    %v2700 = vadd.f32 %v2699, %v2445
    %v2701 = vadd.f32 %v2700, %v2446
    %v2702 = vadd.f32 %v2701, %v2447
    %v2703 = vadd.f32 %v2702, %v2448
    %v2704 = vadd.f32 %v2703, %v2449
    %v2705 = vadd.f32 %v2704, %v2450
    %v2706 = vadd.f32 %v2705, %v2451
    %v2707 = vadd.f32 %v2706, %v2452
    %v2708 = vadd.f32 %v2707, %v2453
    %v2709 = vadd.f32 %v2708, %v2454
    %v2710 = vadd.f32 %v2709, %v2455
    %v2711 = vadd.f32 %v2710, %v2456
    %v2712 = vadd.f32 %v2711, %v2457
    %v2713 = vadd.f32 %v2712, %v2458
    %v2714 = vadd.f32 %v2713, %v2459
    %v2715 = vadd.f32 %v2714, %v2460
    %v2716 = vadd.f32 %v2715, %v2461
    %v2717 = vadd.f32 %v2716, %v2462
    %v2718 = vadd.f32 %v2717, %v2463
    %v2719 = vadd.f32 %v2718, %v2464
    %v2720 = vadd.f32 %v2719, %v2465
    %v2721 = vadd.f32 %v2720, %v2466
    %v2722 = vadd.f32 %v2721, %v2467
    %v2723 = vadd.f32 %v2722, %v2468
    %v2724 = vadd.f32 %v2723, %v2469
    %v2725 = vadd.f32 %v2724, %v2470
    %v2726 = vadd.f32 %v2725, %v2471
    %v2727 = vadd.f32 %v2726, %v2472
    %v2728 = vadd.f32 %v2727, %v2473
    %v2729 = vadd.f32 %v2728, %v2474
    %v2730 = vadd.f32 %v2729, %v2475
    %v2731 = vadd.f32 %v2730, %v2476
    %v2732 = vadd.f32 %v2731, %v2477
    %v2733 = vadd.f32 %v2732, %v2478
    %v2734 = vadd.f32 %v2733, %v2479
    %v2735 = vadd.f32 %v2734, %v2480
    %v2736 = vadd.f32 %v2735, %v2481
    %v2737 = vadd.f32 %v2736, %v2482
    %v2738 = vadd.f32 %v2737, %v2483
    %v2739 = vadd.f32 %v2738, %v2484
    %v2740 = vadd.f32 %v2739, %v2485
    %v2741 = vadd.f32 %v2740, %v2486
    %v2742 = vrot.slane %v2741, 4
    %v2743 = vadd.f32 %v2741, %v2742
    %v2744 = vrot.slane %v2743, 2
    %v2745 = vadd.f32 %v2743, %v2744
    %v2746 = vrot.slane %v2745, 1
    %v2747 = vadd.f32 %v2745, %v2746
    %v2748 = vmul.f32 %v2747, %v2229
    %v2749 = vmul.f32 %v2230, %v2230
    %v2750 = vsub.f32 %v2748, %v2749
    %v2751 = vmax.f32 %v2750, 0.0
    %v2752 = vsub.f32 %v1323, %v2230
    %v2753 = vsub.f32 %v1325, %v2230
    %v2754 = vsub.f32 %v1328, %v2230
    %v2755 = vsub.f32 %v1330, %v2230
    %v2756 = vsub.f32 %v1333, %v2230
    %v2757 = vsub.f32 %v1335, %v2230
    %v2758 = vsub.f32 %v1338, %v2230
    %v2759 = vsub.f32 %v1340, %v2230
    %v2760 = vsub.f32 %v1343, %v2230
    %v2761 = vsub.f32 %v1345, %v2230
    %v2762 = vsub.f32 %v1348, %v2230
    %v2763 = vsub.f32 %v1350, %v2230
    %v2764 = vsub.f32 %v1353, %v2230
    %v2765 = vsub.f32 %v1355, %v2230
    %v2766 = vsub.f32 %v1358, %v2230
    %v2767 = vsub.f32 %v1360, %v2230
    %v2768 = vsub.f32 %v1363, %v2230
    %v2769 = vsub.f32 %v1365, %v2230
    %v2770 = vsub.f32 %v1368, %v2230
    %v2771 = vsub.f32 %v1370, %v2230
    %v2772 = vsub.f32 %v1373, %v2230
    %v2773 = vsub.f32 %v1375, %v2230
    %v2774 = vsub.f32 %v1378, %v2230
    %v2775 = vsub.f32 %v1380, %v2230
    %v2776 = vsub.f32 %v1383, %v2230
    %v2777 = vsub.f32 %v1385, %v2230
    %v2778 = vsub.f32 %v1388, %v2230
    %v2779 = vsub.f32 %v1390, %v2230
    %v2780 = vsub.f32 %v1393, %v2230
    %v2781 = vsub.f32 %v1395, %v2230
    %v2782 = vsub.f32 %v1398, %v2230
    %v2783 = vsub.f32 %v1400, %v2230
    %v2784 = vsub.f32 %v1403, %v2230
    %v2785 = vsub.f32 %v1405, %v2230
    %v2786 = vsub.f32 %v1408, %v2230
    %v2787 = vsub.f32 %v1410, %v2230
    %v2788 = vsub.f32 %v1413, %v2230
    %v2789 = vsub.f32 %v1415, %v2230
    %v2790 = vsub.f32 %v1418, %v2230
    %v2791 = vsub.f32 %v1420, %v2230
    %v2792 = vsub.f32 %v1423, %v2230
    %v2793 = vsub.f32 %v1425, %v2230
    %v2794 = vsub.f32 %v1428, %v2230
    %v2795 = vsub.f32 %v1430, %v2230
    %v2796 = vsub.f32 %v1433, %v2230
    %v2797 = vsub.f32 %v1435, %v2230
    %v2798 = vsub.f32 %v1438, %v2230
    %v2799 = vsub.f32 %v1440, %v2230
    %v2800 = vsub.f32 %v1443, %v2230
    %v2801 = vsub.f32 %v1445, %v2230
    %v2802 = vsub.f32 %v1448, %v2230
    %v2803 = vsub.f32 %v1450, %v2230
    %v2804 = vsub.f32 %v1453, %v2230
    %v2805 = vsub.f32 %v1455, %v2230
    %v2806 = vsub.f32 %v1458, %v2230
    %v2807 = vsub.f32 %v1460, %v2230
    %v2808 = vsub.f32 %v1463, %v2230
    %v2809 = vsub.f32 %v1465, %v2230
    %v2810 = vsub.f32 %v1468, %v2230
    %v2811 = vsub.f32 %v1470, %v2230
    %v2812 = vsub.f32 %v1473, %v2230
    %v2813 = vsub.f32 %v1475, %v2230
    %v2814 = vsub.f32 %v1478, %v2230
    %v2815 = vsub.f32 %v1480, %v2230
    %v2816 = vsub.f32 %v1483, %v2230
    %v2817 = vsub.f32 %v1485, %v2230
    %v2818 = vsub.f32 %v1488, %v2230
    %v2819 = vsub.f32 %v1490, %v2230
    %v2820 = vsub.f32 %v1493, %v2230
    %v2821 = vsub.f32 %v1495, %v2230
    %v2822 = vsub.f32 %v1498, %v2230
    %v2823 = vsub.f32 %v1500, %v2230
    %v2824 = vsub.f32 %v1503, %v2230
    %v2825 = vsub.f32 %v1505, %v2230
    %v2826 = vsub.f32 %v1508, %v2230
    %v2827 = vsub.f32 %v1510, %v2230
    %v2828 = vsub.f32 %v1513, %v2230
    %v2829 = vsub.f32 %v1515, %v2230
    %v2830 = vsub.f32 %v1518, %v2230
    %v2831 = vsub.f32 %v1520, %v2230
    %v2832 = vsub.f32 %v1523, %v2230
    %v2833 = vsub.f32 %v1525, %v2230
    %v2834 = vsub.f32 %v1528, %v2230
    %v2835 = vsub.f32 %v1530, %v2230
    %v2836 = vsub.f32 %v1533, %v2230
    %v2837 = vsub.f32 %v1535, %v2230
    %v2838 = vsub.f32 %v1538, %v2230
    %v2839 = vsub.f32 %v1540, %v2230
    %v2840 = vsub.f32 %v1543, %v2230
    %v2841 = vsub.f32 %v1545, %v2230
    %v2842 = vsub.f32 %v1548, %v2230
    %v2843 = vsub.f32 %v1550, %v2230
    %v2844 = vsub.f32 %v1553, %v2230
    %v2845 = vsub.f32 %v1555, %v2230
    %v2846 = vsub.f32 %v1558, %v2230
    %v2847 = vsub.f32 %v1560, %v2230
    %v2848 = vsub.f32 %v1563, %v2230
    %v2849 = vsub.f32 %v1565, %v2230
    %v2850 = vsub.f32 %v1568, %v2230
    %v2851 = vsub.f32 %v1570, %v2230
    %v2852 = vsub.f32 %v1573, %v2230
    %v2853 = vsub.f32 %v1575, %v2230
    %v2854 = vsub.f32 %v1578, %v2230
    %v2855 = vsub.f32 %v1580, %v2230
    %v2856 = vsub.f32 %v1583, %v2230
    %v2857 = vsub.f32 %v1585, %v2230
    %v2858 = vsub.f32 %v1588, %v2230
    %v2859 = vsub.f32 %v1590, %v2230
    %v2860 = vsub.f32 %v1593, %v2230
    %v2861 = vsub.f32 %v1595, %v2230
    %v2862 = vsub.f32 %v1598, %v2230
    %v2863 = vsub.f32 %v1600, %v2230
    %v2864 = vsub.f32 %v1603, %v2230
    %v2865 = vsub.f32 %v1605, %v2230
    %v2866 = vsub.f32 %v1608, %v2230
    %v2867 = vsub.f32 %v1610, %v2230
    %v2868 = vsub.f32 %v1613, %v2230
    %v2869 = vsub.f32 %v1615, %v2230
    %v2870 = vsub.f32 %v1618, %v2230
    %v2871 = vsub.f32 %v1620, %v2230
    %v2872 = vsub.f32 %v1623, %v2230
    %v2873 = vsub.f32 %v1625, %v2230
    %v2874 = vsub.f32 %v1628, %v2230
    %v2875 = vsub.f32 %v1630, %v2230
    %v2876 = vsub.f32 %v1633, %v2230
    %v2877 = vsub.f32 %v1635, %v2230
    %v2878 = vsub.f32 %v1638, %v2230
    %v2879 = vsub.f32 %v1640, %v2230
    %v2880 = vsub.f32 %v1643, %v2230
    %v2881 = vsub.f32 %v1645, %v2230
    %v2882 = vsub.f32 %v1648, %v2230
    %v2883 = vsub.f32 %v1650, %v2230
    %v2884 = vsub.f32 %v1653, %v2230
    %v2885 = vsub.f32 %v1655, %v2230
    %v2886 = vsub.f32 %v1658, %v2230
    %v2887 = vsub.f32 %v1660, %v2230
    %v2888 = vsub.f32 %v1663, %v2230
    %v2889 = vsub.f32 %v1665, %v2230
    %v2890 = vsub.f32 %v1668, %v2230
    %v2891 = vsub.f32 %v1670, %v2230
    %v2892 = vsub.f32 %v1673, %v2230
    %v2893 = vsub.f32 %v1675, %v2230
    %v2894 = vsub.f32 %v1678, %v2230
    %v2895 = vsub.f32 %v1680, %v2230
    %v2896 = vsub.f32 %v1683, %v2230
    %v2897 = vsub.f32 %v1685, %v2230
    %v2898 = vsub.f32 %v1688, %v2230
    %v2899 = vsub.f32 %v1690, %v2230
    %v2900 = vsub.f32 %v1693, %v2230
    %v2901 = vsub.f32 %v1695, %v2230
    %v2902 = vsub.f32 %v1698, %v2230
    %v2903 = vsub.f32 %v1700, %v2230
    %v2904 = vsub.f32 %v1703, %v2230
    %v2905 = vsub.f32 %v1705, %v2230
    %v2906 = vsub.f32 %v1708, %v2230
    %v2907 = vsub.f32 %v1710, %v2230
    %v2908 = vsub.f32 %v1713, %v2230
    %v2909 = vsub.f32 %v1715, %v2230
    %v2910 = vsub.f32 %v1718, %v2230
    %v2911 = vsub.f32 %v1720, %v2230
    %v2912 = vsub.f32 %v1723, %v2230
    %v2913 = vsub.f32 %v1725, %v2230
    %v2914 = vsub.f32 %v1728, %v2230
    %v2915 = vsub.f32 %v1730, %v2230
    %v2916 = vsub.f32 %v1733, %v2230
    %v2917 = vsub.f32 %v1735, %v2230
    %v2918 = vsub.f32 %v1738, %v2230
    %v2919 = vsub.f32 %v1740, %v2230
    %v2920 = vsub.f32 %v1743, %v2230
    %v2921 = vsub.f32 %v1745, %v2230
    %v2922 = vsub.f32 %v1748, %v2230
    %v2923 = vsub.f32 %v1750, %v2230
    %v2924 = vsub.f32 %v1753, %v2230
    %v2925 = vsub.f32 %v1755, %v2230
    %v2926 = vsub.f32 %v1758, %v2230
    %v2927 = vsub.f32 %v1760, %v2230
    %v2928 = vsub.f32 %v1763, %v2230
    %v2929 = vsub.f32 %v1765, %v2230
    %v2930 = vsub.f32 %v1768, %v2230
    %v2931 = vsub.f32 %v1770, %v2230
    %v2932 = vsub.f32 %v1773, %v2230
    %v2933 = vsub.f32 %v1775, %v2230
    %v2934 = vsub.f32 %v1778, %v2230
    %v2935 = vsub.f32 %v1780, %v2230
    %v2936 = vsub.f32 %v1783, %v2230
    %v2937 = vsub.f32 %v1785, %v2230
    %v2938 = vsub.f32 %v1788, %v2230
    %v2939 = vsub.f32 %v1790, %v2230
    %v2940 = vsub.f32 %v1793, %v2230
    %v2941 = vsub.f32 %v1795, %v2230
    %v2942 = vsub.f32 %v1798, %v2230
    %v2943 = vsub.f32 %v1800, %v2230
    %v2944 = vsub.f32 %v1803, %v2230
    %v2945 = vsub.f32 %v1805, %v2230
    %v2946 = vsub.f32 %v1808, %v2230
    %v2947 = vsub.f32 %v1810, %v2230
    %v2948 = vsub.f32 %v1813, %v2230
    %v2949 = vsub.f32 %v1815, %v2230
    %v2950 = vsub.f32 %v1818, %v2230
    %v2951 = vsub.f32 %v1820, %v2230
    %v2952 = vsub.f32 %v1823, %v2230
    %v2953 = vsub.f32 %v1825, %v2230
    %v2954 = vsub.f32 %v1828, %v2230
    %v2955 = vsub.f32 %v1830, %v2230
    %v2956 = vsub.f32 %v1833, %v2230
    %v2957 = vsub.f32 %v1835, %v2230
    %v2958 = vsub.f32 %v1838, %v2230
    %v2959 = vsub.f32 %v1840, %v2230
    %v2960 = vsub.f32 %v1843, %v2230
    %v2961 = vsub.f32 %v1845, %v2230
    %v2962 = vsub.f32 %v1848, %v2230
    %v2963 = vsub.f32 %v1850, %v2230
    %v2964 = vsub.f32 %v1853, %v2230
    %v2965 = vsub.f32 %v1855, %v2230
    %v2966 = vsub.f32 %v1858, %v2230
    %v2967 = vsub.f32 %v1860, %v2230
    %v2968 = vsub.f32 %v1863, %v2230
    %v2969 = vsub.f32 %v1865, %v2230
    %v2970 = vsub.f32 %v1868, %v2230
    %v2971 = vsub.f32 %v1870, %v2230
    %v2972 = vsub.f32 %v1873, %v2230
    %v2973 = vsub.f32 %v1875, %v2230
    %v2974 = vsub.f32 %v1878, %v2230
    %v2975 = vsub.f32 %v1880, %v2230
    %v2976 = vsub.f32 %v1883, %v2230
    %v2977 = vsub.f32 %v1885, %v2230
    %v2978 = vsub.f32 %v1888, %v2230
    %v2979 = vsub.f32 %v1890, %v2230
    %v2980 = vsub.f32 %v1893, %v2230
    %v2981 = vsub.f32 %v1895, %v2230
    %v2982 = vsub.f32 %v1898, %v2230
    %v2983 = vsub.f32 %v1900, %v2230
    %v2984 = vsub.f32 %v1903, %v2230
    %v2985 = vsub.f32 %v1905, %v2230
    %v2986 = vsub.f32 %v1908, %v2230
    %v2987 = vsub.f32 %v1910, %v2230
    %v2988 = vsub.f32 %v1913, %v2230
    %v2989 = vsub.f32 %v1915, %v2230
    %v2990 = vsub.f32 %v1918, %v2230
    %v2991 = vsub.f32 %v1920, %v2230
    %v2992 = vsub.f32 %v1923, %v2230
    %v2993 = vsub.f32 %v1925, %v2230
    %v2994 = vsub.f32 %v1928, %v2230
    %v2995 = vsub.f32 %v1930, %v2230
    %v2996 = vsub.f32 %v1933, %v2230
    %v2997 = vsub.f32 %v1935, %v2230
    %v2998 = vsub.f32 %v1938, %v2230
    %v2999 = vsub.f32 %v1940, %v2230
    %v3000 = vsub.f32 %v1943, %v2230
    %v3001 = vsub.f32 %v1945, %v2230
    %v3002 = vsub.f32 %v1948, %v2230
    %v3003 = vsub.f32 %v1950, %v2230
    %v3004 = vsub.f32 %v1953, %v2230
    %v3005 = vsub.f32 %v1955, %v2230
    %v3006 = vsub.f32 %v1958, %v2230
    %v3007 = vsub.f32 %v1960, %v2230
    %v3008 = vadd.f32 %v2751, 1e-05
    %v3009 = vrsqrt.pop %v3008
    %v3010 = vmul.f32 %v3009, %v3008
    %v3011 = vmul.f32 %v3010, %v3009
    %v3012 = vmul.f32 0.5, %v3011
    %v3013 = vsub.f32 1.5, %v3012
    %v3014 = vmul.f32 %v3009, %v3013
    %vm3015 = vweird.f32 %v3008
    %vm3016 = vweird.f32 %v3009
    %vm3017 = vmor %vm3015, %vm3016
    %v3018 = vsel %vm3017, %v3009, %v3014
    %v3019 = vmul.f32 %v2752, %v3018
    %v3020 = vmul.f32 %v2753, %v3018
    %v3021 = vmul.f32 %v2754, %v3018
    %v3022 = vmul.f32 %v2755, %v3018
    %v3023 = vmul.f32 %v2756, %v3018
    %v3024 = vmul.f32 %v2757, %v3018
    %v3025 = vmul.f32 %v2758, %v3018
    %v3026 = vmul.f32 %v2759, %v3018
    %v3027 = vmul.f32 %v2760, %v3018
    %v3028 = vmul.f32 %v2761, %v3018
    %v3029 = vmul.f32 %v2762, %v3018
    %v3030 = vmul.f32 %v2763, %v3018
    %v3031 = vmul.f32 %v2764, %v3018
    %v3032 = vmul.f32 %v2765, %v3018
    %v3033 = vmul.f32 %v2766, %v3018
    %v3034 = vmul.f32 %v2767, %v3018
    %v3035 = vmul.f32 %v2768, %v3018
    %v3036 = vmul.f32 %v2769, %v3018
    %v3037 = vmul.f32 %v2770, %v3018
    %v3038 = vmul.f32 %v2771, %v3018
    %v3039 = vmul.f32 %v2772, %v3018
    %v3040 = vmul.f32 %v2773, %v3018
    %v3041 = vmul.f32 %v2774, %v3018
    %v3042 = vmul.f32 %v2775, %v3018
    %v3043 = vmul.f32 %v2776, %v3018
    %v3044 = vmul.f32 %v2777, %v3018
    %v3045 = vmul.f32 %v2778, %v3018
    %v3046 = vmul.f32 %v2779, %v3018
    %v3047 = vmul.f32 %v2780, %v3018
    %v3048 = vmul.f32 %v2781, %v3018
    %v3049 = vmul.f32 %v2782, %v3018
    %v3050 = vmul.f32 %v2783, %v3018
    %v3051 = vmul.f32 %v2784, %v3018
    %v3052 = vmul.f32 %v2785, %v3018
    %v3053 = vmul.f32 %v2786, %v3018
    %v3054 = vmul.f32 %v2787, %v3018
    %v3055 = vmul.f32 %v2788, %v3018
    %v3056 = vmul.f32 %v2789, %v3018
    %v3057 = vmul.f32 %v2790, %v3018
    %v3058 = vmul.f32 %v2791, %v3018
    %v3059 = vmul.f32 %v2792, %v3018
    %v3060 = vmul.f32 %v2793, %v3018
    %v3061 = vmul.f32 %v2794, %v3018
    %v3062 = vmul.f32 %v2795, %v3018
    %v3063 = vmul.f32 %v2796, %v3018
    %v3064 = vmul.f32 %v2797, %v3018
    %v3065 = vmul.f32 %v2798, %v3018
    %v3066 = vmul.f32 %v2799, %v3018
    %v3067 = vmul.f32 %v2800, %v3018
    %v3068 = vmul.f32 %v2801, %v3018
    %v3069 = vmul.f32 %v2802, %v3018
    %v3070 = vmul.f32 %v2803, %v3018
    %v3071 = vmul.f32 %v2804, %v3018
    %v3072 = vmul.f32 %v2805, %v3018
    %v3073 = vmul.f32 %v2806, %v3018
    %v3074 = vmul.f32 %v2807, %v3018
    %v3075 = vmul.f32 %v2808, %v3018
    %v3076 = vmul.f32 %v2809, %v3018
    %v3077 = vmul.f32 %v2810, %v3018
    %v3078 = vmul.f32 %v2811, %v3018
    %v3079 = vmul.f32 %v2812, %v3018
    %v3080 = vmul.f32 %v2813, %v3018
    %v3081 = vmul.f32 %v2814, %v3018
    %v3082 = vmul.f32 %v2815, %v3018
    %v3083 = vmul.f32 %v2816, %v3018
    %v3084 = vmul.f32 %v2817, %v3018
    %v3085 = vmul.f32 %v2818, %v3018
    %v3086 = vmul.f32 %v2819, %v3018
    %v3087 = vmul.f32 %v2820, %v3018
    %v3088 = vmul.f32 %v2821, %v3018
    %v3089 = vmul.f32 %v2822, %v3018
    %v3090 = vmul.f32 %v2823, %v3018
    %v3091 = vmul.f32 %v2824, %v3018
    %v3092 = vmul.f32 %v2825, %v3018
    %v3093 = vmul.f32 %v2826, %v3018
    %v3094 = vmul.f32 %v2827, %v3018
    %v3095 = vmul.f32 %v2828, %v3018
    %v3096 = vmul.f32 %v2829, %v3018
    %v3097 = vmul.f32 %v2830, %v3018
    %v3098 = vmul.f32 %v2831, %v3018
    %v3099 = vmul.f32 %v2832, %v3018
    %v3100 = vmul.f32 %v2833, %v3018
    %v3101 = vmul.f32 %v2834, %v3018
    %v3102 = vmul.f32 %v2835, %v3018
    %v3103 = vmul.f32 %v2836, %v3018
    %v3104 = vmul.f32 %v2837, %v3018
    %v3105 = vmul.f32 %v2838, %v3018
    %v3106 = vmul.f32 %v2839, %v3018
    %v3107 = vmul.f32 %v2840, %v3018
    %v3108 = vmul.f32 %v2841, %v3018
    %v3109 = vmul.f32 %v2842, %v3018
    %v3110 = vmul.f32 %v2843, %v3018
    %v3111 = vmul.f32 %v2844, %v3018
    %v3112 = vmul.f32 %v2845, %v3018
    %v3113 = vmul.f32 %v2846, %v3018
    %v3114 = vmul.f32 %v2847, %v3018
    %v3115 = vmul.f32 %v2848, %v3018
    %v3116 = vmul.f32 %v2849, %v3018
    %v3117 = vmul.f32 %v2850, %v3018
    %v3118 = vmul.f32 %v2851, %v3018
    %v3119 = vmul.f32 %v2852, %v3018
    %v3120 = vmul.f32 %v2853, %v3018
    %v3121 = vmul.f32 %v2854, %v3018
    %v3122 = vmul.f32 %v2855, %v3018
    %v3123 = vmul.f32 %v2856, %v3018
    %v3124 = vmul.f32 %v2857, %v3018
    %v3125 = vmul.f32 %v2858, %v3018
    %v3126 = vmul.f32 %v2859, %v3018
    %v3127 = vmul.f32 %v2860, %v3018
    %v3128 = vmul.f32 %v2861, %v3018
    %v3129 = vmul.f32 %v2862, %v3018
    %v3130 = vmul.f32 %v2863, %v3018
    %v3131 = vmul.f32 %v2864, %v3018
    %v3132 = vmul.f32 %v2865, %v3018
    %v3133 = vmul.f32 %v2866, %v3018
    %v3134 = vmul.f32 %v2867, %v3018
    %v3135 = vmul.f32 %v2868, %v3018
    %v3136 = vmul.f32 %v2869, %v3018
    %v3137 = vmul.f32 %v2870, %v3018
    %v3138 = vmul.f32 %v2871, %v3018
    %v3139 = vmul.f32 %v2872, %v3018
    %v3140 = vmul.f32 %v2873, %v3018
    %v3141 = vmul.f32 %v2874, %v3018
    %v3142 = vmul.f32 %v2875, %v3018
    %v3143 = vmul.f32 %v2876, %v3018
    %v3144 = vmul.f32 %v2877, %v3018
    %v3145 = vmul.f32 %v2878, %v3018
    %v3146 = vmul.f32 %v2879, %v3018
    %v3147 = vmul.f32 %v2880, %v3018
    %v3148 = vmul.f32 %v2881, %v3018
    %v3149 = vmul.f32 %v2882, %v3018
    %v3150 = vmul.f32 %v2883, %v3018
    %v3151 = vmul.f32 %v2884, %v3018
    %v3152 = vmul.f32 %v2885, %v3018
    %v3153 = vmul.f32 %v2886, %v3018
    %v3154 = vmul.f32 %v2887, %v3018
    %v3155 = vmul.f32 %v2888, %v3018
    %v3156 = vmul.f32 %v2889, %v3018
    %v3157 = vmul.f32 %v2890, %v3018
    %v3158 = vmul.f32 %v2891, %v3018
    %v3159 = vmul.f32 %v2892, %v3018
    %v3160 = vmul.f32 %v2893, %v3018
    %v3161 = vmul.f32 %v2894, %v3018
    %v3162 = vmul.f32 %v2895, %v3018
    %v3163 = vmul.f32 %v2896, %v3018
    %v3164 = vmul.f32 %v2897, %v3018
    %v3165 = vmul.f32 %v2898, %v3018
    %v3166 = vmul.f32 %v2899, %v3018
    %v3167 = vmul.f32 %v2900, %v3018
    %v3168 = vmul.f32 %v2901, %v3018
    %v3169 = vmul.f32 %v2902, %v3018
    %v3170 = vmul.f32 %v2903, %v3018
    %v3171 = vmul.f32 %v2904, %v3018
    %v3172 = vmul.f32 %v2905, %v3018
    %v3173 = vmul.f32 %v2906, %v3018
    %v3174 = vmul.f32 %v2907, %v3018
    %v3175 = vmul.f32 %v2908, %v3018
    %v3176 = vmul.f32 %v2909, %v3018
    %v3177 = vmul.f32 %v2910, %v3018
    %v3178 = vmul.f32 %v2911, %v3018
    %v3179 = vmul.f32 %v2912, %v3018
    %v3180 = vmul.f32 %v2913, %v3018
    %v3181 = vmul.f32 %v2914, %v3018
    %v3182 = vmul.f32 %v2915, %v3018
    %v3183 = vmul.f32 %v2916, %v3018
    %v3184 = vmul.f32 %v2917, %v3018
    %v3185 = vmul.f32 %v2918, %v3018
    %v3186 = vmul.f32 %v2919, %v3018
    %v3187 = vmul.f32 %v2920, %v3018
    %v3188 = vmul.f32 %v2921, %v3018
    %v3189 = vmul.f32 %v2922, %v3018
    %v3190 = vmul.f32 %v2923, %v3018
    %v3191 = vmul.f32 %v2924, %v3018
    %v3192 = vmul.f32 %v2925, %v3018
    %v3193 = vmul.f32 %v2926, %v3018
    %v3194 = vmul.f32 %v2927, %v3018
    %v3195 = vmul.f32 %v2928, %v3018
    %v3196 = vmul.f32 %v2929, %v3018
    %v3197 = vmul.f32 %v2930, %v3018
    %v3198 = vmul.f32 %v2931, %v3018
    %v3199 = vmul.f32 %v2932, %v3018
    %v3200 = vmul.f32 %v2933, %v3018
    %v3201 = vmul.f32 %v2934, %v3018
    %v3202 = vmul.f32 %v2935, %v3018
    %v3203 = vmul.f32 %v2936, %v3018
    %v3204 = vmul.f32 %v2937, %v3018
    %v3205 = vmul.f32 %v2938, %v3018
    %v3206 = vmul.f32 %v2939, %v3018
    %v3207 = vmul.f32 %v2940, %v3018
    %v3208 = vmul.f32 %v2941, %v3018
    %v3209 = vmul.f32 %v2942, %v3018
    %v3210 = vmul.f32 %v2943, %v3018
    %v3211 = vmul.f32 %v2944, %v3018
    %v3212 = vmul.f32 %v2945, %v3018
    %v3213 = vmul.f32 %v2946, %v3018
    %v3214 = vmul.f32 %v2947, %v3018
    %v3215 = vmul.f32 %v2948, %v3018
    %v3216 = vmul.f32 %v2949, %v3018
    %v3217 = vmul.f32 %v2950, %v3018
    %v3218 = vmul.f32 %v2951, %v3018
    %v3219 = vmul.f32 %v2952, %v3018
    %v3220 = vmul.f32 %v2953, %v3018
    %v3221 = vmul.f32 %v2954, %v3018
    %v3222 = vmul.f32 %v2955, %v3018
    %v3223 = vmul.f32 %v2956, %v3018
    %v3224 = vmul.f32 %v2957, %v3018
    %v3225 = vmul.f32 %v2958, %v3018
    %v3226 = vmul.f32 %v2959, %v3018
    %v3227 = vmul.f32 %v2960, %v3018
    %v3228 = vmul.f32 %v2961, %v3018
    %v3229 = vmul.f32 %v2962, %v3018
    %v3230 = vmul.f32 %v2963, %v3018
    %v3231 = vmul.f32 %v2964, %v3018
    %v3232 = vmul.f32 %v2965, %v3018
    %v3233 = vmul.f32 %v2966, %v3018
    %v3234 = vmul.f32 %v2967, %v3018
    %v3235 = vmul.f32 %v2968, %v3018
    %v3236 = vmul.f32 %v2969, %v3018
    %v3237 = vmul.f32 %v2970, %v3018
    %v3238 = vmul.f32 %v2971, %v3018
    %v3239 = vmul.f32 %v2972, %v3018
    %v3240 = vmul.f32 %v2973, %v3018
    %v3241 = vmul.f32 %v2974, %v3018
    %v3242 = vmul.f32 %v2975, %v3018
    %v3243 = vmul.f32 %v2976, %v3018
    %v3244 = vmul.f32 %v2977, %v3018
    %v3245 = vmul.f32 %v2978, %v3018
    %v3246 = vmul.f32 %v2979, %v3018
    %v3247 = vmul.f32 %v2980, %v3018
    %v3248 = vmul.f32 %v2981, %v3018
    %v3249 = vmul.f32 %v2982, %v3018
    %v3250 = vmul.f32 %v2983, %v3018
    %v3251 = vmul.f32 %v2984, %v3018
    %v3252 = vmul.f32 %v2985, %v3018
    %v3253 = vmul.f32 %v2986, %v3018
    %v3254 = vmul.f32 %v2987, %v3018
    %v3255 = vmul.f32 %v2988, %v3018
    %v3256 = vmul.f32 %v2989, %v3018
    %v3257 = vmul.f32 %v2990, %v3018
    %v3258 = vmul.f32 %v2991, %v3018
    %v3259 = vmul.f32 %v2992, %v3018
    %v3260 = vmul.f32 %v2993, %v3018
    %v3261 = vmul.f32 %v2994, %v3018
    %v3262 = vmul.f32 %v2995, %v3018
    %v3263 = vmul.f32 %v2996, %v3018
    %v3264 = vmul.f32 %v2997, %v3018
    %v3265 = vmul.f32 %v2998, %v3018
    %v3266 = vmul.f32 %v2999, %v3018
    %v3267 = vmul.f32 %v3000, %v3018
    %v3268 = vmul.f32 %v3001, %v3018
    %v3269 = vmul.f32 %v3002, %v3018
    %v3270 = vmul.f32 %v3003, %v3018
    %v3271 = vmul.f32 %v3004, %v3018
    %v3272 = vmul.f32 %v3005, %v3018
    %v3273 = vmul.f32 %v3006, %v3018
    %v3274 = vmul.f32 %v3007, %v3018
    %v3275 = vperm.slane %v274, 1
    %v3276 = vmul.f32 %v3019, %v3275
    %v3277 = vmul.f32 %v3020, %v3275
    %v3278 = vmul.f32 %v3021, %v3275
    %v3279 = vmul.f32 %v3022, %v3275
    %v3280 = vmul.f32 %v3023, %v3275
    %v3281 = vmul.f32 %v3024, %v3275
    %v3282 = vmul.f32 %v3025, %v3275
    %v3283 = vmul.f32 %v3026, %v3275
    %v3284 = vmul.f32 %v3027, %v3275
    %v3285 = vmul.f32 %v3028, %v3275
    %v3286 = vmul.f32 %v3029, %v3275
    %v3287 = vmul.f32 %v3030, %v3275
    %v3288 = vmul.f32 %v3031, %v3275
    %v3289 = vmul.f32 %v3032, %v3275
    %v3290 = vmul.f32 %v3033, %v3275
    %v3291 = vmul.f32 %v3034, %v3275
    %v3292 = vmul.f32 %v3035, %v3275
    %v3293 = vmul.f32 %v3036, %v3275
    %v3294 = vmul.f32 %v3037, %v3275
    %v3295 = vmul.f32 %v3038, %v3275
    %v3296 = vmul.f32 %v3039, %v3275
    %v3297 = vmul.f32 %v3040, %v3275
    %v3298 = vmul.f32 %v3041, %v3275
    %v3299 = vmul.f32 %v3042, %v3275
    %v3300 = vmul.f32 %v3043, %v3275
    %v3301 = vmul.f32 %v3044, %v3275
    %v3302 = vmul.f32 %v3045, %v3275
    %v3303 = vmul.f32 %v3046, %v3275
    %v3304 = vmul.f32 %v3047, %v3275
    %v3305 = vmul.f32 %v3048, %v3275
    %v3306 = vmul.f32 %v3049, %v3275
    %v3307 = vmul.f32 %v3050, %v3275
    %v3308 = vmul.f32 %v3051, %v3275
    %v3309 = vmul.f32 %v3052, %v3275
    %v3310 = vmul.f32 %v3053, %v3275
    %v3311 = vmul.f32 %v3054, %v3275
    %v3312 = vmul.f32 %v3055, %v3275
    %v3313 = vmul.f32 %v3056, %v3275
    %v3314 = vmul.f32 %v3057, %v3275
    %v3315 = vmul.f32 %v3058, %v3275
    %v3316 = vmul.f32 %v3059, %v3275
    %v3317 = vmul.f32 %v3060, %v3275
    %v3318 = vmul.f32 %v3061, %v3275
    %v3319 = vmul.f32 %v3062, %v3275
    %v3320 = vmul.f32 %v3063, %v3275
    %v3321 = vmul.f32 %v3064, %v3275
    %v3322 = vmul.f32 %v3065, %v3275
    %v3323 = vmul.f32 %v3066, %v3275
    %v3324 = vmul.f32 %v3067, %v3275
    %v3325 = vmul.f32 %v3068, %v3275
    %v3326 = vmul.f32 %v3069, %v3275
    %v3327 = vmul.f32 %v3070, %v3275
    %v3328 = vmul.f32 %v3071, %v3275
    %v3329 = vmul.f32 %v3072, %v3275
    %v3330 = vmul.f32 %v3073, %v3275
    %v3331 = vmul.f32 %v3074, %v3275
    %v3332 = vmul.f32 %v3075, %v3275
    %v3333 = vmul.f32 %v3076, %v3275
    %v3334 = vmul.f32 %v3077, %v3275
    %v3335 = vmul.f32 %v3078, %v3275
    %v3336 = vmul.f32 %v3079, %v3275
    %v3337 = vmul.f32 %v3080, %v3275
    %v3338 = vmul.f32 %v3081, %v3275
    %v3339 = vmul.f32 %v3082, %v3275
    %v3340 = vmul.f32 %v3083, %v3275
    %v3341 = vmul.f32 %v3084, %v3275
    %v3342 = vmul.f32 %v3085, %v3275
    %v3343 = vmul.f32 %v3086, %v3275
    %v3344 = vmul.f32 %v3087, %v3275
    %v3345 = vmul.f32 %v3088, %v3275
    %v3346 = vmul.f32 %v3089, %v3275
    %v3347 = vmul.f32 %v3090, %v3275
    %v3348 = vmul.f32 %v3091, %v3275
    %v3349 = vmul.f32 %v3092, %v3275
    %v3350 = vmul.f32 %v3093, %v3275
    %v3351 = vmul.f32 %v3094, %v3275
    %v3352 = vmul.f32 %v3095, %v3275
    %v3353 = vmul.f32 %v3096, %v3275
    %v3354 = vmul.f32 %v3097, %v3275
    %v3355 = vmul.f32 %v3098, %v3275
    %v3356 = vmul.f32 %v3099, %v3275
    %v3357 = vmul.f32 %v3100, %v3275
    %v3358 = vmul.f32 %v3101, %v3275
    %v3359 = vmul.f32 %v3102, %v3275
    %v3360 = vmul.f32 %v3103, %v3275
    %v3361 = vmul.f32 %v3104, %v3275
    %v3362 = vmul.f32 %v3105, %v3275
    %v3363 = vmul.f32 %v3106, %v3275
    %v3364 = vmul.f32 %v3107, %v3275
    %v3365 = vmul.f32 %v3108, %v3275
    %v3366 = vmul.f32 %v3109, %v3275
    %v3367 = vmul.f32 %v3110, %v3275
    %v3368 = vmul.f32 %v3111, %v3275
    %v3369 = vmul.f32 %v3112, %v3275
    %v3370 = vmul.f32 %v3113, %v3275
    %v3371 = vmul.f32 %v3114, %v3275
    %v3372 = vmul.f32 %v3115, %v3275
    %v3373 = vmul.f32 %v3116, %v3275
    %v3374 = vmul.f32 %v3117, %v3275
    %v3375 = vmul.f32 %v3118, %v3275
    %v3376 = vmul.f32 %v3119, %v3275
    %v3377 = vmul.f32 %v3120, %v3275
    %v3378 = vmul.f32 %v3121, %v3275
    %v3379 = vmul.f32 %v3122, %v3275
    %v3380 = vmul.f32 %v3123, %v3275
    %v3381 = vmul.f32 %v3124, %v3275
    %v3382 = vmul.f32 %v3125, %v3275
    %v3383 = vmul.f32 %v3126, %v3275
    %v3384 = vmul.f32 %v3127, %v3275
    %v3385 = vmul.f32 %v3128, %v3275
    %v3386 = vmul.f32 %v3129, %v3275
    %v3387 = vmul.f32 %v3130, %v3275
    %v3388 = vmul.f32 %v3131, %v3275
    %v3389 = vmul.f32 %v3132, %v3275
    %v3390 = vmul.f32 %v3133, %v3275
    %v3391 = vmul.f32 %v3134, %v3275
    %v3392 = vmul.f32 %v3135, %v3275
    %v3393 = vmul.f32 %v3136, %v3275
    %v3394 = vmul.f32 %v3137, %v3275
    %v3395 = vmul.f32 %v3138, %v3275
    %v3396 = vmul.f32 %v3139, %v3275
    %v3397 = vmul.f32 %v3140, %v3275
    %v3398 = vmul.f32 %v3141, %v3275
    %v3399 = vmul.f32 %v3142, %v3275
    %v3400 = vmul.f32 %v3143, %v3275
    %v3401 = vmul.f32 %v3144, %v3275
    %v3402 = vmul.f32 %v3145, %v3275
    %v3403 = vmul.f32 %v3146, %v3275
    %v3404 = vmul.f32 %v3147, %v3275
    %v3405 = vmul.f32 %v3148, %v3275
    %v3406 = vmul.f32 %v3149, %v3275
    %v3407 = vmul.f32 %v3150, %v3275
    %v3408 = vmul.f32 %v3151, %v3275
    %v3409 = vmul.f32 %v3152, %v3275
    %v3410 = vmul.f32 %v3153, %v3275
    %v3411 = vmul.f32 %v3154, %v3275
    %v3412 = vmul.f32 %v3155, %v3275
    %v3413 = vmul.f32 %v3156, %v3275
    %v3414 = vmul.f32 %v3157, %v3275
    %v3415 = vmul.f32 %v3158, %v3275
    %v3416 = vmul.f32 %v3159, %v3275
    %v3417 = vmul.f32 %v3160, %v3275
    %v3418 = vmul.f32 %v3161, %v3275
    %v3419 = vmul.f32 %v3162, %v3275
    %v3420 = vmul.f32 %v3163, %v3275
    %v3421 = vmul.f32 %v3164, %v3275
    %v3422 = vmul.f32 %v3165, %v3275
    %v3423 = vmul.f32 %v3166, %v3275
    %v3424 = vmul.f32 %v3167, %v3275
    %v3425 = vmul.f32 %v3168, %v3275
    %v3426 = vmul.f32 %v3169, %v3275
    %v3427 = vmul.f32 %v3170, %v3275
    %v3428 = vmul.f32 %v3171, %v3275
    %v3429 = vmul.f32 %v3172, %v3275
    %v3430 = vmul.f32 %v3173, %v3275
    %v3431 = vmul.f32 %v3174, %v3275
    %v3432 = vmul.f32 %v3175, %v3275
    %v3433 = vmul.f32 %v3176, %v3275
    %v3434 = vmul.f32 %v3177, %v3275
    %v3435 = vmul.f32 %v3178, %v3275
    %v3436 = vmul.f32 %v3179, %v3275
    %v3437 = vmul.f32 %v3180, %v3275
    %v3438 = vmul.f32 %v3181, %v3275
    %v3439 = vmul.f32 %v3182, %v3275
    %v3440 = vmul.f32 %v3183, %v3275
    %v3441 = vmul.f32 %v3184, %v3275
    %v3442 = vmul.f32 %v3185, %v3275
    %v3443 = vmul.f32 %v3186, %v3275
    %v3444 = vmul.f32 %v3187, %v3275
    %v3445 = vmul.f32 %v3188, %v3275
    %v3446 = vmul.f32 %v3189, %v3275
    %v3447 = vmul.f32 %v3190, %v3275
    %v3448 = vmul.f32 %v3191, %v3275
    %v3449 = vmul.f32 %v3192, %v3275
    %v3450 = vmul.f32 %v3193, %v3275
    %v3451 = vmul.f32 %v3194, %v3275
    %v3452 = vmul.f32 %v3195, %v3275
    %v3453 = vmul.f32 %v3196, %v3275
    %v3454 = vmul.f32 %v3197, %v3275
    %v3455 = vmul.f32 %v3198, %v3275
    %v3456 = vmul.f32 %v3199, %v3275
    %v3457 = vmul.f32 %v3200, %v3275
    %v3458 = vmul.f32 %v3201, %v3275
    %v3459 = vmul.f32 %v3202, %v3275
    %v3460 = vmul.f32 %v3203, %v3275
    %v3461 = vmul.f32 %v3204, %v3275
    %v3462 = vmul.f32 %v3205, %v3275
    %v3463 = vmul.f32 %v3206, %v3275
    %v3464 = vmul.f32 %v3207, %v3275
    %v3465 = vmul.f32 %v3208, %v3275
    %v3466 = vmul.f32 %v3209, %v3275
    %v3467 = vmul.f32 %v3210, %v3275
    %v3468 = vmul.f32 %v3211, %v3275
    %v3469 = vmul.f32 %v3212, %v3275
    %v3470 = vmul.f32 %v3213, %v3275
    %v3471 = vmul.f32 %v3214, %v3275
    %v3472 = vmul.f32 %v3215, %v3275
    %v3473 = vmul.f32 %v3216, %v3275
    %v3474 = vmul.f32 %v3217, %v3275
    %v3475 = vmul.f32 %v3218, %v3275
    %v3476 = vmul.f32 %v3219, %v3275
    %v3477 = vmul.f32 %v3220, %v3275
    %v3478 = vmul.f32 %v3221, %v3275
    %v3479 = vmul.f32 %v3222, %v3275
    %v3480 = vmul.f32 %v3223, %v3275
    %v3481 = vmul.f32 %v3224, %v3275
    %v3482 = vmul.f32 %v3225, %v3275
    %v3483 = vmul.f32 %v3226, %v3275
    %v3484 = vmul.f32 %v3227, %v3275
    %v3485 = vmul.f32 %v3228, %v3275
    %v3486 = vmul.f32 %v3229, %v3275
    %v3487 = vmul.f32 %v3230, %v3275
    %v3488 = vmul.f32 %v3231, %v3275
    %v3489 = vmul.f32 %v3232, %v3275
    %v3490 = vmul.f32 %v3233, %v3275
    %v3491 = vmul.f32 %v3234, %v3275
    %v3492 = vmul.f32 %v3235, %v3275
    %v3493 = vmul.f32 %v3236, %v3275
    %v3494 = vmul.f32 %v3237, %v3275
    %v3495 = vmul.f32 %v3238, %v3275
    %v3496 = vmul.f32 %v3239, %v3275
    %v3497 = vmul.f32 %v3240, %v3275
    %v3498 = vmul.f32 %v3241, %v3275
    %v3499 = vmul.f32 %v3242, %v3275
    %v3500 = vmul.f32 %v3243, %v3275
    %v3501 = vmul.f32 %v3244, %v3275
    %v3502 = vmul.f32 %v3245, %v3275
    %v3503 = vmul.f32 %v3246, %v3275
    %v3504 = vmul.f32 %v3247, %v3275
    %v3505 = vmul.f32 %v3248, %v3275
    %v3506 = vmul.f32 %v3249, %v3275
    %v3507 = vmul.f32 %v3250, %v3275
    %v3508 = vmul.f32 %v3251, %v3275
    %v3509 = vmul.f32 %v3252, %v3275
    %v3510 = vmul.f32 %v3253, %v3275
    %v3511 = vmul.f32 %v3254, %v3275
    %v3512 = vmul.f32 %v3255, %v3275
    %v3513 = vmul.f32 %v3256, %v3275
    %v3514 = vmul.f32 %v3257, %v3275
    %v3515 = vmul.f32 %v3258, %v3275
    %v3516 = vmul.f32 %v3259, %v3275
    %v3517 = vmul.f32 %v3260, %v3275
    %v3518 = vmul.f32 %v3261, %v3275
    %v3519 = vmul.f32 %v3262, %v3275
    %v3520 = vmul.f32 %v3263, %v3275
    %v3521 = vmul.f32 %v3264, %v3275
    %v3522 = vmul.f32 %v3265, %v3275
    %v3523 = vmul.f32 %v3266, %v3275
    %v3524 = vmul.f32 %v3267, %v3275
    %v3525 = vmul.f32 %v3268, %v3275
    %v3526 = vmul.f32 %v3269, %v3275
    %v3527 = vmul.f32 %v3270, %v3275
    %v3528 = vmul.f32 %v3271, %v3275
    %v3529 = vmul.f32 %v3272, %v3275
    %v3530 = vmul.f32 %v3273, %v3275
    %v3531 = vmul.f32 %v3274, %v3275
    %v3532 = vperm.slane %v274, 2
    %v3533 = vadd.f32 %v3276, %v3532
    %v3534 = vadd.f32 %v3277, %v3532
    %v3535 = vadd.f32 %v3278, %v3532
    %v3536 = vadd.f32 %v3279, %v3532
    %v3537 = vadd.f32 %v3280, %v3532
    %v3538 = vadd.f32 %v3281, %v3532
    %v3539 = vadd.f32 %v3282, %v3532
    %v3540 = vadd.f32 %v3283, %v3532
    %v3541 = vadd.f32 %v3284, %v3532
    %v3542 = vadd.f32 %v3285, %v3532
    %v3543 = vadd.f32 %v3286, %v3532
    %v3544 = vadd.f32 %v3287, %v3532
    %v3545 = vadd.f32 %v3288, %v3532
    %v3546 = vadd.f32 %v3289, %v3532
    %v3547 = vadd.f32 %v3290, %v3532
    %v3548 = vadd.f32 %v3291, %v3532
    %v3549 = vadd.f32 %v3292, %v3532
    %v3550 = vadd.f32 %v3293, %v3532
    %v3551 = vadd.f32 %v3294, %v3532
    %v3552 = vadd.f32 %v3295, %v3532
    %v3553 = vadd.f32 %v3296, %v3532
    %v3554 = vadd.f32 %v3297, %v3532
    %v3555 = vadd.f32 %v3298, %v3532
    %v3556 = vadd.f32 %v3299, %v3532
    %v3557 = vadd.f32 %v3300, %v3532
    %v3558 = vadd.f32 %v3301, %v3532
    %v3559 = vadd.f32 %v3302, %v3532
    %v3560 = vadd.f32 %v3303, %v3532
    %v3561 = vadd.f32 %v3304, %v3532
    %v3562 = vadd.f32 %v3305, %v3532
    %v3563 = vadd.f32 %v3306, %v3532
    %v3564 = vadd.f32 %v3307, %v3532
    %v3565 = vadd.f32 %v3308, %v3532
    %v3566 = vadd.f32 %v3309, %v3532
    %v3567 = vadd.f32 %v3310, %v3532
    %v3568 = vadd.f32 %v3311, %v3532
    %v3569 = vadd.f32 %v3312, %v3532
    %v3570 = vadd.f32 %v3313, %v3532
    %v3571 = vadd.f32 %v3314, %v3532
    %v3572 = vadd.f32 %v3315, %v3532
    %v3573 = vadd.f32 %v3316, %v3532
    %v3574 = vadd.f32 %v3317, %v3532
    %v3575 = vadd.f32 %v3318, %v3532
    %v3576 = vadd.f32 %v3319, %v3532
    %v3577 = vadd.f32 %v3320, %v3532
    %v3578 = vadd.f32 %v3321, %v3532
    %v3579 = vadd.f32 %v3322, %v3532
    %v3580 = vadd.f32 %v3323, %v3532
    %v3581 = vadd.f32 %v3324, %v3532
    %v3582 = vadd.f32 %v3325, %v3532
    %v3583 = vadd.f32 %v3326, %v3532
    %v3584 = vadd.f32 %v3327, %v3532
    %v3585 = vadd.f32 %v3328, %v3532
    %v3586 = vadd.f32 %v3329, %v3532
    %v3587 = vadd.f32 %v3330, %v3532
    %v3588 = vadd.f32 %v3331, %v3532
    %v3589 = vadd.f32 %v3332, %v3532
    %v3590 = vadd.f32 %v3333, %v3532
    %v3591 = vadd.f32 %v3334, %v3532
    %v3592 = vadd.f32 %v3335, %v3532
    %v3593 = vadd.f32 %v3336, %v3532
    %v3594 = vadd.f32 %v3337, %v3532
    %v3595 = vadd.f32 %v3338, %v3532
    %v3596 = vadd.f32 %v3339, %v3532
    %v3597 = vadd.f32 %v3340, %v3532
    %v3598 = vadd.f32 %v3341, %v3532
    %v3599 = vadd.f32 %v3342, %v3532
    %v3600 = vadd.f32 %v3343, %v3532
    %v3601 = vadd.f32 %v3344, %v3532
    %v3602 = vadd.f32 %v3345, %v3532
    %v3603 = vadd.f32 %v3346, %v3532
    %v3604 = vadd.f32 %v3347, %v3532
    %v3605 = vadd.f32 %v3348, %v3532
    %v3606 = vadd.f32 %v3349, %v3532
    %v3607 = vadd.f32 %v3350, %v3532
    %v3608 = vadd.f32 %v3351, %v3532
    %v3609 = vadd.f32 %v3352, %v3532
    %v3610 = vadd.f32 %v3353, %v3532
    %v3611 = vadd.f32 %v3354, %v3532
    %v3612 = vadd.f32 %v3355, %v3532
    %v3613 = vadd.f32 %v3356, %v3532
    %v3614 = vadd.f32 %v3357, %v3532
    %v3615 = vadd.f32 %v3358, %v3532
    %v3616 = vadd.f32 %v3359, %v3532
    %v3617 = vadd.f32 %v3360, %v3532
    %v3618 = vadd.f32 %v3361, %v3532
    %v3619 = vadd.f32 %v3362, %v3532
    %v3620 = vadd.f32 %v3363, %v3532
    %v3621 = vadd.f32 %v3364, %v3532
    %v3622 = vadd.f32 %v3365, %v3532
    %v3623 = vadd.f32 %v3366, %v3532
    %v3624 = vadd.f32 %v3367, %v3532
    %v3625 = vadd.f32 %v3368, %v3532
    %v3626 = vadd.f32 %v3369, %v3532
    %v3627 = vadd.f32 %v3370, %v3532
    %v3628 = vadd.f32 %v3371, %v3532
    %v3629 = vadd.f32 %v3372, %v3532
    %v3630 = vadd.f32 %v3373, %v3532
    %v3631 = vadd.f32 %v3374, %v3532
    %v3632 = vadd.f32 %v3375, %v3532
    %v3633 = vadd.f32 %v3376, %v3532
    %v3634 = vadd.f32 %v3377, %v3532
    %v3635 = vadd.f32 %v3378, %v3532
    %v3636 = vadd.f32 %v3379, %v3532
    %v3637 = vadd.f32 %v3380, %v3532
    %v3638 = vadd.f32 %v3381, %v3532
    %v3639 = vadd.f32 %v3382, %v3532
    %v3640 = vadd.f32 %v3383, %v3532
    %v3641 = vadd.f32 %v3384, %v3532
    %v3642 = vadd.f32 %v3385, %v3532
    %v3643 = vadd.f32 %v3386, %v3532
    %v3644 = vadd.f32 %v3387, %v3532
    %v3645 = vadd.f32 %v3388, %v3532
    %v3646 = vadd.f32 %v3389, %v3532
    %v3647 = vadd.f32 %v3390, %v3532
    %v3648 = vadd.f32 %v3391, %v3532
    %v3649 = vadd.f32 %v3392, %v3532
    %v3650 = vadd.f32 %v3393, %v3532
    %v3651 = vadd.f32 %v3394, %v3532
    %v3652 = vadd.f32 %v3395, %v3532
    %v3653 = vadd.f32 %v3396, %v3532
    %v3654 = vadd.f32 %v3397, %v3532
    %v3655 = vadd.f32 %v3398, %v3532
    %v3656 = vadd.f32 %v3399, %v3532
    %v3657 = vadd.f32 %v3400, %v3532
    %v3658 = vadd.f32 %v3401, %v3532
    %v3659 = vadd.f32 %v3402, %v3532
    %v3660 = vadd.f32 %v3403, %v3532
    %v3661 = vadd.f32 %v3404, %v3532
    %v3662 = vadd.f32 %v3405, %v3532
    %v3663 = vadd.f32 %v3406, %v3532
    %v3664 = vadd.f32 %v3407, %v3532
    %v3665 = vadd.f32 %v3408, %v3532
    %v3666 = vadd.f32 %v3409, %v3532
    %v3667 = vadd.f32 %v3410, %v3532
    %v3668 = vadd.f32 %v3411, %v3532
    %v3669 = vadd.f32 %v3412, %v3532
    %v3670 = vadd.f32 %v3413, %v3532
    %v3671 = vadd.f32 %v3414, %v3532
    %v3672 = vadd.f32 %v3415, %v3532
    %v3673 = vadd.f32 %v3416, %v3532
    %v3674 = vadd.f32 %v3417, %v3532
    %v3675 = vadd.f32 %v3418, %v3532
    %v3676 = vadd.f32 %v3419, %v3532
    %v3677 = vadd.f32 %v3420, %v3532
    %v3678 = vadd.f32 %v3421, %v3532
    %v3679 = vadd.f32 %v3422, %v3532
    %v3680 = vadd.f32 %v3423, %v3532
    %v3681 = vadd.f32 %v3424, %v3532
    %v3682 = vadd.f32 %v3425, %v3532
    %v3683 = vadd.f32 %v3426, %v3532
    %v3684 = vadd.f32 %v3427, %v3532
    %v3685 = vadd.f32 %v3428, %v3532
    %v3686 = vadd.f32 %v3429, %v3532
    %v3687 = vadd.f32 %v3430, %v3532
    %v3688 = vadd.f32 %v3431, %v3532
    %v3689 = vadd.f32 %v3432, %v3532
    %v3690 = vadd.f32 %v3433, %v3532
    %v3691 = vadd.f32 %v3434, %v3532
    %v3692 = vadd.f32 %v3435, %v3532
    %v3693 = vadd.f32 %v3436, %v3532
    %v3694 = vadd.f32 %v3437, %v3532
    %v3695 = vadd.f32 %v3438, %v3532
    %v3696 = vadd.f32 %v3439, %v3532
    %v3697 = vadd.f32 %v3440, %v3532
    %v3698 = vadd.f32 %v3441, %v3532
    %v3699 = vadd.f32 %v3442, %v3532
    %v3700 = vadd.f32 %v3443, %v3532
    %v3701 = vadd.f32 %v3444, %v3532
    %v3702 = vadd.f32 %v3445, %v3532
    %v3703 = vadd.f32 %v3446, %v3532
    %v3704 = vadd.f32 %v3447, %v3532
    %v3705 = vadd.f32 %v3448, %v3532
    %v3706 = vadd.f32 %v3449, %v3532
    %v3707 = vadd.f32 %v3450, %v3532
    %v3708 = vadd.f32 %v3451, %v3532
    %v3709 = vadd.f32 %v3452, %v3532
    %v3710 = vadd.f32 %v3453, %v3532
    %v3711 = vadd.f32 %v3454, %v3532
    %v3712 = vadd.f32 %v3455, %v3532
    %v3713 = vadd.f32 %v3456, %v3532
    %v3714 = vadd.f32 %v3457, %v3532
    %v3715 = vadd.f32 %v3458, %v3532
    %v3716 = vadd.f32 %v3459, %v3532
    %v3717 = vadd.f32 %v3460, %v3532
    %v3718 = vadd.f32 %v3461, %v3532
    %v3719 = vadd.f32 %v3462, %v3532
    %v3720 = vadd.f32 %v3463, %v3532
    %v3721 = vadd.f32 %v3464, %v3532
    %v3722 = vadd.f32 %v3465, %v3532
    %v3723 = vadd.f32 %v3466, %v3532
    %v3724 = vadd.f32 %v3467, %v3532
    %v3725 = vadd.f32 %v3468, %v3532
    %v3726 = vadd.f32 %v3469, %v3532
    %v3727 = vadd.f32 %v3470, %v3532
    %v3728 = vadd.f32 %v3471, %v3532
    %v3729 = vadd.f32 %v3472, %v3532
    %v3730 = vadd.f32 %v3473, %v3532
    %v3731 = vadd.f32 %v3474, %v3532
    %v3732 = vadd.f32 %v3475, %v3532
    %v3733 = vadd.f32 %v3476, %v3532
    %v3734 = vadd.f32 %v3477, %v3532
    %v3735 = vadd.f32 %v3478, %v3532
    %v3736 = vadd.f32 %v3479, %v3532
    %v3737 = vadd.f32 %v3480, %v3532
    %v3738 = vadd.f32 %v3481, %v3532
    %v3739 = vadd.f32 %v3482, %v3532
    %v3740 = vadd.f32 %v3483, %v3532
    %v3741 = vadd.f32 %v3484, %v3532
    %v3742 = vadd.f32 %v3485, %v3532
    %v3743 = vadd.f32 %v3486, %v3532
    %v3744 = vadd.f32 %v3487, %v3532
    %v3745 = vadd.f32 %v3488, %v3532
    %v3746 = vadd.f32 %v3489, %v3532
    %v3747 = vadd.f32 %v3490, %v3532
    %v3748 = vadd.f32 %v3491, %v3532
    %v3749 = vadd.f32 %v3492, %v3532
    %v3750 = vadd.f32 %v3493, %v3532
    %v3751 = vadd.f32 %v3494, %v3532
    %v3752 = vadd.f32 %v3495, %v3532
    %v3753 = vadd.f32 %v3496, %v3532
    %v3754 = vadd.f32 %v3497, %v3532
    %v3755 = vadd.f32 %v3498, %v3532
    %v3756 = vadd.f32 %v3499, %v3532
    %v3757 = vadd.f32 %v3500, %v3532
    %v3758 = vadd.f32 %v3501, %v3532
    %v3759 = vadd.f32 %v3502, %v3532
    %v3760 = vadd.f32 %v3503, %v3532
    %v3761 = vadd.f32 %v3504, %v3532
    %v3762 = vadd.f32 %v3505, %v3532
    %v3763 = vadd.f32 %v3506, %v3532
    %v3764 = vadd.f32 %v3507, %v3532
    %v3765 = vadd.f32 %v3508, %v3532
    %v3766 = vadd.f32 %v3509, %v3532
    %v3767 = vadd.f32 %v3510, %v3532
    %v3768 = vadd.f32 %v3511, %v3532
    %v3769 = vadd.f32 %v3512, %v3532
    %v3770 = vadd.f32 %v3513, %v3532
    %v3771 = vadd.f32 %v3514, %v3532
    %v3772 = vadd.f32 %v3515, %v3532
    %v3773 = vadd.f32 %v3516, %v3532
    %v3774 = vadd.f32 %v3517, %v3532
    %v3775 = vadd.f32 %v3518, %v3532
    %v3776 = vadd.f32 %v3519, %v3532
    %v3777 = vadd.f32 %v3520, %v3532
    %v3778 = vadd.f32 %v3521, %v3532
    %v3779 = vadd.f32 %v3522, %v3532
    %v3780 = vadd.f32 %v3523, %v3532
    %v3781 = vadd.f32 %v3524, %v3532
    %v3782 = vadd.f32 %v3525, %v3532
    %v3783 = vadd.f32 %v3526, %v3532
    %v3784 = vadd.f32 %v3527, %v3532
    %v3785 = vadd.f32 %v3528, %v3532
    %v3786 = vadd.f32 %v3529, %v3532
    %v3787 = vadd.f32 %v3530, %v3532
    %v3788 = vadd.f32 %v3531, %v3532
    %vm3789 = vcmp.ge.f32.partialorder %v3533, 0.0
    %vm3790 = vcmp.ge.f32.partialorder %v3534, 0.0
    %vm3791 = vcmp.ge.f32.partialorder %v3535, 0.0
    %vm3792 = vcmp.ge.f32.partialorder %v3536, 0.0
    %vm3793 = vcmp.ge.f32.partialorder %v3537, 0.0
    %vm3794 = vcmp.ge.f32.partialorder %v3538, 0.0
    %vm3795 = vcmp.ge.f32.partialorder %v3539, 0.0
    %vm3796 = vcmp.ge.f32.partialorder %v3540, 0.0
    %vm3797 = vcmp.ge.f32.partialorder %v3541, 0.0
    %vm3798 = vcmp.ge.f32.partialorder %v3542, 0.0
    %vm3799 = vcmp.ge.f32.partialorder %v3543, 0.0
    %vm3800 = vcmp.ge.f32.partialorder %v3544, 0.0
    %vm3801 = vcmp.ge.f32.partialorder %v3545, 0.0
    %vm3802 = vcmp.ge.f32.partialorder %v3546, 0.0
    %vm3803 = vcmp.ge.f32.partialorder %v3547, 0.0
    %vm3804 = vcmp.ge.f32.partialorder %v3548, 0.0
    %vm3805 = vcmp.ge.f32.partialorder %v3549, 0.0
    %vm3806 = vcmp.ge.f32.partialorder %v3550, 0.0
    %vm3807 = vcmp.ge.f32.partialorder %v3551, 0.0
    %vm3808 = vcmp.ge.f32.partialorder %v3552, 0.0
    %vm3809 = vcmp.ge.f32.partialorder %v3553, 0.0
    %vm3810 = vcmp.ge.f32.partialorder %v3554, 0.0
    %vm3811 = vcmp.ge.f32.partialorder %v3555, 0.0
    %vm3812 = vcmp.ge.f32.partialorder %v3556, 0.0
    %vm3813 = vcmp.ge.f32.partialorder %v3557, 0.0
    %vm3814 = vcmp.ge.f32.partialorder %v3558, 0.0
    %vm3815 = vcmp.ge.f32.partialorder %v3559, 0.0
    %vm3816 = vcmp.ge.f32.partialorder %v3560, 0.0
    %vm3817 = vcmp.ge.f32.partialorder %v3561, 0.0
    %vm3818 = vcmp.ge.f32.partialorder %v3562, 0.0
    %vm3819 = vcmp.ge.f32.partialorder %v3563, 0.0
    %vm3820 = vcmp.ge.f32.partialorder %v3564, 0.0
    %vm3821 = vcmp.ge.f32.partialorder %v3565, 0.0
    %vm3822 = vcmp.ge.f32.partialorder %v3566, 0.0
    %vm3823 = vcmp.ge.f32.partialorder %v3567, 0.0
    %vm3824 = vcmp.ge.f32.partialorder %v3568, 0.0
    %vm3825 = vcmp.ge.f32.partialorder %v3569, 0.0
    %vm3826 = vcmp.ge.f32.partialorder %v3570, 0.0
    %vm3827 = vcmp.ge.f32.partialorder %v3571, 0.0
    %vm3828 = vcmp.ge.f32.partialorder %v3572, 0.0
    %vm3829 = vcmp.ge.f32.partialorder %v3573, 0.0
    %vm3830 = vcmp.ge.f32.partialorder %v3574, 0.0
    %vm3831 = vcmp.ge.f32.partialorder %v3575, 0.0
    %vm3832 = vcmp.ge.f32.partialorder %v3576, 0.0
    %vm3833 = vcmp.ge.f32.partialorder %v3577, 0.0
    %vm3834 = vcmp.ge.f32.partialorder %v3578, 0.0
    %vm3835 = vcmp.ge.f32.partialorder %v3579, 0.0
    %vm3836 = vcmp.ge.f32.partialorder %v3580, 0.0
    %vm3837 = vcmp.ge.f32.partialorder %v3581, 0.0
    %vm3838 = vcmp.ge.f32.partialorder %v3582, 0.0
    %vm3839 = vcmp.ge.f32.partialorder %v3583, 0.0
    %vm3840 = vcmp.ge.f32.partialorder %v3584, 0.0
    %vm3841 = vcmp.ge.f32.partialorder %v3585, 0.0
    %vm3842 = vcmp.ge.f32.partialorder %v3586, 0.0
    %vm3843 = vcmp.ge.f32.partialorder %v3587, 0.0
    %vm3844 = vcmp.ge.f32.partialorder %v3588, 0.0
    %vm3845 = vcmp.ge.f32.partialorder %v3589, 0.0
    %vm3846 = vcmp.ge.f32.partialorder %v3590, 0.0
    %vm3847 = vcmp.ge.f32.partialorder %v3591, 0.0
    %vm3848 = vcmp.ge.f32.partialorder %v3592, 0.0
    %vm3849 = vcmp.ge.f32.partialorder %v3593, 0.0
    %vm3850 = vcmp.ge.f32.partialorder %v3594, 0.0
    %vm3851 = vcmp.ge.f32.partialorder %v3595, 0.0
    %vm3852 = vcmp.ge.f32.partialorder %v3596, 0.0
    %vm3853 = vcmp.ge.f32.partialorder %v3597, 0.0
    %vm3854 = vcmp.ge.f32.partialorder %v3598, 0.0
    %vm3855 = vcmp.ge.f32.partialorder %v3599, 0.0
    %vm3856 = vcmp.ge.f32.partialorder %v3600, 0.0
    %vm3857 = vcmp.ge.f32.partialorder %v3601, 0.0
    %vm3858 = vcmp.ge.f32.partialorder %v3602, 0.0
    %vm3859 = vcmp.ge.f32.partialorder %v3603, 0.0
    %vm3860 = vcmp.ge.f32.partialorder %v3604, 0.0
    %vm3861 = vcmp.ge.f32.partialorder %v3605, 0.0
    %vm3862 = vcmp.ge.f32.partialorder %v3606, 0.0
    %vm3863 = vcmp.ge.f32.partialorder %v3607, 0.0
    %vm3864 = vcmp.ge.f32.partialorder %v3608, 0.0
    %vm3865 = vcmp.ge.f32.partialorder %v3609, 0.0
    %vm3866 = vcmp.ge.f32.partialorder %v3610, 0.0
    %vm3867 = vcmp.ge.f32.partialorder %v3611, 0.0
    %vm3868 = vcmp.ge.f32.partialorder %v3612, 0.0
    %vm3869 = vcmp.ge.f32.partialorder %v3613, 0.0
    %vm3870 = vcmp.ge.f32.partialorder %v3614, 0.0
    %vm3871 = vcmp.ge.f32.partialorder %v3615, 0.0
    %vm3872 = vcmp.ge.f32.partialorder %v3616, 0.0
    %vm3873 = vcmp.ge.f32.partialorder %v3617, 0.0
    %vm3874 = vcmp.ge.f32.partialorder %v3618, 0.0
    %vm3875 = vcmp.ge.f32.partialorder %v3619, 0.0
    %vm3876 = vcmp.ge.f32.partialorder %v3620, 0.0
    %vm3877 = vcmp.ge.f32.partialorder %v3621, 0.0
    %vm3878 = vcmp.ge.f32.partialorder %v3622, 0.0
    %vm3879 = vcmp.ge.f32.partialorder %v3623, 0.0
    %vm3880 = vcmp.ge.f32.partialorder %v3624, 0.0
    %vm3881 = vcmp.ge.f32.partialorder %v3625, 0.0
    %vm3882 = vcmp.ge.f32.partialorder %v3626, 0.0
    %vm3883 = vcmp.ge.f32.partialorder %v3627, 0.0
    %vm3884 = vcmp.ge.f32.partialorder %v3628, 0.0
    %vm3885 = vcmp.ge.f32.partialorder %v3629, 0.0
    %vm3886 = vcmp.ge.f32.partialorder %v3630, 0.0
    %vm3887 = vcmp.ge.f32.partialorder %v3631, 0.0
    %vm3888 = vcmp.ge.f32.partialorder %v3632, 0.0
    %vm3889 = vcmp.ge.f32.partialorder %v3633, 0.0
    %vm3890 = vcmp.ge.f32.partialorder %v3634, 0.0
    %vm3891 = vcmp.ge.f32.partialorder %v3635, 0.0
    %vm3892 = vcmp.ge.f32.partialorder %v3636, 0.0
    %vm3893 = vcmp.ge.f32.partialorder %v3637, 0.0
    %vm3894 = vcmp.ge.f32.partialorder %v3638, 0.0
    %vm3895 = vcmp.ge.f32.partialorder %v3639, 0.0
    %vm3896 = vcmp.ge.f32.partialorder %v3640, 0.0
    %vm3897 = vcmp.ge.f32.partialorder %v3641, 0.0
    %vm3898 = vcmp.ge.f32.partialorder %v3642, 0.0
    %vm3899 = vcmp.ge.f32.partialorder %v3643, 0.0
    %vm3900 = vcmp.ge.f32.partialorder %v3644, 0.0
    %vm3901 = vcmp.ge.f32.partialorder %v3645, 0.0
    %vm3902 = vcmp.ge.f32.partialorder %v3646, 0.0
    %vm3903 = vcmp.ge.f32.partialorder %v3647, 0.0
    %vm3904 = vcmp.ge.f32.partialorder %v3648, 0.0
    %vm3905 = vcmp.ge.f32.partialorder %v3649, 0.0
    %vm3906 = vcmp.ge.f32.partialorder %v3650, 0.0
    %vm3907 = vcmp.ge.f32.partialorder %v3651, 0.0
    %vm3908 = vcmp.ge.f32.partialorder %v3652, 0.0
    %vm3909 = vcmp.ge.f32.partialorder %v3653, 0.0
    %vm3910 = vcmp.ge.f32.partialorder %v3654, 0.0
    %vm3911 = vcmp.ge.f32.partialorder %v3655, 0.0
    %vm3912 = vcmp.ge.f32.partialorder %v3656, 0.0
    %vm3913 = vcmp.ge.f32.partialorder %v3657, 0.0
    %vm3914 = vcmp.ge.f32.partialorder %v3658, 0.0
    %vm3915 = vcmp.ge.f32.partialorder %v3659, 0.0
    %vm3916 = vcmp.ge.f32.partialorder %v3660, 0.0
    %vm3917 = vcmp.ge.f32.partialorder %v3661, 0.0
    %vm3918 = vcmp.ge.f32.partialorder %v3662, 0.0
    %vm3919 = vcmp.ge.f32.partialorder %v3663, 0.0
    %vm3920 = vcmp.ge.f32.partialorder %v3664, 0.0
    %vm3921 = vcmp.ge.f32.partialorder %v3665, 0.0
    %vm3922 = vcmp.ge.f32.partialorder %v3666, 0.0
    %vm3923 = vcmp.ge.f32.partialorder %v3667, 0.0
    %vm3924 = vcmp.ge.f32.partialorder %v3668, 0.0
    %vm3925 = vcmp.ge.f32.partialorder %v3669, 0.0
    %vm3926 = vcmp.ge.f32.partialorder %v3670, 0.0
    %vm3927 = vcmp.ge.f32.partialorder %v3671, 0.0
    %vm3928 = vcmp.ge.f32.partialorder %v3672, 0.0
    %vm3929 = vcmp.ge.f32.partialorder %v3673, 0.0
    %vm3930 = vcmp.ge.f32.partialorder %v3674, 0.0
    %vm3931 = vcmp.ge.f32.partialorder %v3675, 0.0
    %vm3932 = vcmp.ge.f32.partialorder %v3676, 0.0
    %vm3933 = vcmp.ge.f32.partialorder %v3677, 0.0
    %vm3934 = vcmp.ge.f32.partialorder %v3678, 0.0
    %vm3935 = vcmp.ge.f32.partialorder %v3679, 0.0
    %vm3936 = vcmp.ge.f32.partialorder %v3680, 0.0
    %vm3937 = vcmp.ge.f32.partialorder %v3681, 0.0
    %vm3938 = vcmp.ge.f32.partialorder %v3682, 0.0
    %vm3939 = vcmp.ge.f32.partialorder %v3683, 0.0
    %vm3940 = vcmp.ge.f32.partialorder %v3684, 0.0
    %vm3941 = vcmp.ge.f32.partialorder %v3685, 0.0
    %vm3942 = vcmp.ge.f32.partialorder %v3686, 0.0
    %vm3943 = vcmp.ge.f32.partialorder %v3687, 0.0
    %vm3944 = vcmp.ge.f32.partialorder %v3688, 0.0
    %vm3945 = vcmp.ge.f32.partialorder %v3689, 0.0
    %vm3946 = vcmp.ge.f32.partialorder %v3690, 0.0
    %vm3947 = vcmp.ge.f32.partialorder %v3691, 0.0
    %vm3948 = vcmp.ge.f32.partialorder %v3692, 0.0
    %vm3949 = vcmp.ge.f32.partialorder %v3693, 0.0
    %vm3950 = vcmp.ge.f32.partialorder %v3694, 0.0
    %vm3951 = vcmp.ge.f32.partialorder %v3695, 0.0
    %vm3952 = vcmp.ge.f32.partialorder %v3696, 0.0
    %vm3953 = vcmp.ge.f32.partialorder %v3697, 0.0
    %vm3954 = vcmp.ge.f32.partialorder %v3698, 0.0
    %vm3955 = vcmp.ge.f32.partialorder %v3699, 0.0
    %vm3956 = vcmp.ge.f32.partialorder %v3700, 0.0
    %vm3957 = vcmp.ge.f32.partialorder %v3701, 0.0
    %vm3958 = vcmp.ge.f32.partialorder %v3702, 0.0
    %vm3959 = vcmp.ge.f32.partialorder %v3703, 0.0
    %vm3960 = vcmp.ge.f32.partialorder %v3704, 0.0
    %vm3961 = vcmp.ge.f32.partialorder %v3705, 0.0
    %vm3962 = vcmp.ge.f32.partialorder %v3706, 0.0
    %vm3963 = vcmp.ge.f32.partialorder %v3707, 0.0
    %vm3964 = vcmp.ge.f32.partialorder %v3708, 0.0
    %vm3965 = vcmp.ge.f32.partialorder %v3709, 0.0
    %vm3966 = vcmp.ge.f32.partialorder %v3710, 0.0
    %vm3967 = vcmp.ge.f32.partialorder %v3711, 0.0
    %vm3968 = vcmp.ge.f32.partialorder %v3712, 0.0
    %vm3969 = vcmp.ge.f32.partialorder %v3713, 0.0
    %vm3970 = vcmp.ge.f32.partialorder %v3714, 0.0
    %vm3971 = vcmp.ge.f32.partialorder %v3715, 0.0
    %vm3972 = vcmp.ge.f32.partialorder %v3716, 0.0
    %vm3973 = vcmp.ge.f32.partialorder %v3717, 0.0
    %vm3974 = vcmp.ge.f32.partialorder %v3718, 0.0
    %vm3975 = vcmp.ge.f32.partialorder %v3719, 0.0
    %vm3976 = vcmp.ge.f32.partialorder %v3720, 0.0
    %vm3977 = vcmp.ge.f32.partialorder %v3721, 0.0
    %vm3978 = vcmp.ge.f32.partialorder %v3722, 0.0
    %vm3979 = vcmp.ge.f32.partialorder %v3723, 0.0
    %vm3980 = vcmp.ge.f32.partialorder %v3724, 0.0
    %vm3981 = vcmp.ge.f32.partialorder %v3725, 0.0
    %vm3982 = vcmp.ge.f32.partialorder %v3726, 0.0
    %vm3983 = vcmp.ge.f32.partialorder %v3727, 0.0
    %vm3984 = vcmp.ge.f32.partialorder %v3728, 0.0
    %vm3985 = vcmp.ge.f32.partialorder %v3729, 0.0
    %vm3986 = vcmp.ge.f32.partialorder %v3730, 0.0
    %vm3987 = vcmp.ge.f32.partialorder %v3731, 0.0
    %vm3988 = vcmp.ge.f32.partialorder %v3732, 0.0
    %vm3989 = vcmp.ge.f32.partialorder %v3733, 0.0
    %vm3990 = vcmp.ge.f32.partialorder %v3734, 0.0
    %vm3991 = vcmp.ge.f32.partialorder %v3735, 0.0
    %vm3992 = vcmp.ge.f32.partialorder %v3736, 0.0
    %vm3993 = vcmp.ge.f32.partialorder %v3737, 0.0
    %vm3994 = vcmp.ge.f32.partialorder %v3738, 0.0
    %vm3995 = vcmp.ge.f32.partialorder %v3739, 0.0
    %vm3996 = vcmp.ge.f32.partialorder %v3740, 0.0
    %vm3997 = vcmp.ge.f32.partialorder %v3741, 0.0
    %vm3998 = vcmp.ge.f32.partialorder %v3742, 0.0
    %vm3999 = vcmp.ge.f32.partialorder %v3743, 0.0
    %vm4000 = vcmp.ge.f32.partialorder %v3744, 0.0
    %vm4001 = vcmp.ge.f32.partialorder %v3745, 0.0
    %vm4002 = vcmp.ge.f32.partialorder %v3746, 0.0
    %vm4003 = vcmp.ge.f32.partialorder %v3747, 0.0
    %vm4004 = vcmp.ge.f32.partialorder %v3748, 0.0
    %vm4005 = vcmp.ge.f32.partialorder %v3749, 0.0
    %vm4006 = vcmp.ge.f32.partialorder %v3750, 0.0
    %vm4007 = vcmp.ge.f32.partialorder %v3751, 0.0
    %vm4008 = vcmp.ge.f32.partialorder %v3752, 0.0
    %vm4009 = vcmp.ge.f32.partialorder %v3753, 0.0
    %vm4010 = vcmp.ge.f32.partialorder %v3754, 0.0
    %vm4011 = vcmp.ge.f32.partialorder %v3755, 0.0
    %vm4012 = vcmp.ge.f32.partialorder %v3756, 0.0
    %vm4013 = vcmp.ge.f32.partialorder %v3757, 0.0
    %vm4014 = vcmp.ge.f32.partialorder %v3758, 0.0
    %vm4015 = vcmp.ge.f32.partialorder %v3759, 0.0
    %vm4016 = vcmp.ge.f32.partialorder %v3760, 0.0
    %vm4017 = vcmp.ge.f32.partialorder %v3761, 0.0
    %vm4018 = vcmp.ge.f32.partialorder %v3762, 0.0
    %vm4019 = vcmp.ge.f32.partialorder %v3763, 0.0
    %vm4020 = vcmp.ge.f32.partialorder %v3764, 0.0
    %vm4021 = vcmp.ge.f32.partialorder %v3765, 0.0
    %vm4022 = vcmp.ge.f32.partialorder %v3766, 0.0
    %vm4023 = vcmp.ge.f32.partialorder %v3767, 0.0
    %vm4024 = vcmp.ge.f32.partialorder %v3768, 0.0
    %vm4025 = vcmp.ge.f32.partialorder %v3769, 0.0
    %vm4026 = vcmp.ge.f32.partialorder %v3770, 0.0
    %vm4027 = vcmp.ge.f32.partialorder %v3771, 0.0
    %vm4028 = vcmp.ge.f32.partialorder %v3772, 0.0
    %vm4029 = vcmp.ge.f32.partialorder %v3773, 0.0
    %vm4030 = vcmp.ge.f32.partialorder %v3774, 0.0
    %vm4031 = vcmp.ge.f32.partialorder %v3775, 0.0
    %vm4032 = vcmp.ge.f32.partialorder %v3776, 0.0
    %vm4033 = vcmp.ge.f32.partialorder %v3777, 0.0
    %vm4034 = vcmp.ge.f32.partialorder %v3778, 0.0
    %vm4035 = vcmp.ge.f32.partialorder %v3779, 0.0
    %vm4036 = vcmp.ge.f32.partialorder %v3780, 0.0
    %vm4037 = vcmp.ge.f32.partialorder %v3781, 0.0
    %vm4038 = vcmp.ge.f32.partialorder %v3782, 0.0
    %vm4039 = vcmp.ge.f32.partialorder %v3783, 0.0
    %vm4040 = vcmp.ge.f32.partialorder %v3784, 0.0
    %vm4041 = vcmp.ge.f32.partialorder %v3785, 0.0
    %vm4042 = vcmp.ge.f32.partialorder %v3786, 0.0
    %vm4043 = vcmp.ge.f32.partialorder %v3787, 0.0
    %vm4044 = vcmp.ge.f32.partialorder %v3788, 0.0
    %v4045 = vperm.slane %v274, 3
    %v4046 = vmul.f32 %v4045, %v3533
    %v4047 = vmul.f32 %v4045, %v3534
    %v4048 = vmul.f32 %v4045, %v3535
    %v4049 = vmul.f32 %v4045, %v3536
    %v4050 = vmul.f32 %v4045, %v3537
    %v4051 = vmul.f32 %v4045, %v3538
    %v4052 = vmul.f32 %v4045, %v3539
    %v4053 = vmul.f32 %v4045, %v3540
    %v4054 = vmul.f32 %v4045, %v3541
    %v4055 = vmul.f32 %v4045, %v3542
    %v4056 = vmul.f32 %v4045, %v3543
    %v4057 = vmul.f32 %v4045, %v3544
    %v4058 = vmul.f32 %v4045, %v3545
    %v4059 = vmul.f32 %v4045, %v3546
    %v4060 = vmul.f32 %v4045, %v3547
    %v4061 = vmul.f32 %v4045, %v3548
    %v4062 = vmul.f32 %v4045, %v3549
    %v4063 = vmul.f32 %v4045, %v3550
    %v4064 = vmul.f32 %v4045, %v3551
    %v4065 = vmul.f32 %v4045, %v3552
    %v4066 = vmul.f32 %v4045, %v3553
    %v4067 = vmul.f32 %v4045, %v3554
    %v4068 = vmul.f32 %v4045, %v3555
    %v4069 = vmul.f32 %v4045, %v3556
    %v4070 = vmul.f32 %v4045, %v3557
    %v4071 = vmul.f32 %v4045, %v3558
    %v4072 = vmul.f32 %v4045, %v3559
    %v4073 = vmul.f32 %v4045, %v3560
    %v4074 = vmul.f32 %v4045, %v3561
    %v4075 = vmul.f32 %v4045, %v3562
    %v4076 = vmul.f32 %v4045, %v3563
    %v4077 = vmul.f32 %v4045, %v3564
    %v4078 = vmul.f32 %v4045, %v3565
    %v4079 = vmul.f32 %v4045, %v3566
    %v4080 = vmul.f32 %v4045, %v3567
    %v4081 = vmul.f32 %v4045, %v3568
    %v4082 = vmul.f32 %v4045, %v3569
    %v4083 = vmul.f32 %v4045, %v3570
    %v4084 = vmul.f32 %v4045, %v3571
    %v4085 = vmul.f32 %v4045, %v3572
    %v4086 = vmul.f32 %v4045, %v3573
    %v4087 = vmul.f32 %v4045, %v3574
    %v4088 = vmul.f32 %v4045, %v3575
    %v4089 = vmul.f32 %v4045, %v3576
    %v4090 = vmul.f32 %v4045, %v3577
    %v4091 = vmul.f32 %v4045, %v3578
    %v4092 = vmul.f32 %v4045, %v3579
    %v4093 = vmul.f32 %v4045, %v3580
    %v4094 = vmul.f32 %v4045, %v3581
    %v4095 = vmul.f32 %v4045, %v3582
    %v4096 = vmul.f32 %v4045, %v3583
    %v4097 = vmul.f32 %v4045, %v3584
    %v4098 = vmul.f32 %v4045, %v3585
    %v4099 = vmul.f32 %v4045, %v3586
    %v4100 = vmul.f32 %v4045, %v3587
    %v4101 = vmul.f32 %v4045, %v3588
    %v4102 = vmul.f32 %v4045, %v3589
    %v4103 = vmul.f32 %v4045, %v3590
    %v4104 = vmul.f32 %v4045, %v3591
    %v4105 = vmul.f32 %v4045, %v3592
    %v4106 = vmul.f32 %v4045, %v3593
    %v4107 = vmul.f32 %v4045, %v3594
    %v4108 = vmul.f32 %v4045, %v3595
    %v4109 = vmul.f32 %v4045, %v3596
    %v4110 = vmul.f32 %v4045, %v3597
    %v4111 = vmul.f32 %v4045, %v3598
    %v4112 = vmul.f32 %v4045, %v3599
    %v4113 = vmul.f32 %v4045, %v3600
    %v4114 = vmul.f32 %v4045, %v3601
    %v4115 = vmul.f32 %v4045, %v3602
    %v4116 = vmul.f32 %v4045, %v3603
    %v4117 = vmul.f32 %v4045, %v3604
    %v4118 = vmul.f32 %v4045, %v3605
    %v4119 = vmul.f32 %v4045, %v3606
    %v4120 = vmul.f32 %v4045, %v3607
    %v4121 = vmul.f32 %v4045, %v3608
    %v4122 = vmul.f32 %v4045, %v3609
    %v4123 = vmul.f32 %v4045, %v3610
    %v4124 = vmul.f32 %v4045, %v3611
    %v4125 = vmul.f32 %v4045, %v3612
    %v4126 = vmul.f32 %v4045, %v3613
    %v4127 = vmul.f32 %v4045, %v3614
    %v4128 = vmul.f32 %v4045, %v3615
    %v4129 = vmul.f32 %v4045, %v3616
    %v4130 = vmul.f32 %v4045, %v3617
    %v4131 = vmul.f32 %v4045, %v3618
    %v4132 = vmul.f32 %v4045, %v3619
    %v4133 = vmul.f32 %v4045, %v3620
    %v4134 = vmul.f32 %v4045, %v3621
    %v4135 = vmul.f32 %v4045, %v3622
    %v4136 = vmul.f32 %v4045, %v3623
    %v4137 = vmul.f32 %v4045, %v3624
    %v4138 = vmul.f32 %v4045, %v3625
    %v4139 = vmul.f32 %v4045, %v3626
    %v4140 = vmul.f32 %v4045, %v3627
    %v4141 = vmul.f32 %v4045, %v3628
    %v4142 = vmul.f32 %v4045, %v3629
    %v4143 = vmul.f32 %v4045, %v3630
    %v4144 = vmul.f32 %v4045, %v3631
    %v4145 = vmul.f32 %v4045, %v3632
    %v4146 = vmul.f32 %v4045, %v3633
    %v4147 = vmul.f32 %v4045, %v3634
    %v4148 = vmul.f32 %v4045, %v3635
    %v4149 = vmul.f32 %v4045, %v3636
    %v4150 = vmul.f32 %v4045, %v3637
    %v4151 = vmul.f32 %v4045, %v3638
    %v4152 = vmul.f32 %v4045, %v3639
    %v4153 = vmul.f32 %v4045, %v3640
    %v4154 = vmul.f32 %v4045, %v3641
    %v4155 = vmul.f32 %v4045, %v3642
    %v4156 = vmul.f32 %v4045, %v3643
    %v4157 = vmul.f32 %v4045, %v3644
    %v4158 = vmul.f32 %v4045, %v3645
    %v4159 = vmul.f32 %v4045, %v3646
    %v4160 = vmul.f32 %v4045, %v3647
    %v4161 = vmul.f32 %v4045, %v3648
    %v4162 = vmul.f32 %v4045, %v3649
    %v4163 = vmul.f32 %v4045, %v3650
    %v4164 = vmul.f32 %v4045, %v3651
    %v4165 = vmul.f32 %v4045, %v3652
    %v4166 = vmul.f32 %v4045, %v3653
    %v4167 = vmul.f32 %v4045, %v3654
    %v4168 = vmul.f32 %v4045, %v3655
    %v4169 = vmul.f32 %v4045, %v3656
    %v4170 = vmul.f32 %v4045, %v3657
    %v4171 = vmul.f32 %v4045, %v3658
    %v4172 = vmul.f32 %v4045, %v3659
    %v4173 = vmul.f32 %v4045, %v3660
    %v4174 = vmul.f32 %v4045, %v3661
    %v4175 = vmul.f32 %v4045, %v3662
    %v4176 = vmul.f32 %v4045, %v3663
    %v4177 = vmul.f32 %v4045, %v3664
    %v4178 = vmul.f32 %v4045, %v3665
    %v4179 = vmul.f32 %v4045, %v3666
    %v4180 = vmul.f32 %v4045, %v3667
    %v4181 = vmul.f32 %v4045, %v3668
    %v4182 = vmul.f32 %v4045, %v3669
    %v4183 = vmul.f32 %v4045, %v3670
    %v4184 = vmul.f32 %v4045, %v3671
    %v4185 = vmul.f32 %v4045, %v3672
    %v4186 = vmul.f32 %v4045, %v3673
    %v4187 = vmul.f32 %v4045, %v3674
    %v4188 = vmul.f32 %v4045, %v3675
    %v4189 = vmul.f32 %v4045, %v3676
    %v4190 = vmul.f32 %v4045, %v3677
    %v4191 = vmul.f32 %v4045, %v3678
    %v4192 = vmul.f32 %v4045, %v3679
    %v4193 = vmul.f32 %v4045, %v3680
    %v4194 = vmul.f32 %v4045, %v3681
    %v4195 = vmul.f32 %v4045, %v3682
    %v4196 = vmul.f32 %v4045, %v3683
    %v4197 = vmul.f32 %v4045, %v3684
    %v4198 = vmul.f32 %v4045, %v3685
    %v4199 = vmul.f32 %v4045, %v3686
    %v4200 = vmul.f32 %v4045, %v3687
    %v4201 = vmul.f32 %v4045, %v3688
    %v4202 = vmul.f32 %v4045, %v3689
    %v4203 = vmul.f32 %v4045, %v3690
    %v4204 = vmul.f32 %v4045, %v3691
    %v4205 = vmul.f32 %v4045, %v3692
    %v4206 = vmul.f32 %v4045, %v3693
    %v4207 = vmul.f32 %v4045, %v3694
    %v4208 = vmul.f32 %v4045, %v3695
    %v4209 = vmul.f32 %v4045, %v3696
    %v4210 = vmul.f32 %v4045, %v3697
    %v4211 = vmul.f32 %v4045, %v3698
    %v4212 = vmul.f32 %v4045, %v3699
    %v4213 = vmul.f32 %v4045, %v3700
    %v4214 = vmul.f32 %v4045, %v3701
    %v4215 = vmul.f32 %v4045, %v3702
    %v4216 = vmul.f32 %v4045, %v3703
    %v4217 = vmul.f32 %v4045, %v3704
    %v4218 = vmul.f32 %v4045, %v3705
    %v4219 = vmul.f32 %v4045, %v3706
    %v4220 = vmul.f32 %v4045, %v3707
    %v4221 = vmul.f32 %v4045, %v3708
    %v4222 = vmul.f32 %v4045, %v3709
    %v4223 = vmul.f32 %v4045, %v3710
    %v4224 = vmul.f32 %v4045, %v3711
    %v4225 = vmul.f32 %v4045, %v3712
    %v4226 = vmul.f32 %v4045, %v3713
    %v4227 = vmul.f32 %v4045, %v3714
    %v4228 = vmul.f32 %v4045, %v3715
    %v4229 = vmul.f32 %v4045, %v3716
    %v4230 = vmul.f32 %v4045, %v3717
    %v4231 = vmul.f32 %v4045, %v3718
    %v4232 = vmul.f32 %v4045, %v3719
    %v4233 = vmul.f32 %v4045, %v3720
    %v4234 = vmul.f32 %v4045, %v3721
    %v4235 = vmul.f32 %v4045, %v3722
    %v4236 = vmul.f32 %v4045, %v3723
    %v4237 = vmul.f32 %v4045, %v3724
    %v4238 = vmul.f32 %v4045, %v3725
    %v4239 = vmul.f32 %v4045, %v3726
    %v4240 = vmul.f32 %v4045, %v3727
    %v4241 = vmul.f32 %v4045, %v3728
    %v4242 = vmul.f32 %v4045, %v3729
    %v4243 = vmul.f32 %v4045, %v3730
    %v4244 = vmul.f32 %v4045, %v3731
    %v4245 = vmul.f32 %v4045, %v3732
    %v4246 = vmul.f32 %v4045, %v3733
    %v4247 = vmul.f32 %v4045, %v3734
    %v4248 = vmul.f32 %v4045, %v3735
    %v4249 = vmul.f32 %v4045, %v3736
    %v4250 = vmul.f32 %v4045, %v3737
    %v4251 = vmul.f32 %v4045, %v3738
    %v4252 = vmul.f32 %v4045, %v3739
    %v4253 = vmul.f32 %v4045, %v3740
    %v4254 = vmul.f32 %v4045, %v3741
    %v4255 = vmul.f32 %v4045, %v3742
    %v4256 = vmul.f32 %v4045, %v3743
    %v4257 = vmul.f32 %v4045, %v3744
    %v4258 = vmul.f32 %v4045, %v3745
    %v4259 = vmul.f32 %v4045, %v3746
    %v4260 = vmul.f32 %v4045, %v3747
    %v4261 = vmul.f32 %v4045, %v3748
    %v4262 = vmul.f32 %v4045, %v3749
    %v4263 = vmul.f32 %v4045, %v3750
    %v4264 = vmul.f32 %v4045, %v3751
    %v4265 = vmul.f32 %v4045, %v3752
    %v4266 = vmul.f32 %v4045, %v3753
    %v4267 = vmul.f32 %v4045, %v3754
    %v4268 = vmul.f32 %v4045, %v3755
    %v4269 = vmul.f32 %v4045, %v3756
    %v4270 = vmul.f32 %v4045, %v3757
    %v4271 = vmul.f32 %v4045, %v3758
    %v4272 = vmul.f32 %v4045, %v3759
    %v4273 = vmul.f32 %v4045, %v3760
    %v4274 = vmul.f32 %v4045, %v3761
    %v4275 = vmul.f32 %v4045, %v3762
    %v4276 = vmul.f32 %v4045, %v3763
    %v4277 = vmul.f32 %v4045, %v3764
    %v4278 = vmul.f32 %v4045, %v3765
    %v4279 = vmul.f32 %v4045, %v3766
    %v4280 = vmul.f32 %v4045, %v3767
    %v4281 = vmul.f32 %v4045, %v3768
    %v4282 = vmul.f32 %v4045, %v3769
    %v4283 = vmul.f32 %v4045, %v3770
    %v4284 = vmul.f32 %v4045, %v3771
    %v4285 = vmul.f32 %v4045, %v3772
    %v4286 = vmul.f32 %v4045, %v3773
    %v4287 = vmul.f32 %v4045, %v3774
    %v4288 = vmul.f32 %v4045, %v3775
    %v4289 = vmul.f32 %v4045, %v3776
    %v4290 = vmul.f32 %v4045, %v3777
    %v4291 = vmul.f32 %v4045, %v3778
    %v4292 = vmul.f32 %v4045, %v3779
    %v4293 = vmul.f32 %v4045, %v3780
    %v4294 = vmul.f32 %v4045, %v3781
    %v4295 = vmul.f32 %v4045, %v3782
    %v4296 = vmul.f32 %v4045, %v3783
    %v4297 = vmul.f32 %v4045, %v3784
    %v4298 = vmul.f32 %v4045, %v3785
    %v4299 = vmul.f32 %v4045, %v3786
    %v4300 = vmul.f32 %v4045, %v3787
    %v4301 = vmul.f32 %v4045, %v3788
    %v4302 = vsel %vm3789, %v3533, %v4046
    %v4303 = vsel %vm3790, %v3534, %v4047
    %v4304 = vsel %vm3791, %v3535, %v4048
    %v4305 = vsel %vm3792, %v3536, %v4049
    %v4306 = vsel %vm3793, %v3537, %v4050
    %v4307 = vsel %vm3794, %v3538, %v4051
    %v4308 = vsel %vm3795, %v3539, %v4052
    %v4309 = vsel %vm3796, %v3540, %v4053
    %v4310 = vsel %vm3797, %v3541, %v4054
    %v4311 = vsel %vm3798, %v3542, %v4055
    %v4312 = vsel %vm3799, %v3543, %v4056
    %v4313 = vsel %vm3800, %v3544, %v4057
    %v4314 = vsel %vm3801, %v3545, %v4058
    %v4315 = vsel %vm3802, %v3546, %v4059
    %v4316 = vsel %vm3803, %v3547, %v4060
    %v4317 = vsel %vm3804, %v3548, %v4061
    %v4318 = vsel %vm3805, %v3549, %v4062
    %v4319 = vsel %vm3806, %v3550, %v4063
    %v4320 = vsel %vm3807, %v3551, %v4064
    %v4321 = vsel %vm3808, %v3552, %v4065
    %v4322 = vsel %vm3809, %v3553, %v4066
    %v4323 = vsel %vm3810, %v3554, %v4067
    %v4324 = vsel %vm3811, %v3555, %v4068
    %v4325 = vsel %vm3812, %v3556, %v4069
    %v4326 = vsel %vm3813, %v3557, %v4070
    %v4327 = vsel %vm3814, %v3558, %v4071
    %v4328 = vsel %vm3815, %v3559, %v4072
    %v4329 = vsel %vm3816, %v3560, %v4073
    %v4330 = vsel %vm3817, %v3561, %v4074
    %v4331 = vsel %vm3818, %v3562, %v4075
    %v4332 = vsel %vm3819, %v3563, %v4076
    %v4333 = vsel %vm3820, %v3564, %v4077
    %v4334 = vsel %vm3821, %v3565, %v4078
    %v4335 = vsel %vm3822, %v3566, %v4079
    %v4336 = vsel %vm3823, %v3567, %v4080
    %v4337 = vsel %vm3824, %v3568, %v4081
    %v4338 = vsel %vm3825, %v3569, %v4082
    %v4339 = vsel %vm3826, %v3570, %v4083
    %v4340 = vsel %vm3827, %v3571, %v4084
    %v4341 = vsel %vm3828, %v3572, %v4085
    %v4342 = vsel %vm3829, %v3573, %v4086
    %v4343 = vsel %vm3830, %v3574, %v4087
    %v4344 = vsel %vm3831, %v3575, %v4088
    %v4345 = vsel %vm3832, %v3576, %v4089
    %v4346 = vsel %vm3833, %v3577, %v4090
    %v4347 = vsel %vm3834, %v3578, %v4091
    %v4348 = vsel %vm3835, %v3579, %v4092
    %v4349 = vsel %vm3836, %v3580, %v4093
    %v4350 = vsel %vm3837, %v3581, %v4094
    %v4351 = vsel %vm3838, %v3582, %v4095
    %v4352 = vsel %vm3839, %v3583, %v4096
    %v4353 = vsel %vm3840, %v3584, %v4097
    %v4354 = vsel %vm3841, %v3585, %v4098
    %v4355 = vsel %vm3842, %v3586, %v4099
    %v4356 = vsel %vm3843, %v3587, %v4100
    %v4357 = vsel %vm3844, %v3588, %v4101
    %v4358 = vsel %vm3845, %v3589, %v4102
    %v4359 = vsel %vm3846, %v3590, %v4103
    %v4360 = vsel %vm3847, %v3591, %v4104
    %v4361 = vsel %vm3848, %v3592, %v4105
    %v4362 = vsel %vm3849, %v3593, %v4106
    %v4363 = vsel %vm3850, %v3594, %v4107
    %v4364 = vsel %vm3851, %v3595, %v4108
    %v4365 = vsel %vm3852, %v3596, %v4109
    %v4366 = vsel %vm3853, %v3597, %v4110
    %v4367 = vsel %vm3854, %v3598, %v4111
    %v4368 = vsel %vm3855, %v3599, %v4112
    %v4369 = vsel %vm3856, %v3600, %v4113
    %v4370 = vsel %vm3857, %v3601, %v4114
    %v4371 = vsel %vm3858, %v3602, %v4115
    %v4372 = vsel %vm3859, %v3603, %v4116
    %v4373 = vsel %vm3860, %v3604, %v4117
    %v4374 = vsel %vm3861, %v3605, %v4118
    %v4375 = vsel %vm3862, %v3606, %v4119
    %v4376 = vsel %vm3863, %v3607, %v4120
    %v4377 = vsel %vm3864, %v3608, %v4121
    %v4378 = vsel %vm3865, %v3609, %v4122
    %v4379 = vsel %vm3866, %v3610, %v4123
    %v4380 = vsel %vm3867, %v3611, %v4124
    %v4381 = vsel %vm3868, %v3612, %v4125
    %v4382 = vsel %vm3869, %v3613, %v4126
    %v4383 = vsel %vm3870, %v3614, %v4127
    %v4384 = vsel %vm3871, %v3615, %v4128
    %v4385 = vsel %vm3872, %v3616, %v4129
    %v4386 = vsel %vm3873, %v3617, %v4130
    %v4387 = vsel %vm3874, %v3618, %v4131
    %v4388 = vsel %vm3875, %v3619, %v4132
    %v4389 = vsel %vm3876, %v3620, %v4133
    %v4390 = vsel %vm3877, %v3621, %v4134
    %v4391 = vsel %vm3878, %v3622, %v4135
    %v4392 = vsel %vm3879, %v3623, %v4136
    %v4393 = vsel %vm3880, %v3624, %v4137
    %v4394 = vsel %vm3881, %v3625, %v4138
    %v4395 = vsel %vm3882, %v3626, %v4139
    %v4396 = vsel %vm3883, %v3627, %v4140
    %v4397 = vsel %vm3884, %v3628, %v4141
    %v4398 = vsel %vm3885, %v3629, %v4142
    %v4399 = vsel %vm3886, %v3630, %v4143
    %v4400 = vsel %vm3887, %v3631, %v4144
    %v4401 = vsel %vm3888, %v3632, %v4145
    %v4402 = vsel %vm3889, %v3633, %v4146
    %v4403 = vsel %vm3890, %v3634, %v4147
    %v4404 = vsel %vm3891, %v3635, %v4148
    %v4405 = vsel %vm3892, %v3636, %v4149
    %v4406 = vsel %vm3893, %v3637, %v4150
    %v4407 = vsel %vm3894, %v3638, %v4151
    %v4408 = vsel %vm3895, %v3639, %v4152
    %v4409 = vsel %vm3896, %v3640, %v4153
    %v4410 = vsel %vm3897, %v3641, %v4154
    %v4411 = vsel %vm3898, %v3642, %v4155
    %v4412 = vsel %vm3899, %v3643, %v4156
    %v4413 = vsel %vm3900, %v3644, %v4157
    %v4414 = vsel %vm3901, %v3645, %v4158
    %v4415 = vsel %vm3902, %v3646, %v4159
    %v4416 = vsel %vm3903, %v3647, %v4160
    %v4417 = vsel %vm3904, %v3648, %v4161
    %v4418 = vsel %vm3905, %v3649, %v4162
    %v4419 = vsel %vm3906, %v3650, %v4163
    %v4420 = vsel %vm3907, %v3651, %v4164
    %v4421 = vsel %vm3908, %v3652, %v4165
    %v4422 = vsel %vm3909, %v3653, %v4166
    %v4423 = vsel %vm3910, %v3654, %v4167
    %v4424 = vsel %vm3911, %v3655, %v4168
    %v4425 = vsel %vm3912, %v3656, %v4169
    %v4426 = vsel %vm3913, %v3657, %v4170
    %v4427 = vsel %vm3914, %v3658, %v4171
    %v4428 = vsel %vm3915, %v3659, %v4172
    %v4429 = vsel %vm3916, %v3660, %v4173
    %v4430 = vsel %vm3917, %v3661, %v4174
    %v4431 = vsel %vm3918, %v3662, %v4175
    %v4432 = vsel %vm3919, %v3663, %v4176
    %v4433 = vsel %vm3920, %v3664, %v4177
    %v4434 = vsel %vm3921, %v3665, %v4178
    %v4435 = vsel %vm3922, %v3666, %v4179
    %v4436 = vsel %vm3923, %v3667, %v4180
    %v4437 = vsel %vm3924, %v3668, %v4181
    %v4438 = vsel %vm3925, %v3669, %v4182
    %v4439 = vsel %vm3926, %v3670, %v4183
    %v4440 = vsel %vm3927, %v3671, %v4184
    %v4441 = vsel %vm3928, %v3672, %v4185
    %v4442 = vsel %vm3929, %v3673, %v4186
    %v4443 = vsel %vm3930, %v3674, %v4187
    %v4444 = vsel %vm3931, %v3675, %v4188
    %v4445 = vsel %vm3932, %v3676, %v4189
    %v4446 = vsel %vm3933, %v3677, %v4190
    %v4447 = vsel %vm3934, %v3678, %v4191
    %v4448 = vsel %vm3935, %v3679, %v4192
    %v4449 = vsel %vm3936, %v3680, %v4193
    %v4450 = vsel %vm3937, %v3681, %v4194
    %v4451 = vsel %vm3938, %v3682, %v4195
    %v4452 = vsel %vm3939, %v3683, %v4196
    %v4453 = vsel %vm3940, %v3684, %v4197
    %v4454 = vsel %vm3941, %v3685, %v4198
    %v4455 = vsel %vm3942, %v3686, %v4199
    %v4456 = vsel %vm3943, %v3687, %v4200
    %v4457 = vsel %vm3944, %v3688, %v4201
    %v4458 = vsel %vm3945, %v3689, %v4202
    %v4459 = vsel %vm3946, %v3690, %v4203
    %v4460 = vsel %vm3947, %v3691, %v4204
    %v4461 = vsel %vm3948, %v3692, %v4205
    %v4462 = vsel %vm3949, %v3693, %v4206
    %v4463 = vsel %vm3950, %v3694, %v4207
    %v4464 = vsel %vm3951, %v3695, %v4208
    %v4465 = vsel %vm3952, %v3696, %v4209
    %v4466 = vsel %vm3953, %v3697, %v4210
    %v4467 = vsel %vm3954, %v3698, %v4211
    %v4468 = vsel %vm3955, %v3699, %v4212
    %v4469 = vsel %vm3956, %v3700, %v4213
    %v4470 = vsel %vm3957, %v3701, %v4214
    %v4471 = vsel %vm3958, %v3702, %v4215
    %v4472 = vsel %vm3959, %v3703, %v4216
    %v4473 = vsel %vm3960, %v3704, %v4217
    %v4474 = vsel %vm3961, %v3705, %v4218
    %v4475 = vsel %vm3962, %v3706, %v4219
    %v4476 = vsel %vm3963, %v3707, %v4220
    %v4477 = vsel %vm3964, %v3708, %v4221
    %v4478 = vsel %vm3965, %v3709, %v4222
    %v4479 = vsel %vm3966, %v3710, %v4223
    %v4480 = vsel %vm3967, %v3711, %v4224
    %v4481 = vsel %vm3968, %v3712, %v4225
    %v4482 = vsel %vm3969, %v3713, %v4226
    %v4483 = vsel %vm3970, %v3714, %v4227
    %v4484 = vsel %vm3971, %v3715, %v4228
    %v4485 = vsel %vm3972, %v3716, %v4229
    %v4486 = vsel %vm3973, %v3717, %v4230
    %v4487 = vsel %vm3974, %v3718, %v4231
    %v4488 = vsel %vm3975, %v3719, %v4232
    %v4489 = vsel %vm3976, %v3720, %v4233
    %v4490 = vsel %vm3977, %v3721, %v4234
    %v4491 = vsel %vm3978, %v3722, %v4235
    %v4492 = vsel %vm3979, %v3723, %v4236
    %v4493 = vsel %vm3980, %v3724, %v4237
    %v4494 = vsel %vm3981, %v3725, %v4238
    %v4495 = vsel %vm3982, %v3726, %v4239
    %v4496 = vsel %vm3983, %v3727, %v4240
    %v4497 = vsel %vm3984, %v3728, %v4241
    %v4498 = vsel %vm3985, %v3729, %v4242
    %v4499 = vsel %vm3986, %v3730, %v4243
    %v4500 = vsel %vm3987, %v3731, %v4244
    %v4501 = vsel %vm3988, %v3732, %v4245
    %v4502 = vsel %vm3989, %v3733, %v4246
    %v4503 = vsel %vm3990, %v3734, %v4247
    %v4504 = vsel %vm3991, %v3735, %v4248
    %v4505 = vsel %vm3992, %v3736, %v4249
    %v4506 = vsel %vm3993, %v3737, %v4250
    %v4507 = vsel %vm3994, %v3738, %v4251
    %v4508 = vsel %vm3995, %v3739, %v4252
    %v4509 = vsel %vm3996, %v3740, %v4253
    %v4510 = vsel %vm3997, %v3741, %v4254
    %v4511 = vsel %vm3998, %v3742, %v4255
    %v4512 = vsel %vm3999, %v3743, %v4256
    %v4513 = vsel %vm4000, %v3744, %v4257
    %v4514 = vsel %vm4001, %v3745, %v4258
    %v4515 = vsel %vm4002, %v3746, %v4259
    %v4516 = vsel %vm4003, %v3747, %v4260
    %v4517 = vsel %vm4004, %v3748, %v4261
    %v4518 = vsel %vm4005, %v3749, %v4262
    %v4519 = vsel %vm4006, %v3750, %v4263
    %v4520 = vsel %vm4007, %v3751, %v4264
    %v4521 = vsel %vm4008, %v3752, %v4265
    %v4522 = vsel %vm4009, %v3753, %v4266
    %v4523 = vsel %vm4010, %v3754, %v4267
    %v4524 = vsel %vm4011, %v3755, %v4268
    %v4525 = vsel %vm4012, %v3756, %v4269
    %v4526 = vsel %vm4013, %v3757, %v4270
    %v4527 = vsel %vm4014, %v3758, %v4271
    %v4528 = vsel %vm4015, %v3759, %v4272
    %v4529 = vsel %vm4016, %v3760, %v4273
    %v4530 = vsel %vm4017, %v3761, %v4274
    %v4531 = vsel %vm4018, %v3762, %v4275
    %v4532 = vsel %vm4019, %v3763, %v4276
    %v4533 = vsel %vm4020, %v3764, %v4277
    %v4534 = vsel %vm4021, %v3765, %v4278
    %v4535 = vsel %vm4022, %v3766, %v4279
    %v4536 = vsel %vm4023, %v3767, %v4280
    %v4537 = vsel %vm4024, %v3768, %v4281
    %v4538 = vsel %vm4025, %v3769, %v4282
    %v4539 = vsel %vm4026, %v3770, %v4283
    %v4540 = vsel %vm4027, %v3771, %v4284
    %v4541 = vsel %vm4028, %v3772, %v4285
    %v4542 = vsel %vm4029, %v3773, %v4286
    %v4543 = vsel %vm4030, %v3774, %v4287
    %v4544 = vsel %vm4031, %v3775, %v4288
    %v4545 = vsel %vm4032, %v3776, %v4289
    %v4546 = vsel %vm4033, %v3777, %v4290
    %v4547 = vsel %vm4034, %v3778, %v4291
    %v4548 = vsel %vm4035, %v3779, %v4292
    %v4549 = vsel %vm4036, %v3780, %v4293
    %v4550 = vsel %vm4037, %v3781, %v4294
    %v4551 = vsel %vm4038, %v3782, %v4295
    %v4552 = vsel %vm4039, %v3783, %v4296
    %v4553 = vsel %vm4040, %v3784, %v4297
    %v4554 = vsel %vm4041, %v3785, %v4298
    %v4555 = vsel %vm4042, %v3786, %v4299
    %v4556 = vsel %vm4043, %v3787, %v4300
    %v4557 = vsel %vm4044, %v3788, %v4301
    %v4558 = vpack.c.bf16 %v4302, %v4302
    %v4559 = vpack.c.bf16 %v4303, %v4303
    %v4560 = vpack.c.bf16 %v4304, %v4304
    %v4561 = vpack.c.bf16 %v4305, %v4305
    %v4562 = vpack.c.bf16 %v4306, %v4306
    %v4563 = vpack.c.bf16 %v4307, %v4307
    %v4564 = vpack.c.bf16 %v4308, %v4308
    %v4565 = vpack.c.bf16 %v4309, %v4309
    %v4566 = vpack.c.bf16 %v4310, %v4310
    %v4567 = vpack.c.bf16 %v4311, %v4311
    %v4568 = vpack.c.bf16 %v4312, %v4312
    %v4569 = vpack.c.bf16 %v4313, %v4313
    %v4570 = vpack.c.bf16 %v4314, %v4314
    %v4571 = vpack.c.bf16 %v4315, %v4315
    %v4572 = vpack.c.bf16 %v4316, %v4316
    %v4573 = vpack.c.bf16 %v4317, %v4317
    %v4574 = vpack.c.bf16 %v4318, %v4318
    %v4575 = vpack.c.bf16 %v4319, %v4319
    %v4576 = vpack.c.bf16 %v4320, %v4320
    %v4577 = vpack.c.bf16 %v4321, %v4321
    %v4578 = vpack.c.bf16 %v4322, %v4322
    %v4579 = vpack.c.bf16 %v4323, %v4323
    %v4580 = vpack.c.bf16 %v4324, %v4324
    %v4581 = vpack.c.bf16 %v4325, %v4325
    %v4582 = vpack.c.bf16 %v4326, %v4326
    %v4583 = vpack.c.bf16 %v4327, %v4327
    %v4584 = vpack.c.bf16 %v4328, %v4328
    %v4585 = vpack.c.bf16 %v4329, %v4329
    %v4586 = vpack.c.bf16 %v4330, %v4330
    %v4587 = vpack.c.bf16 %v4331, %v4331
    %v4588 = vpack.c.bf16 %v4332, %v4332
    %v4589 = vpack.c.bf16 %v4333, %v4333
    %v4590 = vpack.c.bf16 %v4334, %v4334
    %v4591 = vpack.c.bf16 %v4335, %v4335
    %v4592 = vpack.c.bf16 %v4336, %v4336
    %v4593 = vpack.c.bf16 %v4337, %v4337
    %v4594 = vpack.c.bf16 %v4338, %v4338
    %v4595 = vpack.c.bf16 %v4339, %v4339
    %v4596 = vpack.c.bf16 %v4340, %v4340
    %v4597 = vpack.c.bf16 %v4341, %v4341
    %v4598 = vpack.c.bf16 %v4342, %v4342
    %v4599 = vpack.c.bf16 %v4343, %v4343
    %v4600 = vpack.c.bf16 %v4344, %v4344
    %v4601 = vpack.c.bf16 %v4345, %v4345
    %v4602 = vpack.c.bf16 %v4346, %v4346
    %v4603 = vpack.c.bf16 %v4347, %v4347
    %v4604 = vpack.c.bf16 %v4348, %v4348
    %v4605 = vpack.c.bf16 %v4349, %v4349
    %v4606 = vpack.c.bf16 %v4350, %v4350
    %v4607 = vpack.c.bf16 %v4351, %v4351
    %v4608 = vpack.c.bf16 %v4352, %v4352
    %v4609 = vpack.c.bf16 %v4353, %v4353
    %v4610 = vpack.c.bf16 %v4354, %v4354
    %v4611 = vpack.c.bf16 %v4355, %v4355
    %v4612 = vpack.c.bf16 %v4356, %v4356
    %v4613 = vpack.c.bf16 %v4357, %v4357
    %v4614 = vpack.c.bf16 %v4358, %v4358
    %v4615 = vpack.c.bf16 %v4359, %v4359
    %v4616 = vpack.c.bf16 %v4360, %v4360
    %v4617 = vpack.c.bf16 %v4361, %v4361
    %v4618 = vpack.c.bf16 %v4362, %v4362
    %v4619 = vpack.c.bf16 %v4363, %v4363
    %v4620 = vpack.c.bf16 %v4364, %v4364
    %v4621 = vpack.c.bf16 %v4365, %v4365
    %v4622 = vpack.c.bf16 %v4366, %v4366
    %v4623 = vpack.c.bf16 %v4367, %v4367
    %v4624 = vpack.c.bf16 %v4368, %v4368
    %v4625 = vpack.c.bf16 %v4369, %v4369
    %v4626 = vpack.c.bf16 %v4370, %v4370
    %v4627 = vpack.c.bf16 %v4371, %v4371
    %v4628 = vpack.c.bf16 %v4372, %v4372
    %v4629 = vpack.c.bf16 %v4373, %v4373
    %v4630 = vpack.c.bf16 %v4374, %v4374
    %v4631 = vpack.c.bf16 %v4375, %v4375
    %v4632 = vpack.c.bf16 %v4376, %v4376
    %v4633 = vpack.c.bf16 %v4377, %v4377
    %v4634 = vpack.c.bf16 %v4378, %v4378
    %v4635 = vpack.c.bf16 %v4379, %v4379
    %v4636 = vpack.c.bf16 %v4380, %v4380
    %v4637 = vpack.c.bf16 %v4381, %v4381
    %v4638 = vpack.c.bf16 %v4382, %v4382
    %v4639 = vpack.c.bf16 %v4383, %v4383
    %v4640 = vpack.c.bf16 %v4384, %v4384
    %v4641 = vpack.c.bf16 %v4385, %v4385
    %v4642 = vpack.c.bf16 %v4386, %v4386
    %v4643 = vpack.c.bf16 %v4387, %v4387
    %v4644 = vpack.c.bf16 %v4388, %v4388
    %v4645 = vpack.c.bf16 %v4389, %v4389
    %v4646 = vpack.c.bf16 %v4390, %v4390
    %v4647 = vpack.c.bf16 %v4391, %v4391
    %v4648 = vpack.c.bf16 %v4392, %v4392
    %v4649 = vpack.c.bf16 %v4393, %v4393
    %v4650 = vpack.c.bf16 %v4394, %v4394
    %v4651 = vpack.c.bf16 %v4395, %v4395
    %v4652 = vpack.c.bf16 %v4396, %v4396
    %v4653 = vpack.c.bf16 %v4397, %v4397
    %v4654 = vpack.c.bf16 %v4398, %v4398
    %v4655 = vpack.c.bf16 %v4399, %v4399
    %v4656 = vpack.c.bf16 %v4400, %v4400
    %v4657 = vpack.c.bf16 %v4401, %v4401
    %v4658 = vpack.c.bf16 %v4402, %v4402
    %v4659 = vpack.c.bf16 %v4403, %v4403
    %v4660 = vpack.c.bf16 %v4404, %v4404
    %v4661 = vpack.c.bf16 %v4405, %v4405
    %v4662 = vpack.c.bf16 %v4406, %v4406
    %v4663 = vpack.c.bf16 %v4407, %v4407
    %v4664 = vpack.c.bf16 %v4408, %v4408
    %v4665 = vpack.c.bf16 %v4409, %v4409
    %v4666 = vpack.c.bf16 %v4410, %v4410
    %v4667 = vpack.c.bf16 %v4411, %v4411
    %v4668 = vpack.c.bf16 %v4412, %v4412
    %v4669 = vpack.c.bf16 %v4413, %v4413
    %v4670 = vpack.c.bf16 %v4414, %v4414
    %v4671 = vpack.c.bf16 %v4415, %v4415
    %v4672 = vpack.c.bf16 %v4416, %v4416
    %v4673 = vpack.c.bf16 %v4417, %v4417
    %v4674 = vpack.c.bf16 %v4418, %v4418
    %v4675 = vpack.c.bf16 %v4419, %v4419
    %v4676 = vpack.c.bf16 %v4420, %v4420
    %v4677 = vpack.c.bf16 %v4421, %v4421
    %v4678 = vpack.c.bf16 %v4422, %v4422
    %v4679 = vpack.c.bf16 %v4423, %v4423
    %v4680 = vpack.c.bf16 %v4424, %v4424
    %v4681 = vpack.c.bf16 %v4425, %v4425
    %v4682 = vpack.c.bf16 %v4426, %v4426
    %v4683 = vpack.c.bf16 %v4427, %v4427
    %v4684 = vpack.c.bf16 %v4428, %v4428
    %v4685 = vpack.c.bf16 %v4429, %v4429
    %v4686 = vpack.c.bf16 %v4430, %v4430
    %v4687 = vpack.c.bf16 %v4431, %v4431
    %v4688 = vpack.c.bf16 %v4432, %v4432
    %v4689 = vpack.c.bf16 %v4433, %v4433
    %v4690 = vpack.c.bf16 %v4434, %v4434
    %v4691 = vpack.c.bf16 %v4435, %v4435
    %v4692 = vpack.c.bf16 %v4436, %v4436
    %v4693 = vpack.c.bf16 %v4437, %v4437
    %v4694 = vpack.c.bf16 %v4438, %v4438
    %v4695 = vpack.c.bf16 %v4439, %v4439
    %v4696 = vpack.c.bf16 %v4440, %v4440
    %v4697 = vpack.c.bf16 %v4441, %v4441
    %v4698 = vpack.c.bf16 %v4442, %v4442
    %v4699 = vpack.c.bf16 %v4443, %v4443
    %v4700 = vpack.c.bf16 %v4444, %v4444
    %v4701 = vpack.c.bf16 %v4445, %v4445
    %v4702 = vpack.c.bf16 %v4446, %v4446
    %v4703 = vpack.c.bf16 %v4447, %v4447
    %v4704 = vpack.c.bf16 %v4448, %v4448
    %v4705 = vpack.c.bf16 %v4449, %v4449
    %v4706 = vpack.c.bf16 %v4450, %v4450
    %v4707 = vpack.c.bf16 %v4451, %v4451
    %v4708 = vpack.c.bf16 %v4452, %v4452
    %v4709 = vpack.c.bf16 %v4453, %v4453
    %v4710 = vpack.c.bf16 %v4454, %v4454
    %v4711 = vpack.c.bf16 %v4455, %v4455
    %v4712 = vpack.c.bf16 %v4456, %v4456
    %v4713 = vpack.c.bf16 %v4457, %v4457
    %v4714 = vpack.c.bf16 %v4458, %v4458
    %v4715 = vpack.c.bf16 %v4459, %v4459
    %v4716 = vpack.c.bf16 %v4460, %v4460
    %v4717 = vpack.c.bf16 %v4461, %v4461
    %v4718 = vpack.c.bf16 %v4462, %v4462
    %v4719 = vpack.c.bf16 %v4463, %v4463
    %v4720 = vpack.c.bf16 %v4464, %v4464
    %v4721 = vpack.c.bf16 %v4465, %v4465
    %v4722 = vpack.c.bf16 %v4466, %v4466
    %v4723 = vpack.c.bf16 %v4467, %v4467
    %v4724 = vpack.c.bf16 %v4468, %v4468
    %v4725 = vpack.c.bf16 %v4469, %v4469
    %v4726 = vpack.c.bf16 %v4470, %v4470
    %v4727 = vpack.c.bf16 %v4471, %v4471
    %v4728 = vpack.c.bf16 %v4472, %v4472
    %v4729 = vpack.c.bf16 %v4473, %v4473
    %v4730 = vpack.c.bf16 %v4474, %v4474
    %v4731 = vpack.c.bf16 %v4475, %v4475
    %v4732 = vpack.c.bf16 %v4476, %v4476
    %v4733 = vpack.c.bf16 %v4477, %v4477
    %v4734 = vpack.c.bf16 %v4478, %v4478
    %v4735 = vpack.c.bf16 %v4479, %v4479
    %v4736 = vpack.c.bf16 %v4480, %v4480
    %v4737 = vpack.c.bf16 %v4481, %v4481
    %v4738 = vpack.c.bf16 %v4482, %v4482
    %v4739 = vpack.c.bf16 %v4483, %v4483
    %v4740 = vpack.c.bf16 %v4484, %v4484
    %v4741 = vpack.c.bf16 %v4485, %v4485
    %v4742 = vpack.c.bf16 %v4486, %v4486
    %v4743 = vpack.c.bf16 %v4487, %v4487
    %v4744 = vpack.c.bf16 %v4488, %v4488
    %v4745 = vpack.c.bf16 %v4489, %v4489
    %v4746 = vpack.c.bf16 %v4490, %v4490
    %v4747 = vpack.c.bf16 %v4491, %v4491
    %v4748 = vpack.c.bf16 %v4492, %v4492
    %v4749 = vpack.c.bf16 %v4493, %v4493
    %v4750 = vpack.c.bf16 %v4494, %v4494
    %v4751 = vpack.c.bf16 %v4495, %v4495
    %v4752 = vpack.c.bf16 %v4496, %v4496
    %v4753 = vpack.c.bf16 %v4497, %v4497
    %v4754 = vpack.c.bf16 %v4498, %v4498
    %v4755 = vpack.c.bf16 %v4499, %v4499
    %v4756 = vpack.c.bf16 %v4500, %v4500
    %v4757 = vpack.c.bf16 %v4501, %v4501
    %v4758 = vpack.c.bf16 %v4502, %v4502
    %v4759 = vpack.c.bf16 %v4503, %v4503
    %v4760 = vpack.c.bf16 %v4504, %v4504
    %v4761 = vpack.c.bf16 %v4505, %v4505
    %v4762 = vpack.c.bf16 %v4506, %v4506
    %v4763 = vpack.c.bf16 %v4507, %v4507
    %v4764 = vpack.c.bf16 %v4508, %v4508
    %v4765 = vpack.c.bf16 %v4509, %v4509
    %v4766 = vpack.c.bf16 %v4510, %v4510
    %v4767 = vpack.c.bf16 %v4511, %v4511
    %v4768 = vpack.c.bf16 %v4512, %v4512
    %v4769 = vpack.c.bf16 %v4513, %v4513
    %v4770 = vpack.c.bf16 %v4514, %v4514
    %v4771 = vpack.c.bf16 %v4515, %v4515
    %v4772 = vpack.c.bf16 %v4516, %v4516
    %v4773 = vpack.c.bf16 %v4517, %v4517
    %v4774 = vpack.c.bf16 %v4518, %v4518
    %v4775 = vpack.c.bf16 %v4519, %v4519
    %v4776 = vpack.c.bf16 %v4520, %v4520
    %v4777 = vpack.c.bf16 %v4521, %v4521
    %v4778 = vpack.c.bf16 %v4522, %v4522
    %v4779 = vpack.c.bf16 %v4523, %v4523
    %v4780 = vpack.c.bf16 %v4524, %v4524
    %v4781 = vpack.c.bf16 %v4525, %v4525
    %v4782 = vpack.c.bf16 %v4526, %v4526
    %v4783 = vpack.c.bf16 %v4527, %v4527
    %v4784 = vpack.c.bf16 %v4528, %v4528
    %v4785 = vpack.c.bf16 %v4529, %v4529
    %v4786 = vpack.c.bf16 %v4530, %v4530
    %v4787 = vpack.c.bf16 %v4531, %v4531
    %v4788 = vpack.c.bf16 %v4532, %v4532
    %v4789 = vpack.c.bf16 %v4533, %v4533
    %v4790 = vpack.c.bf16 %v4534, %v4534
    %v4791 = vpack.c.bf16 %v4535, %v4535
    %v4792 = vpack.c.bf16 %v4536, %v4536
    %v4793 = vpack.c.bf16 %v4537, %v4537
    %v4794 = vpack.c.bf16 %v4538, %v4538
    %v4795 = vpack.c.bf16 %v4539, %v4539
    %v4796 = vpack.c.bf16 %v4540, %v4540
    %v4797 = vpack.c.bf16 %v4541, %v4541
    %v4798 = vpack.c.bf16 %v4542, %v4542
    %v4799 = vpack.c.bf16 %v4543, %v4543
    %v4800 = vpack.c.bf16 %v4544, %v4544
    %v4801 = vpack.c.bf16 %v4545, %v4545
    %v4802 = vpack.c.bf16 %v4546, %v4546
    %v4803 = vpack.c.bf16 %v4547, %v4547
    %v4804 = vpack.c.bf16 %v4548, %v4548
    %v4805 = vpack.c.bf16 %v4549, %v4549
    %v4806 = vpack.c.bf16 %v4550, %v4550
    %v4807 = vpack.c.bf16 %v4551, %v4551
    %v4808 = vpack.c.bf16 %v4552, %v4552
    %v4809 = vpack.c.bf16 %v4553, %v4553
    %v4810 = vpack.c.bf16 %v4554, %v4554
    %v4811 = vpack.c.bf16 %v4555, %v4555
    %v4812 = vpack.c.bf16 %v4556, %v4556
    %v4813 = vpack.c.bf16 %v4557, %v4557
    %4814 = vst [vmem:[#allocation2] sm:$0xf] %v4558
    %4815 = vst [vmem:[#allocation2 + $0x4] sm:$0xf] %v4559
    %4816 = vst [vmem:[#allocation2 + $0x8] sm:$0xf] %v4560
    %4817 = vst [vmem:[#allocation2 + $0xc] sm:$0xf] %v4561
    %4818 = vst [vmem:[#allocation2 + $0x10] sm:$0xf] %v4562
    %4819 = vst [vmem:[#allocation2 + $0x14] sm:$0xf] %v4563
    %4820 = vst [vmem:[#allocation2 + $0x18] sm:$0xf] %v4564
    %4821 = vst [vmem:[#allocation2 + $0x1c] sm:$0xf] %v4565
    %4822 = vst [vmem:[#allocation2 + $0x20] sm:$0xf] %v4566
    %4823 = vst [vmem:[#allocation2 + $0x24] sm:$0xf] %v4567
    %4824 = vst [vmem:[#allocation2 + $0x28] sm:$0xf] %v4568
    %4825 = vst [vmem:[#allocation2 + $0x2c] sm:$0xf] %v4569
    %4826 = vst [vmem:[#allocation2 + $0x30] sm:$0xf] %v4570
    %4827 = vst [vmem:[#allocation2 + $0x34] sm:$0xf] %v4571
    %4828 = vst [vmem:[#allocation2 + $0x38] sm:$0xf] %v4572
    %4829 = vst [vmem:[#allocation2 + $0x3c] sm:$0xf] %v4573
    %4830 = vst [vmem:[#allocation2 + $0x40] sm:$0xf] %v4574
    %4831 = vst [vmem:[#allocation2 + $0x44] sm:$0xf] %v4575
    %4832 = vst [vmem:[#allocation2 + $0x48] sm:$0xf] %v4576
    %4833 = vst [vmem:[#allocation2 + $0x4c] sm:$0xf] %v4577
    %4834 = vst [vmem:[#allocation2 + $0x50] sm:$0xf] %v4578
    %4835 = vst [vmem:[#allocation2 + $0x54] sm:$0xf] %v4579
    %4836 = vst [vmem:[#allocation2 + $0x58] sm:$0xf] %v4580
    %4837 = vst [vmem:[#allocation2 + $0x5c] sm:$0xf] %v4581
    %4838 = vst [vmem:[#allocation2 + $0x60] sm:$0xf] %v4582
    %4839 = vst [vmem:[#allocation2 + $0x64] sm:$0xf] %v4583
    %4840 = vst [vmem:[#allocation2 + $0x68] sm:$0xf] %v4584
    %4841 = vst [vmem:[#allocation2 + $0x6c] sm:$0xf] %v4585
    %4842 = vst [vmem:[#allocation2 + $0x70] sm:$0xf] %v4586
    %4843 = vst [vmem:[#allocation2 + $0x74] sm:$0xf] %v4587
    %4844 = vst [vmem:[#allocation2 + $0x78] sm:$0xf] %v4588
    %4845 = vst [vmem:[#allocation2 + $0x7c] sm:$0xf] %v4589
    %4846 = vst [vmem:[#allocation2 + $0x80] sm:$0xf] %v4590
    %4847 = vst [vmem:[#allocation2 + $0x84] sm:$0xf] %v4591
    %4848 = vst [vmem:[#allocation2 + $0x88] sm:$0xf] %v4592
    %4849 = vst [vmem:[#allocation2 + $0x8c] sm:$0xf] %v4593
    %4850 = vst [vmem:[#allocation2 + $0x90] sm:$0xf] %v4594
    %4851 = vst [vmem:[#allocation2 + $0x94] sm:$0xf] %v4595
    %4852 = vst [vmem:[#allocation2 + $0x98] sm:$0xf] %v4596
    %4853 = vst [vmem:[#allocation2 + $0x9c] sm:$0xf] %v4597
    %4854 = vst [vmem:[#allocation2 + $0xa0] sm:$0xf] %v4598
    %4855 = vst [vmem:[#allocation2 + $0xa4] sm:$0xf] %v4599
    %4856 = vst [vmem:[#allocation2 + $0xa8] sm:$0xf] %v4600
    %4857 = vst [vmem:[#allocation2 + $0xac] sm:$0xf] %v4601
    %4858 = vst [vmem:[#allocation2 + $0xb0] sm:$0xf] %v4602
    %4859 = vst [vmem:[#allocation2 + $0xb4] sm:$0xf] %v4603
    %4860 = vst [vmem:[#allocation2 + $0xb8] sm:$0xf] %v4604
    %4861 = vst [vmem:[#allocation2 + $0xbc] sm:$0xf] %v4605
    %4862 = vst [vmem:[#allocation2 + $0xc0] sm:$0xf] %v4606
    %4863 = vst [vmem:[#allocation2 + $0xc4] sm:$0xf] %v4607
    %4864 = vst [vmem:[#allocation2 + $0xc8] sm:$0xf] %v4608
    %4865 = vst [vmem:[#allocation2 + $0xcc] sm:$0xf] %v4609
    %4866 = vst [vmem:[#allocation2 + $0xd0] sm:$0xf] %v4610
    %4867 = vst [vmem:[#allocation2 + $0xd4] sm:$0xf] %v4611
    %4868 = vst [vmem:[#allocation2 + $0xd8] sm:$0xf] %v4612
    %4869 = vst [vmem:[#allocation2 + $0xdc] sm:$0xf] %v4613
    %4870 = vst [vmem:[#allocation2 + $0xe0] sm:$0xf] %v4614
    %4871 = vst [vmem:[#allocation2 + $0xe4] sm:$0xf] %v4615
    %4872 = vst [vmem:[#allocation2 + $0xe8] sm:$0xf] %v4616
    %4873 = vst [vmem:[#allocation2 + $0xec] sm:$0xf] %v4617
    %4874 = vst [vmem:[#allocation2 + $0xf0] sm:$0xf] %v4618
    %4875 = vst [vmem:[#allocation2 + $0xf4] sm:$0xf] %v4619
    %4876 = vst [vmem:[#allocation2 + $0xf8] sm:$0xf] %v4620
    %4877 = vst [vmem:[#allocation2 + $0xfc] sm:$0xf] %v4621
    %4878 = vst [vmem:[#allocation2 + $0x100] sm:$0xf] %v4622
    %4879 = vst [vmem:[#allocation2 + $0x104] sm:$0xf] %v4623
    %4880 = vst [vmem:[#allocation2 + $0x108] sm:$0xf] %v4624
    %4881 = vst [vmem:[#allocation2 + $0x10c] sm:$0xf] %v4625
    %4882 = vst [vmem:[#allocation2 + $0x110] sm:$0xf] %v4626
    %4883 = vst [vmem:[#allocation2 + $0x114] sm:$0xf] %v4627
    %4884 = vst [vmem:[#allocation2 + $0x118] sm:$0xf] %v4628
    %4885 = vst [vmem:[#allocation2 + $0x11c] sm:$0xf] %v4629
    %4886 = vst [vmem:[#allocation2 + $0x120] sm:$0xf] %v4630
    %4887 = vst [vmem:[#allocation2 + $0x124] sm:$0xf] %v4631
    %4888 = vst [vmem:[#allocation2 + $0x128] sm:$0xf] %v4632
    %4889 = vst [vmem:[#allocation2 + $0x12c] sm:$0xf] %v4633
    %4890 = vst [vmem:[#allocation2 + $0x130] sm:$0xf] %v4634
    %4891 = vst [vmem:[#allocation2 + $0x134] sm:$0xf] %v4635
    %4892 = vst [vmem:[#allocation2 + $0x138] sm:$0xf] %v4636
    %4893 = vst [vmem:[#allocation2 + $0x13c] sm:$0xf] %v4637
    %4894 = vst [vmem:[#allocation2 + $0x140] sm:$0xf] %v4638
    %4895 = vst [vmem:[#allocation2 + $0x144] sm:$0xf] %v4639
    %4896 = vst [vmem:[#allocation2 + $0x148] sm:$0xf] %v4640
    %4897 = vst [vmem:[#allocation2 + $0x14c] sm:$0xf] %v4641
    %4898 = vst [vmem:[#allocation2 + $0x150] sm:$0xf] %v4642
    %4899 = vst [vmem:[#allocation2 + $0x154] sm:$0xf] %v4643
    %4900 = vst [vmem:[#allocation2 + $0x158] sm:$0xf] %v4644
    %4901 = vst [vmem:[#allocation2 + $0x15c] sm:$0xf] %v4645
    %4902 = vst [vmem:[#allocation2 + $0x160] sm:$0xf] %v4646
    %4903 = vst [vmem:[#allocation2 + $0x164] sm:$0xf] %v4647
    %4904 = vst [vmem:[#allocation2 + $0x168] sm:$0xf] %v4648
    %4905 = vst [vmem:[#allocation2 + $0x16c] sm:$0xf] %v4649
    %4906 = vst [vmem:[#allocation2 + $0x170] sm:$0xf] %v4650
    %4907 = vst [vmem:[#allocation2 + $0x174] sm:$0xf] %v4651
    %4908 = vst [vmem:[#allocation2 + $0x178] sm:$0xf] %v4652
    %4909 = vst [vmem:[#allocation2 + $0x17c] sm:$0xf] %v4653
    %4910 = vst [vmem:[#allocation2 + $0x180] sm:$0xf] %v4654
    %4911 = vst [vmem:[#allocation2 + $0x184] sm:$0xf] %v4655
    %4912 = vst [vmem:[#allocation2 + $0x188] sm:$0xf] %v4656
    %4913 = vst [vmem:[#allocation2 + $0x18c] sm:$0xf] %v4657
    %4914 = vst [vmem:[#allocation2 + $0x190] sm:$0xf] %v4658
    %4915 = vst [vmem:[#allocation2 + $0x194] sm:$0xf] %v4659
    %4916 = vst [vmem:[#allocation2 + $0x198] sm:$0xf] %v4660
    %4917 = vst [vmem:[#allocation2 + $0x19c] sm:$0xf] %v4661
    %4918 = vst [vmem:[#allocation2 + $0x1a0] sm:$0xf] %v4662
    %4919 = vst [vmem:[#allocation2 + $0x1a4] sm:$0xf] %v4663
    %4920 = vst [vmem:[#allocation2 + $0x1a8] sm:$0xf] %v4664
    %4921 = vst [vmem:[#allocation2 + $0x1ac] sm:$0xf] %v4665
    %4922 = vst [vmem:[#allocation2 + $0x1b0] sm:$0xf] %v4666
    %4923 = vst [vmem:[#allocation2 + $0x1b4] sm:$0xf] %v4667
    %4924 = vst [vmem:[#allocation2 + $0x1b8] sm:$0xf] %v4668
    %4925 = vst [vmem:[#allocation2 + $0x1bc] sm:$0xf] %v4669
    %4926 = vst [vmem:[#allocation2 + $0x1c0] sm:$0xf] %v4670
    %4927 = vst [vmem:[#allocation2 + $0x1c4] sm:$0xf] %v4671
    %4928 = vst [vmem:[#allocation2 + $0x1c8] sm:$0xf] %v4672
    %4929 = vst [vmem:[#allocation2 + $0x1cc] sm:$0xf] %v4673
    %4930 = vst [vmem:[#allocation2 + $0x1d0] sm:$0xf] %v4674
    %4931 = vst [vmem:[#allocation2 + $0x1d4] sm:$0xf] %v4675
    %4932 = vst [vmem:[#allocation2 + $0x1d8] sm:$0xf] %v4676
    %4933 = vst [vmem:[#allocation2 + $0x1dc] sm:$0xf] %v4677
    %4934 = vst [vmem:[#allocation2 + $0x1e0] sm:$0xf] %v4678
    %4935 = vst [vmem:[#allocation2 + $0x1e4] sm:$0xf] %v4679
    %4936 = vst [vmem:[#allocation2 + $0x1e8] sm:$0xf] %v4680
    %4937 = vst [vmem:[#allocation2 + $0x1ec] sm:$0xf] %v4681
    %4938 = vst [vmem:[#allocation2 + $0x1f0] sm:$0xf] %v4682
    %4939 = vst [vmem:[#allocation2 + $0x1f4] sm:$0xf] %v4683
    %4940 = vst [vmem:[#allocation2 + $0x1f8] sm:$0xf] %v4684
    %4941 = vst [vmem:[#allocation2 + $0x1fc] sm:$0xf] %v4685
    %4942 = vst [vmem:[#allocation2 + $0x200] sm:$0xf] %v4686
    %4943 = vst [vmem:[#allocation2 + $0x204] sm:$0xf] %v4687
    %4944 = vst [vmem:[#allocation2 + $0x208] sm:$0xf] %v4688
    %4945 = vst [vmem:[#allocation2 + $0x20c] sm:$0xf] %v4689
    %4946 = vst [vmem:[#allocation2 + $0x210] sm:$0xf] %v4690
    %4947 = vst [vmem:[#allocation2 + $0x214] sm:$0xf] %v4691
    %4948 = vst [vmem:[#allocation2 + $0x218] sm:$0xf] %v4692
    %4949 = vst [vmem:[#allocation2 + $0x21c] sm:$0xf] %v4693
    %4950 = vst [vmem:[#allocation2 + $0x220] sm:$0xf] %v4694
    %4951 = vst [vmem:[#allocation2 + $0x224] sm:$0xf] %v4695
    %4952 = vst [vmem:[#allocation2 + $0x228] sm:$0xf] %v4696
    %4953 = vst [vmem:[#allocation2 + $0x22c] sm:$0xf] %v4697
    %4954 = vst [vmem:[#allocation2 + $0x230] sm:$0xf] %v4698
    %4955 = vst [vmem:[#allocation2 + $0x234] sm:$0xf] %v4699
    %4956 = vst [vmem:[#allocation2 + $0x238] sm:$0xf] %v4700
    %4957 = vst [vmem:[#allocation2 + $0x23c] sm:$0xf] %v4701
    %4958 = vst [vmem:[#allocation2 + $0x240] sm:$0xf] %v4702
    %4959 = vst [vmem:[#allocation2 + $0x244] sm:$0xf] %v4703
    %4960 = vst [vmem:[#allocation2 + $0x248] sm:$0xf] %v4704
    %4961 = vst [vmem:[#allocation2 + $0x24c] sm:$0xf] %v4705
    %4962 = vst [vmem:[#allocation2 + $0x250] sm:$0xf] %v4706
    %4963 = vst [vmem:[#allocation2 + $0x254] sm:$0xf] %v4707
    %4964 = vst [vmem:[#allocation2 + $0x258] sm:$0xf] %v4708
    %4965 = vst [vmem:[#allocation2 + $0x25c] sm:$0xf] %v4709
    %4966 = vst [vmem:[#allocation2 + $0x260] sm:$0xf] %v4710
    %4967 = vst [vmem:[#allocation2 + $0x264] sm:$0xf] %v4711
    %4968 = vst [vmem:[#allocation2 + $0x268] sm:$0xf] %v4712
    %4969 = vst [vmem:[#allocation2 + $0x26c] sm:$0xf] %v4713
    %4970 = vst [vmem:[#allocation2 + $0x270] sm:$0xf] %v4714
    %4971 = vst [vmem:[#allocation2 + $0x274] sm:$0xf] %v4715
    %4972 = vst [vmem:[#allocation2 + $0x278] sm:$0xf] %v4716
    %4973 = vst [vmem:[#allocation2 + $0x27c] sm:$0xf] %v4717
    %4974 = vst [vmem:[#allocation2 + $0x280] sm:$0xf] %v4718
    %4975 = vst [vmem:[#allocation2 + $0x284] sm:$0xf] %v4719
    %4976 = vst [vmem:[#allocation2 + $0x288] sm:$0xf] %v4720
    %4977 = vst [vmem:[#allocation2 + $0x28c] sm:$0xf] %v4721
    %4978 = vst [vmem:[#allocation2 + $0x290] sm:$0xf] %v4722
    %4979 = vst [vmem:[#allocation2 + $0x294] sm:$0xf] %v4723
    %4980 = vst [vmem:[#allocation2 + $0x298] sm:$0xf] %v4724
    %4981 = vst [vmem:[#allocation2 + $0x29c] sm:$0xf] %v4725
    %4982 = vst [vmem:[#allocation2 + $0x2a0] sm:$0xf] %v4726
    %4983 = vst [vmem:[#allocation2 + $0x2a4] sm:$0xf] %v4727
    %4984 = vst [vmem:[#allocation2 + $0x2a8] sm:$0xf] %v4728
    %4985 = vst [vmem:[#allocation2 + $0x2ac] sm:$0xf] %v4729
    %4986 = vst [vmem:[#allocation2 + $0x2b0] sm:$0xf] %v4730
    %4987 = vst [vmem:[#allocation2 + $0x2b4] sm:$0xf] %v4731
    %4988 = vst [vmem:[#allocation2 + $0x2b8] sm:$0xf] %v4732
    %4989 = vst [vmem:[#allocation2 + $0x2bc] sm:$0xf] %v4733
    %4990 = vst [vmem:[#allocation2 + $0x2c0] sm:$0xf] %v4734
    %4991 = vst [vmem:[#allocation2 + $0x2c4] sm:$0xf] %v4735
    %4992 = vst [vmem:[#allocation2 + $0x2c8] sm:$0xf] %v4736
    %4993 = vst [vmem:[#allocation2 + $0x2cc] sm:$0xf] %v4737
    %4994 = vst [vmem:[#allocation2 + $0x2d0] sm:$0xf] %v4738
    %4995 = vst [vmem:[#allocation2 + $0x2d4] sm:$0xf] %v4739
    %4996 = vst [vmem:[#allocation2 + $0x2d8] sm:$0xf] %v4740
    %4997 = vst [vmem:[#allocation2 + $0x2dc] sm:$0xf] %v4741
    %4998 = vst [vmem:[#allocation2 + $0x2e0] sm:$0xf] %v4742
    %4999 = vst [vmem:[#allocation2 + $0x2e4] sm:$0xf] %v4743
    %5000 = vst [vmem:[#allocation2 + $0x2e8] sm:$0xf] %v4744
    %5001 = vst [vmem:[#allocation2 + $0x2ec] sm:$0xf] %v4745
    %5002 = vst [vmem:[#allocation2 + $0x2f0] sm:$0xf] %v4746
    %5003 = vst [vmem:[#allocation2 + $0x2f4] sm:$0xf] %v4747
    %5004 = vst [vmem:[#allocation2 + $0x2f8] sm:$0xf] %v4748
    %5005 = vst [vmem:[#allocation2 + $0x2fc] sm:$0xf] %v4749
    %5006 = vst [vmem:[#allocation2 + $0x300] sm:$0xf] %v4750
    %5007 = vst [vmem:[#allocation2 + $0x304] sm:$0xf] %v4751
    %5008 = vst [vmem:[#allocation2 + $0x308] sm:$0xf] %v4752
    %5009 = vst [vmem:[#allocation2 + $0x30c] sm:$0xf] %v4753
    %5010 = vst [vmem:[#allocation2 + $0x310] sm:$0xf] %v4754
    %5011 = vst [vmem:[#allocation2 + $0x314] sm:$0xf] %v4755
    %5012 = vst [vmem:[#allocation2 + $0x318] sm:$0xf] %v4756
    %5013 = vst [vmem:[#allocation2 + $0x31c] sm:$0xf] %v4757
    %5014 = vst [vmem:[#allocation2 + $0x320] sm:$0xf] %v4758
    %5015 = vst [vmem:[#allocation2 + $0x324] sm:$0xf] %v4759
    %5016 = vst [vmem:[#allocation2 + $0x328] sm:$0xf] %v4760
    %5017 = vst [vmem:[#allocation2 + $0x32c] sm:$0xf] %v4761
    %5018 = vst [vmem:[#allocation2 + $0x330] sm:$0xf] %v4762
    %5019 = vst [vmem:[#allocation2 + $0x334] sm:$0xf] %v4763
    %5020 = vst [vmem:[#allocation2 + $0x338] sm:$0xf] %v4764
    %5021 = vst [vmem:[#allocation2 + $0x33c] sm:$0xf] %v4765
    %5022 = vst [vmem:[#allocation2 + $0x340] sm:$0xf] %v4766
    %5023 = vst [vmem:[#allocation2 + $0x344] sm:$0xf] %v4767
    %5024 = vst [vmem:[#allocation2 + $0x348] sm:$0xf] %v4768
    %5025 = vst [vmem:[#allocation2 + $0x34c] sm:$0xf] %v4769
    %5026 = vst [vmem:[#allocation2 + $0x350] sm:$0xf] %v4770
    %5027 = vst [vmem:[#allocation2 + $0x354] sm:$0xf] %v4771
    %5028 = vst [vmem:[#allocation2 + $0x358] sm:$0xf] %v4772
    %5029 = vst [vmem:[#allocation2 + $0x35c] sm:$0xf] %v4773
    %5030 = vst [vmem:[#allocation2 + $0x360] sm:$0xf] %v4774
    %5031 = vst [vmem:[#allocation2 + $0x364] sm:$0xf] %v4775
    %5032 = vst [vmem:[#allocation2 + $0x368] sm:$0xf] %v4776
    %5033 = vst [vmem:[#allocation2 + $0x36c] sm:$0xf] %v4777
    %5034 = vst [vmem:[#allocation2 + $0x370] sm:$0xf] %v4778
    %5035 = vst [vmem:[#allocation2 + $0x374] sm:$0xf] %v4779
    %5036 = vst [vmem:[#allocation2 + $0x378] sm:$0xf] %v4780
    %5037 = vst [vmem:[#allocation2 + $0x37c] sm:$0xf] %v4781
    %5038 = vst [vmem:[#allocation2 + $0x380] sm:$0xf] %v4782
    %5039 = vst [vmem:[#allocation2 + $0x384] sm:$0xf] %v4783
    %5040 = vst [vmem:[#allocation2 + $0x388] sm:$0xf] %v4784
    %5041 = vst [vmem:[#allocation2 + $0x38c] sm:$0xf] %v4785
    %5042 = vst [vmem:[#allocation2 + $0x390] sm:$0xf] %v4786
    %5043 = vst [vmem:[#allocation2 + $0x394] sm:$0xf] %v4787
    %5044 = vst [vmem:[#allocation2 + $0x398] sm:$0xf] %v4788
    %5045 = vst [vmem:[#allocation2 + $0x39c] sm:$0xf] %v4789
    %5046 = vst [vmem:[#allocation2 + $0x3a0] sm:$0xf] %v4790
    %5047 = vst [vmem:[#allocation2 + $0x3a4] sm:$0xf] %v4791
    %5048 = vst [vmem:[#allocation2 + $0x3a8] sm:$0xf] %v4792
    %5049 = vst [vmem:[#allocation2 + $0x3ac] sm:$0xf] %v4793
    %5050 = vst [vmem:[#allocation2 + $0x3b0] sm:$0xf] %v4794
    %5051 = vst [vmem:[#allocation2 + $0x3b4] sm:$0xf] %v4795
    %5052 = vst [vmem:[#allocation2 + $0x3b8] sm:$0xf] %v4796
    %5053 = vst [vmem:[#allocation2 + $0x3bc] sm:$0xf] %v4797
    %5054 = vst [vmem:[#allocation2 + $0x3c0] sm:$0xf] %v4798
    %5055 = vst [vmem:[#allocation2 + $0x3c4] sm:$0xf] %v4799
    %5056 = vst [vmem:[#allocation2 + $0x3c8] sm:$0xf] %v4800
    %5057 = vst [vmem:[#allocation2 + $0x3cc] sm:$0xf] %v4801
    %5058 = vst [vmem:[#allocation2 + $0x3d0] sm:$0xf] %v4802
    %5059 = vst [vmem:[#allocation2 + $0x3d4] sm:$0xf] %v4803
    %5060 = vst [vmem:[#allocation2 + $0x3d8] sm:$0xf] %v4804
    %5061 = vst [vmem:[#allocation2 + $0x3dc] sm:$0xf] %v4805
    %5062 = vst [vmem:[#allocation2 + $0x3e0] sm:$0xf] %v4806
    %5063 = vst [vmem:[#allocation2 + $0x3e4] sm:$0xf] %v4807
    %5064 = vst [vmem:[#allocation2 + $0x3e8] sm:$0xf] %v4808
    %5065 = vst [vmem:[#allocation2 + $0x3ec] sm:$0xf] %v4809
    %5066 = vst [vmem:[#allocation2 + $0x3f0] sm:$0xf] %v4810
    %5067 = vst [vmem:[#allocation2 + $0x3f4] sm:$0xf] %v4811
    %5068 = vst [vmem:[#allocation2 + $0x3f8] sm:$0xf] %v4812
    %5069 = vst [vmem:[#allocation2 + $0x3fc] sm:$0xf] %v4813
    // Predicated region
    $region14: #{matmul_fused.1} parent=1 // pred_check
      _
    $region15: #{matmul_fused.1} parent=1 // pred_check_branch
      %5071 = sbr.rel (0) target = $region17
    $region16: #{matmul_fused.1} parent=1 // pred_region
      %5073 = vsyncadd [#allocation3], 0
      %s5074 = sshll.u32 [#allocation2], 4
      %s5075 = int_to_ptr.vmem [resolvable:$true] %s5074
      %s5076 = sshll.u32 %s3, 4
      %s5077 = int_to_ptr.hbm [resolvable:$true] %s5076
      %5082 = dma.vmem_to_hbm [thread:$0]  %s5075, 16384, %s5077, [#allocation3], 64, 64, 4
    $region17: #{matmul_fused.1} parent=1 // pred_fallthru
      _
    // Predicated region
    $region18: #{matmul_fused.1} parent=1 // pred_check
      _
    $region19: #{matmul_fused.1} parent=1 // pred_check_branch
      %5084 = sbr.rel (0) target = $region21
    $region20: #{matmul_fused.1} parent=1 // pred_region
      %5086 = dma.done [#allocation3], 16384
    $region21: #{matmul_fused.1} parent=1 // pred_fallthru
      _
    %5087 = vsyncpa [#allocation3], 1

</llo_original>
